<compile_context>
chip_gen: v7x
topology: tpu7x:2x2x1
jax: 0.10.0
libtpu: 0.0.40
codegen_flags: <defaults>
</compile_context>

<pallas_src>
import functools

import jax
import jax.numpy as jnp
from jax import lax
from jax.experimental import pallas as pl
from jax.experimental.pallas import tpu as pltpu

EPS = 1e-5
DEFAULT_TILE_M = 512   # 512-row tiles: ~85%+ of HBM roofline, fits v7x VMEM


# ----------------------------- Pallas kernels ------------------------------

def _bn_stats_kernel(x_ref, s_ref, ss_ref, *, tile_m, m_total):
    # x: (tile_m, C); outputs: per-tile partial sums, shape (1, 1, C).
    x = x_ref[...]
    if m_total % tile_m != 0:
        # Mask rows past M in the (padded) last tile.
        row = pl.program_id(0) * tile_m + lax.broadcasted_iota(
            jnp.int32, (tile_m, 1), 0)
        x = jnp.where(row < m_total, x, 0.0)
    s_ref[0] = jnp.sum(x, axis=0, keepdims=True)
    ss_ref[0] = jnp.sum(x * x, axis=0, keepdims=True)


def _bn_relu_conv1x1_kernel(x_ref, scale_ref, bias_ref, w_ref,
                            y_ref, s_ref, ss_ref, *, tile_m, m_total):
    # x: (tile_m, Cin); scale/bias: (1, Cin); w: (Cin, Cout) bf16 (resident).
    # Outputs: y (tile_m, Cout) f32, plus per-tile partial sum / sumsq of y
    # (the BN2 statistics) so y is never re-read from HBM.
    t = jnp.maximum(x_ref[...] * scale_ref[...] + bias_ref[...], 0.0)
    y = jnp.dot(t.astype(jnp.bfloat16), w_ref[...],
                preferred_element_type=jnp.float32)
    y_ref[...] = y
    if m_total % tile_m != 0:
        row = pl.program_id(0) * tile_m + lax.broadcasted_iota(
            jnp.int32, (tile_m, 1), 0)
        y = jnp.where(row < m_total, y, 0.0)
    s_ref[0] = jnp.sum(y, axis=0, keepdims=True)
    ss_ref[0] = jnp.sum(y * y, axis=0, keepdims=True)


def _bn_relu_conv3x3_kernel(y_ref, scale_ref, bias_ref, w_ref, o_ref):
    # y: (1, H, W, C4) unpadded conv1 output for one image.
    # scale/bias: (1, 1, C4); w: (9, C4, K) bf16 (resident); o: (1, H, W, K).
    y = y_ref[0]                                          # (H, W, C4)
    H, W, C4 = y.shape
    K = w_ref.shape[-1]

    t = jnp.maximum(y * scale_ref[...] + bias_ref[...], 0.0)

    # Conv padding pads the BN2+ReLU output with zeros; build the zero halo
    # in-register. Three column (W-axis) shifted copies are computed once and
    # reused across the three row taps (row shifts are whole-slab, aligned).
    zcol = jnp.zeros((H, 1, C4), jnp.float32)
    cols = (
        jnp.concatenate([zcol, t[:, :W - 1, :]], axis=1).astype(jnp.bfloat16),
        t.astype(jnp.bfloat16),
        jnp.concatenate([t[:, 1:, :], zcol], axis=1).astype(jnp.bfloat16),
    )
    zrow = jnp.zeros((1, W, C4), jnp.bfloat16)

    acc = jnp.zeros((H * W, K), jnp.float32)
    for ky in range(3):                                   # dy = ky - 1
        for kx in range(3):                               # dx = kx - 1
            c = cols[kx]
            if ky == 0:
                patch = jnp.concatenate([zrow, c[:H - 1]], axis=0)
            elif ky == 1:
                patch = c
            else:
                patch = jnp.concatenate([c[1:], zrow], axis=0)
            acc = acc + jnp.dot(patch.reshape(H * W, C4), w_ref[ky * 3 + kx],
                                preferred_element_type=jnp.float32)
    o_ref[0] = acc.reshape(H, W, K)


# ------------------------------ Host wrappers -------------------------------

def bn_stats(x2d, tile_m=DEFAULT_TILE_M):
    """Batch mean / biased variance per channel of a (M, C) array."""
    M, C = x2d.shape
    tile_m = min(tile_m, M)
    n_tiles = pl.cdiv(M, tile_m)
    kernel = functools.partial(_bn_stats_kernel, tile_m=tile_m, m_total=M)
    s, ss = pl.pallas_call(
        kernel,
        out_shape=(jax.ShapeDtypeStruct((n_tiles, 1, C), jnp.float32),
                   jax.ShapeDtypeStruct((n_tiles, 1, C), jnp.float32)),
        grid=(n_tiles,),
        in_specs=[pl.BlockSpec((tile_m, C), lambda i: (i, 0))],
        out_specs=(pl.BlockSpec((1, 1, C), lambda i: (i, 0, 0)),
                   pl.BlockSpec((1, 1, C), lambda i: (i, 0, 0))),
        compiler_params=pltpu.CompilerParams(
            dimension_semantics=("parallel",)),
    )(x2d)
    mean = jnp.sum(s[:, 0, :], axis=0, keepdims=True) / M
    ex2 = jnp.sum(ss[:, 0, :], axis=0, keepdims=True) / M
    # NOTE: single-pass E[x^2]-E[x]^2 in f32 (clamped); adequate for
    # zero-mean-ish activations; a centered two-pass would be safer for
    # extreme means.
    var = jnp.maximum(ex2 - mean * mean, 0.0)
    return mean, var


def bn_relu_conv1x1(x2d, scale, bias, w_bf16, tile_m=DEFAULT_TILE_M):
    """Fused BN+ReLU+1x1 conv over M tiles, plus fused partial BN2 stats."""
    M, Cin = x2d.shape
    Cout = w_bf16.shape[1]
    tile_m = min(tile_m, M)
    n_tiles = pl.cdiv(M, tile_m)
    kernel = functools.partial(_bn_relu_conv1x1_kernel,
                               tile_m=tile_m, m_total=M)
    y, s, ss = pl.pallas_call(
        kernel,
        out_shape=(jax.ShapeDtypeStruct((M, Cout), jnp.float32),
                   jax.ShapeDtypeStruct((n_tiles, 1, Cout), jnp.float32),
                   jax.ShapeDtypeStruct((n_tiles, 1, Cout), jnp.float32)),
        grid=(n_tiles,),
        in_specs=[pl.BlockSpec((tile_m, Cin), lambda i: (i, 0)),
                  pl.BlockSpec((1, Cin), lambda i: (0, 0)),
                  pl.BlockSpec((1, Cin), lambda i: (0, 0)),
                  # constant index_map -> weight stays resident in VMEM
                  pl.BlockSpec((Cin, Cout), lambda i: (0, 0))],
        out_specs=(pl.BlockSpec((tile_m, Cout), lambda i: (i, 0)),
                   pl.BlockSpec((1, 1, Cout), lambda i: (i, 0, 0)),
                   pl.BlockSpec((1, 1, Cout), lambda i: (i, 0, 0))),
        compiler_params=pltpu.CompilerParams(
            dimension_semantics=("parallel",)),
    )(x2d, scale, bias, w_bf16)
    mean = jnp.sum(s[:, 0, :], axis=0, keepdims=True) / M
    ex2 = jnp.sum(ss[:, 0, :], axis=0, keepdims=True) / M
    var = jnp.maximum(ex2 - mean * mean, 0.0)
    return y, mean, var


def bn_relu_conv3x3(y_nhwc, scale, bias, w9_bf16):
    N, H, W, C4 = y_nhwc.shape
    K = w9_bf16.shape[-1]
    return pl.pallas_call(
        _bn_relu_conv3x3_kernel,
        out_shape=jax.ShapeDtypeStruct((N, H, W, K), jnp.float32),
        grid=(N,),
        in_specs=[pl.BlockSpec((1, H, W, C4), lambda n: (n, 0, 0, 0)),
                  pl.BlockSpec((1, 1, C4), lambda n: (0, 0, 0)),
                  pl.BlockSpec((1, 1, C4), lambda n: (0, 0, 0)),
                  pl.BlockSpec((9, C4, K), lambda n: (0, 0, 0))],
        out_specs=pl.BlockSpec((1, H, W, K), lambda n: (n, 0, 0, 0)),
        compiler_params=pltpu.CompilerParams(
            dimension_semantics=("parallel",)),
    )(y_nhwc, scale.reshape(1, 1, C4), bias.reshape(1, 1, C4), w9_bf16)


def bottleneck_forward(x_nhwc, w1_bf16, w2_9_bf16):
    N, H, W, Cin = x_nhwc.shape
    M = N * H * W
    C4 = w1_bf16.shape[1]
    x2d = x_nhwc.reshape(M, Cin)

    # BN1 (training-mode batch stats, gamma=1 / beta=0) folded into an affine.
    mean1, var1 = bn_stats(x2d)
    inv1 = lax.rsqrt(var1 + EPS)

    # BN1 + ReLU + 1x1 conv, with BN2 partial statistics fused in (no HBM
    # round-trip re-read of the conv1 output for the second stats pass).
    y2d, mean2, var2 = bn_relu_conv1x1(x2d, inv1, -mean1 * inv1, w1_bf16)
    inv2 = lax.rsqrt(var2 + EPS)

    out = bn_relu_conv3x3(y2d.reshape(N, H, W, C4),
                          inv2, -mean2 * inv2, w2_9_bf16)      # (N, H, W, k)

    # TODO(synk): write the k new channels in place into a preallocated
    # (N,H,W,inc+rep*k) buffer via out_specs + input_output_aliases instead of
    # re-concatenating the whole growing tensor every layer.
    return jnp.concatenate([x_nhwc, out], axis=-1)


def init_dense_block_params(key, inc, rep, k=32):
    # Deterministic synthetic weights (the PyTorch layer would be randomly
    # re-initialized every forward call anyway). Stored as bf16 for the MXU.
    params = []
    c = inc
    for _ in range(rep):
        key, k1, k2 = jax.random.split(key, 3)
        w1 = jax.random.normal(k1, (c, 4 * k), jnp.float32) * (2.0 / c) ** 0.5
        w2 = (jax.random.normal(k2, (3, 3, 4 * k, k), jnp.float32)
              * (2.0 / (9 * 4 * k)) ** 0.5)               # HWIO layout
        params.append((w1.astype(jnp.bfloat16),
                       w2.reshape(9, 4 * k, k).astype(jnp.bfloat16)))
        c += k
    return params


def dense_block_forward(x_nchw, params):
    # Accept NCHW (PyTorch convention), compute in NHWC, return NCHW.
    x = jnp.transpose(x_nchw, (0, 2, 3, 1)).astype(jnp.float32)
    for w1, w2_9 in params:
        x = bottleneck_forward(x, w1, w2_9)
    return jnp.transpose(x, (0, 3, 1, 2))


if __name__ == "__main__":
    key = jax.random.PRNGKey(0)
    kx, kp = jax.random.split(key)

    N, C, H, W = 2, 32, 16, 16      # small NCHW input
    rep, growth = 2, 32             # DenseBlock(inc=32, rep=2, k=32)

    x = jax.random.normal(kx, (N, C, H, W), jnp.float32)
    params = init_dense_block_params(kp, C, rep, growth)

    out = jax.jit(dense_block_forward)(x, params)
    out = jax.block_until_ready(out)
    assert out.shape == (N, C + rep * growth, H, W), out.shape
    assert jnp.all(jnp.isfinite(out))
    print("KERNEL_OK")
</pallas_src>

<mosaic_0001>
module attributes {stable_mosaic.version = 11 : i64} {
  func.func @_bn_relu_conv1x1_kernel(%arg0: i32, %arg1: memref<512x32xf32, #tpu.memory_space<vmem>>, %arg2: memref<1x32xf32, #tpu.memory_space<vmem>>, %arg3: memref<1x32xf32, #tpu.memory_space<vmem>>, %arg4: memref<32x128xbf16, #tpu.memory_space<vmem>>, %arg5: memref<512x128xf32, #tpu.memory_space<vmem>>, %arg6: memref<1x1x128xf32, #tpu.memory_space<vmem>>, %arg7: memref<1x1x128xf32, #tpu.memory_space<vmem>>) attributes {dimension_semantics = [#tpu.dimension_semantics<parallel>], iteration_bounds = array<i64: 1>, scalar_prefetch = 0 : i64, scratch_operands = 0 : i64, tpu.core_type = #tpu.core_type<tc>, window_params = [{transform_indices = @transform_0, window_bounds = array<i64: 512, 32>}, {pipeline_mode = #tpu.pipeline_mode<synchronous>, transform_indices = @transform_1, window_bounds = array<i64: 1, 32>}, {pipeline_mode = #tpu.pipeline_mode<synchronous>, transform_indices = @transform_2, window_bounds = array<i64: 1, 32>}, {pipeline_mode = #tpu.pipeline_mode<synchronous>, transform_indices = @transform_3, window_bounds = array<i64: 32, 128>}, {transform_indices = @transform_4, window_bounds = array<i64: 512, 128>}, {transform_indices = @transform_5, window_bounds = array<i64: 1, 1, 128>}, {transform_indices = @transform_6, window_bounds = array<i64: 1, 1, 128>}]} {
    %c0 = arith.constant 0 : index
    %c0_0 = arith.constant 0 : index
    %0 = vector.load %arg1[%c0, %c0_0] : memref<512x32xf32, #tpu.memory_space<vmem>>, vector<512x32xf32>
    %c0_1 = arith.constant 0 : index
    %c0_2 = arith.constant 0 : index
    %1 = vector.load %arg2[%c0_1, %c0_2] : memref<1x32xf32, #tpu.memory_space<vmem>>, vector<1x32xf32>
    %2 = vector.broadcast %1 : vector<1x32xf32> to vector<512x32xf32>
    %3 = arith.mulf %0, %2 : vector<512x32xf32>
    %c0_3 = arith.constant 0 : index
    %c0_4 = arith.constant 0 : index
    %4 = vector.load %arg3[%c0_3, %c0_4] : memref<1x32xf32, #tpu.memory_space<vmem>>, vector<1x32xf32>
    %5 = vector.broadcast %4 : vector<1x32xf32> to vector<512x32xf32>
    %6 = arith.addf %3, %5 : vector<512x32xf32>
    %cst = arith.constant 0.000000e+00 : f32
    %7 = vector.broadcast %cst : f32 to vector<512x32xf32>
    %8 = arith.maximumf %6, %7 : vector<512x32xf32>
    %9 = arith.truncf %8 : vector<512x32xf32> to vector<512x32xbf16>
    %c0_5 = arith.constant 0 : index
    %c0_6 = arith.constant 0 : index
    %10 = vector.load %arg4[%c0_5, %c0_6] : memref<32x128xbf16, #tpu.memory_space<vmem>>, vector<32x128xbf16>
    %cst_7 = arith.constant dense<0.000000e+00> : vector<512x128xf32>
    %11 = tpu.matmul %9, %10, %cst_7 {dimension_numbers = #tpu.dot_dimension_numbers<[1], [0], [0], [1], [0, 0, 1, 1], [], []>} : vector<512x32xbf16>, vector<32x128xbf16>, vector<512x128xf32> -> vector<512x128xf32>
    %c0_8 = arith.constant 0 : index
    %c0_9 = arith.constant 0 : index
    %12 = vector.load %arg5[%c0_8, %c0_9] : memref<512x128xf32, #tpu.memory_space<vmem>>, vector<512x128xf32>
    tpu.vector_store %arg5[%c0_8, %c0_9], %11 {strides = array<i32>} : memref<512x128xf32, #tpu.memory_space<vmem>>, vector<512x128xf32>,
    %cst_10 = arith.constant dense<0.000000e+00> : vector<128xf32>
    %13 = vector.multi_reduction <add>, %11, %cst_10 [0] : vector<512x128xf32> to vector<128xf32>
    %14 = vector.shape_cast %13 : vector<128xf32> to vector<1x128xf32>
    %c0_11 = arith.constant 0 : index
    %c0_12 = arith.constant 0 : index
    %c0_13 = arith.constant 0 : index
    %15 = vector.load %arg6[%c0_11, %c0_12, %c0_13] : memref<1x1x128xf32, #tpu.memory_space<vmem>>, vector<1x1x128xf32>
    %16 = vector.shape_cast %15 : vector<1x1x128xf32> to vector<1x128xf32>
    %17 = vector.shape_cast %14 : vector<1x128xf32> to vector<1x1x128xf32>
    tpu.vector_store %arg6[%c0_11, %c0_12, %c0_13], %17 {strides = array<i32>} : memref<1x1x128xf32, #tpu.memory_space<vmem>>, vector<1x1x128xf32>,
    %18 = arith.mulf %11, %11 : vector<512x128xf32>
    %cst_14 = arith.constant dense<0.000000e+00> : vector<128xf32>
    %19 = vector.multi_reduction <add>, %18, %cst_14 [0] : vector<512x128xf32> to vector<128xf32>
    %20 = vector.shape_cast %19 : vector<128xf32> to vector<1x128xf32>
    %c0_15 = arith.constant 0 : index
    %c0_16 = arith.constant 0 : index
    %c0_17 = arith.constant 0 : index
    %21 = vector.load %arg7[%c0_15, %c0_16, %c0_17] : memref<1x1x128xf32, #tpu.memory_space<vmem>>, vector<1x1x128xf32>
    %22 = vector.shape_cast %21 : vector<1x1x128xf32> to vector<1x128xf32>
    %23 = vector.shape_cast %20 : vector<1x128xf32> to vector<1x1x128xf32>
    tpu.vector_store %arg7[%c0_15, %c0_16, %c0_17], %23 {strides = array<i32>} : memref<1x1x128xf32, #tpu.memory_space<vmem>>, vector<1x1x128xf32>,
    return
  }
  func.func @transform_0(%arg0: i32) -> (i32, i32) {
    %c0_i32 = arith.constant 0 : i32
    %c0_i32_0 = arith.constant 0 : i32
    return %arg0, %c0_i32 : i32, i32
  }
  func.func @transform_1(%arg0: i32) -> (i32, i32) {
    %c0_i32 = arith.constant 0 : i32
    %c0_i32_0 = arith.constant 0 : i32
    %c0_i32_1 = arith.constant 0 : i32
    return %c0_i32, %c0_i32_0 : i32, i32
  }
  func.func @transform_2(%arg0: i32) -> (i32, i32) {
    %c0_i32 = arith.constant 0 : i32
    %c0_i32_0 = arith.constant 0 : i32
    %c0_i32_1 = arith.constant 0 : i32
    return %c0_i32, %c0_i32_0 : i32, i32
  }
  func.func @transform_3(%arg0: i32) -> (i32, i32) {
    %c0_i32 = arith.constant 0 : i32
    %c0_i32_0 = arith.constant 0 : i32
    %c0_i32_1 = arith.constant 0 : i32
    return %c0_i32, %c0_i32_0 : i32, i32
  }
  func.func @transform_4(%arg0: i32) -> (i32, i32) {
    %c0_i32 = arith.constant 0 : i32
    %c0_i32_0 = arith.constant 0 : i32
    return %arg0, %c0_i32 : i32, i32
  }
  func.func @transform_5(%arg0: i32) -> (i32, i32, i32) {
    %c0_i32 = arith.constant 0 : i32
    %c0_i32_0 = arith.constant 0 : i32
    %c0_i32_1 = arith.constant 0 : i32
    return %arg0, %c0_i32, %c0_i32_0 : i32, i32, i32
  }
  func.func @transform_6(%arg0: i32) -> (i32, i32, i32) {
    %c0_i32 = arith.constant 0 : i32
    %c0_i32_0 = arith.constant 0 : i32
    %c0_i32_1 = arith.constant 0 : i32
    return %arg0, %c0_i32, %c0_i32_0 : i32, i32, i32
  }
}

module attributes {stable_mosaic.version = 11 : i64} {
  func.func @_bn_stats_kernel(%arg0: i32, %arg1: memref<512x32xf32, #tpu.memory_space<vmem>>, %arg2: memref<1x1x32xf32, #tpu.memory_space<vmem>>, %arg3: memref<1x1x32xf32, #tpu.memory_space<vmem>>) attributes {dimension_semantics = [#tpu.dimension_semantics<parallel>], iteration_bounds = array<i64: 1>, scalar_prefetch = 0 : i64, scratch_operands = 0 : i64, tpu.core_type = #tpu.core_type<tc>, window_params = [{transform_indices = @transform_0, window_bounds = array<i64: 512, 32>}, {transform_indices = @transform_1, window_bounds = array<i64: 1, 1, 32>}, {transform_indices = @transform_2, window_bounds = array<i64: 1, 1, 32>}]} {
    %c0 = arith.constant 0 : index
    %c0_0 = arith.constant 0 : index
    %0 = vector.load %arg1[%c0, %c0_0] : memref<512x32xf32, #tpu.memory_space<vmem>>, vector<512x32xf32>
    %cst = arith.constant dense<0.000000e+00> : vector<32xf32>
    %1 = vector.multi_reduction <add>, %0, %cst [0] : vector<512x32xf32> to vector<32xf32>
    %2 = vector.shape_cast %1 : vector<32xf32> to vector<1x32xf32>
    %c0_1 = arith.constant 0 : index
    %c0_2 = arith.constant 0 : index
    %c0_3 = arith.constant 0 : index
    %3 = vector.load %arg2[%c0_1, %c0_2, %c0_3] : memref<1x1x32xf32, #tpu.memory_space<vmem>>, vector<1x1x32xf32>
    %4 = vector.shape_cast %3 : vector<1x1x32xf32> to vector<1x32xf32>
    %5 = vector.shape_cast %2 : vector<1x32xf32> to vector<1x1x32xf32>
    tpu.vector_store %arg2[%c0_1, %c0_2, %c0_3], %5 {strides = array<i32>} : memref<1x1x32xf32, #tpu.memory_space<vmem>>, vector<1x1x32xf32>,
    %6 = arith.mulf %0, %0 : vector<512x32xf32>
    %cst_4 = arith.constant dense<0.000000e+00> : vector<32xf32>
    %7 = vector.multi_reduction <add>, %6, %cst_4 [0] : vector<512x32xf32> to vector<32xf32>
    %8 = vector.shape_cast %7 : vector<32xf32> to vector<1x32xf32>
    %c0_5 = arith.constant 0 : index
    %c0_6 = arith.constant 0 : index
    %c0_7 = arith.constant 0 : index
    %9 = vector.load %arg3[%c0_5, %c0_6, %c0_7] : memref<1x1x32xf32, #tpu.memory_space<vmem>>, vector<1x1x32xf32>
    %10 = vector.shape_cast %9 : vector<1x1x32xf32> to vector<1x32xf32>
    %11 = vector.shape_cast %8 : vector<1x32xf32> to vector<1x1x32xf32>
    tpu.vector_store %arg3[%c0_5, %c0_6, %c0_7], %11 {strides = array<i32>} : memref<1x1x32xf32, #tpu.memory_space<vmem>>, vector<1x1x32xf32>,
    return
  }
  func.func @transform_0(%arg0: i32) -> (i32, i32) {
    %c0_i32 = arith.constant 0 : i32
    %c0_i32_0 = arith.constant 0 : i32
    return %arg0, %c0_i32 : i32, i32
  }
  func.func @transform_1(%arg0: i32) -> (i32, i32, i32) {
    %c0_i32 = arith.constant 0 : i32
    %c0_i32_0 = arith.constant 0 : i32
    %c0_i32_1 = arith.constant 0 : i32
    return %arg0, %c0_i32, %c0_i32_0 : i32, i32, i32
  }
  func.func @transform_2(%arg0: i32) -> (i32, i32, i32) {
    %c0_i32 = arith.constant 0 : i32
    %c0_i32_0 = arith.constant 0 : i32
    %c0_i32_1 = arith.constant 0 : i32
    return %arg0, %c0_i32, %c0_i32_0 : i32, i32, i32
  }
}

module attributes {stable_mosaic.version = 11 : i64} {
  func.func @_bn_relu_conv3x3_kernel(%arg0: i32, %arg1: memref<1x16x16x128xf32, #tpu.memory_space<vmem>>, %arg2: memref<1x1x128xf32, #tpu.memory_space<vmem>>, %arg3: memref<1x1x128xf32, #tpu.memory_space<vmem>>, %arg4: memref<9x128x32xbf16, #tpu.memory_space<vmem>>, %arg5: memref<1x16x16x32xf32, #tpu.memory_space<vmem>>) attributes {dimension_semantics = [#tpu.dimension_semantics<parallel>], iteration_bounds = array<i64: 2>, scalar_prefetch = 0 : i64, scratch_operands = 0 : i64, tpu.core_type = #tpu.core_type<tc>, window_params = [{transform_indices = @transform_0, window_bounds = array<i64: 1, 16, 16, 128>}, {pipeline_mode = #tpu.pipeline_mode<synchronous>, transform_indices = @transform_1, window_bounds = array<i64: 1, 1, 128>}, {pipeline_mode = #tpu.pipeline_mode<synchronous>, transform_indices = @transform_2, window_bounds = array<i64: 1, 1, 128>}, {pipeline_mode = #tpu.pipeline_mode<synchronous>, transform_indices = @transform_3, window_bounds = array<i64: 9, 128, 32>}, {transform_indices = @transform_4, window_bounds = array<i64: 1, 16, 16, 32>}]} {
    %c0 = arith.constant 0 : index
    %c0_0 = arith.constant 0 : index
    %c0_1 = arith.constant 0 : index
    %c0_2 = arith.constant 0 : index
    %0 = vector.load %arg1[%c0, %c0_0, %c0_1, %c0_2] : memref<1x16x16x128xf32, #tpu.memory_space<vmem>>, vector<1x16x16x128xf32>
    %1 = vector.shape_cast %0 : vector<1x16x16x128xf32> to vector<16x16x128xf32>
    %c0_3 = arith.constant 0 : index
    %c0_4 = arith.constant 0 : index
    %c0_5 = arith.constant 0 : index
    %2 = vector.load %arg2[%c0_3, %c0_4, %c0_5] : memref<1x1x128xf32, #tpu.memory_space<vmem>>, vector<1x1x128xf32>
    %3 = vector.broadcast %2 : vector<1x1x128xf32> to vector<16x16x128xf32>
    %4 = arith.mulf %1, %3 : vector<16x16x128xf32>
    %c0_6 = arith.constant 0 : index
    %c0_7 = arith.constant 0 : index
    %c0_8 = arith.constant 0 : index
    %5 = vector.load %arg3[%c0_6, %c0_7, %c0_8] : memref<1x1x128xf32, #tpu.memory_space<vmem>>, vector<1x1x128xf32>
    %6 = vector.broadcast %5 : vector<1x1x128xf32> to vector<16x16x128xf32>
    %7 = arith.addf %4, %6 : vector<16x16x128xf32>
    %cst = arith.constant 0.000000e+00 : f32
    %8 = vector.broadcast %cst : f32 to vector<16x16x128xf32>
    %9 = arith.maximumf %7, %8 : vector<16x16x128xf32>
    %cst_9 = arith.constant 0.000000e+00 : f32
    %10 = vector.broadcast %cst_9 : f32 to vector<16x1x128xf32>
    %11 = vector.extract_strided_slice %9 {offsets = [0, 0, 0], sizes = [16, 15, 128], strides = [1, 1, 1]} : vector<16x16x128xf32> to vector<16x15x128xf32>
    %12 = tpu.concatenate %10, %11 in 1 : vector<16x1x128xf32>, vector<16x15x128xf32> -> vector<16x16x128xf32>
    %13 = arith.truncf %12 : vector<16x16x128xf32> to vector<16x16x128xbf16>
    %14 = arith.truncf %9 : vector<16x16x128xf32> to vector<16x16x128xbf16>
    %15 = vector.extract_strided_slice %9 {offsets = [0, 1, 0], sizes = [16, 15, 128], strides = [1, 1, 1]} : vector<16x16x128xf32> to vector<16x15x128xf32>
    %16 = tpu.concatenate %15, %10 in 1 : vector<16x15x128xf32>, vector<16x1x128xf32> -> vector<16x16x128xf32>
    %17 = arith.truncf %16 : vector<16x16x128xf32> to vector<16x16x128xbf16>
    %cst_10 = arith.constant 0.000000e+00 : bf16
    %18 = vector.broadcast %cst_10 : bf16 to vector<1x16x128xbf16>
    %cst_11 = arith.constant 0.000000e+00 : f32
    %19 = vector.broadcast %cst_11 : f32 to vector<256x32xf32>
    %20 = vector.extract_strided_slice %13 {offsets = [0, 0, 0], sizes = [15, 16, 128], strides = [1, 1, 1]} : vector<16x16x128xbf16> to vector<15x16x128xbf16>
    %21 = tpu.concatenate %18, %20 in 0 : vector<1x16x128xbf16>, vector<15x16x128xbf16> -> vector<16x16x128xbf16>
    %22 = vector.shape_cast %21 : vector<16x16x128xbf16> to vector<256x128xbf16>
    %c0_12 = arith.constant 0 : index
    %c0_13 = arith.constant 0 : index
    %c0_14 = arith.constant 0 : index
    %23 = vector.load %arg4[%c0_12, %c0_13, %c0_14] : memref<9x128x32xbf16, #tpu.memory_space<vmem>>, vector<1x128x32xbf16>
    %24 = vector.shape_cast %23 : vector<1x128x32xbf16> to vector<128x32xbf16>
    %cst_15 = arith.constant dense<0.000000e+00> : vector<256x32xf32>
    %25 = tpu.matmul %22, %24, %cst_15 {dimension_numbers = #tpu.dot_dimension_numbers<[1], [0], [0], [1], [0, 0, 1, 1], [], []>} : vector<256x128xbf16>, vector<128x32xbf16>, vector<256x32xf32> -> vector<256x32xf32>
    %26 = arith.addf %19, %25 : vector<256x32xf32>
    %27 = vector.extract_strided_slice %14 {offsets = [0, 0, 0], sizes = [15, 16, 128], strides = [1, 1, 1]} : vector<16x16x128xbf16> to vector<15x16x128xbf16>
    %28 = tpu.concatenate %18, %27 in 0 : vector<1x16x128xbf16>, vector<15x16x128xbf16> -> vector<16x16x128xbf16>
    %29 = vector.shape_cast %28 : vector<16x16x128xbf16> to vector<256x128xbf16>
    %c1 = arith.constant 1 : index
    %c0_16 = arith.constant 0 : index
    %c0_17 = arith.constant 0 : index
    %30 = vector.load %arg4[%c1, %c0_16, %c0_17] : memref<9x128x32xbf16, #tpu.memory_space<vmem>>, vector<1x128x32xbf16>
    %31 = vector.shape_cast %30 : vector<1x128x32xbf16> to vector<128x32xbf16>
    %cst_18 = arith.constant dense<0.000000e+00> : vector<256x32xf32>
    %32 = tpu.matmul %29, %31, %cst_18 {dimension_numbers = #tpu.dot_dimension_numbers<[1], [0], [0], [1], [0, 0, 1, 1], [], []>} : vector<256x128xbf16>, vector<128x32xbf16>, vector<256x32xf32> -> vector<256x32xf32>
    %33 = arith.addf %26, %32 : vector<256x32xf32>
    %34 = vector.extract_strided_slice %17 {offsets = [0, 0, 0], sizes = [15, 16, 128], strides = [1, 1, 1]} : vector<16x16x128xbf16> to vector<15x16x128xbf16>
    %35 = tpu.concatenate %18, %34 in 0 : vector<1x16x128xbf16>, vector<15x16x128xbf16> -> vector<16x16x128xbf16>
    %36 = vector.shape_cast %35 : vector<16x16x128xbf16> to vector<256x128xbf16>
    %c2 = arith.constant 2 : index
    %c0_19 = arith.constant 0 : index
    %c0_20 = arith.constant 0 : index
    %37 = vector.load %arg4[%c2, %c0_19, %c0_20] : memref<9x128x32xbf16, #tpu.memory_space<vmem>>, vector<1x128x32xbf16>
    %38 = vector.shape_cast %37 : vector<1x128x32xbf16> to vector<128x32xbf16>
    %cst_21 = arith.constant dense<0.000000e+00> : vector<256x32xf32>
    %39 = tpu.matmul %36, %38, %cst_21 {dimension_numbers = #tpu.dot_dimension_numbers<[1], [0], [0], [1], [0, 0, 1, 1], [], []>} : vector<256x128xbf16>, vector<128x32xbf16>, vector<256x32xf32> -> vector<256x32xf32>
    %40 = arith.addf %33, %39 : vector<256x32xf32>
    %41 = vector.shape_cast %13 : vector<16x16x128xbf16> to vector<256x128xbf16>
    %c3 = arith.constant 3 : index
    %c0_22 = arith.constant 0 : index
    %c0_23 = arith.constant 0 : index
    %42 = vector.load %arg4[%c3, %c0_22, %c0_23] : memref<9x128x32xbf16, #tpu.memory_space<vmem>>, vector<1x128x32xbf16>
    %43 = vector.shape_cast %42 : vector<1x128x32xbf16> to vector<128x32xbf16>
    %cst_24 = arith.constant dense<0.000000e+00> : vector<256x32xf32>
    %44 = tpu.matmul %41, %43, %cst_24 {dimension_numbers = #tpu.dot_dimension_numbers<[1], [0], [0], [1], [0, 0, 1, 1], [], []>} : vector<256x128xbf16>, vector<128x32xbf16>, vector<256x32xf32> -> vector<256x32xf32>
    %45 = arith.addf %40, %44 : vector<256x32xf32>
    %46 = vector.shape_cast %14 : vector<16x16x128xbf16> to vector<256x128xbf16>
    %c4 = arith.constant 4 : index
    %c0_25 = arith.constant 0 : index
    %c0_26 = arith.constant 0 : index
    %47 = vector.load %arg4[%c4, %c0_25, %c0_26] : memref<9x128x32xbf16, #tpu.memory_space<vmem>>, vector<1x128x32xbf16>
    %48 = vector.shape_cast %47 : vector<1x128x32xbf16> to vector<128x32xbf16>
    %cst_27 = arith.constant dense<0.000000e+00> : vector<256x32xf32>
    %49 = tpu.matmul %46, %48, %cst_27 {dimension_numbers = #tpu.dot_dimension_numbers<[1], [0], [0], [1], [0, 0, 1, 1], [], []>} : vector<256x128xbf16>, vector<128x32xbf16>, vector<256x32xf32> -> vector<256x32xf32>
    %50 = arith.addf %45, %49 : vector<256x32xf32>
    %51 = vector.shape_cast %17 : vector<16x16x128xbf16> to vector<256x128xbf16>
    %c5 = arith.constant 5 : index
    %c0_28 = arith.constant 0 : index
    %c0_29 = arith.constant 0 : index
    %52 = vector.load %arg4[%c5, %c0_28, %c0_29] : memref<9x128x32xbf16, #tpu.memory_space<vmem>>, vector<1x128x32xbf16>
    %53 = vector.shape_cast %52 : vector<1x128x32xbf16> to vector<128x32xbf16>
    %cst_30 = arith.constant dense<0.000000e+00> : vector<256x32xf32>
    %54 = tpu.matmul %51, %53, %cst_30 {dimension_numbers = #tpu.dot_dimension_numbers<[1], [0], [0], [1], [0, 0, 1, 1], [], []>} : vector<256x128xbf16>, vector<128x32xbf16>, vector<256x32xf32> -> vector<256x32xf32>
    %55 = arith.addf %50, %54 : vector<256x32xf32>
    %56 = vector.extract_strided_slice %13 {offsets = [1, 0, 0], sizes = [15, 16, 128], strides = [1, 1, 1]} : vector<16x16x128xbf16> to vector<15x16x128xbf16>
    %57 = tpu.concatenate %56, %18 in 0 : vector<15x16x128xbf16>, vector<1x16x128xbf16> -> vector<16x16x128xbf16>
    %58 = vector.shape_cast %57 : vector<16x16x128xbf16> to vector<256x128xbf16>
    %c6 = arith.constant 6 : index
    %c0_31 = arith.constant 0 : index
    %c0_32 = arith.constant 0 : index
    %59 = vector.load %arg4[%c6, %c0_31, %c0_32] : memref<9x128x32xbf16, #tpu.memory_space<vmem>>, vector<1x128x32xbf16>
    %60 = vector.shape_cast %59 : vector<1x128x32xbf16> to vector<128x32xbf16>
    %cst_33 = arith.constant dense<0.000000e+00> : vector<256x32xf32>
    %61 = tpu.matmul %58, %60, %cst_33 {dimension_numbers = #tpu.dot_dimension_numbers<[1], [0], [0], [1], [0, 0, 1, 1], [], []>} : vector<256x128xbf16>, vector<128x32xbf16>, vector<256x32xf32> -> vector<256x32xf32>
    %62 = arith.addf %55, %61 : vector<256x32xf32>
    %63 = vector.extract_strided_slice %14 {offsets = [1, 0, 0], sizes = [15, 16, 128], strides = [1, 1, 1]} : vector<16x16x128xbf16> to vector<15x16x128xbf16>
    %64 = tpu.concatenate %63, %18 in 0 : vector<15x16x128xbf16>, vector<1x16x128xbf16> -> vector<16x16x128xbf16>
    %65 = vector.shape_cast %64 : vector<16x16x128xbf16> to vector<256x128xbf16>
    %c7 = arith.constant 7 : index
    %c0_34 = arith.constant 0 : index
    %c0_35 = arith.constant 0 : index
    %66 = vector.load %arg4[%c7, %c0_34, %c0_35] : memref<9x128x32xbf16, #tpu.memory_space<vmem>>, vector<1x128x32xbf16>
    %67 = vector.shape_cast %66 : vector<1x128x32xbf16> to vector<128x32xbf16>
    %cst_36 = arith.constant dense<0.000000e+00> : vector<256x32xf32>
    %68 = tpu.matmul %65, %67, %cst_36 {dimension_numbers = #tpu.dot_dimension_numbers<[1], [0], [0], [1], [0, 0, 1, 1], [], []>} : vector<256x128xbf16>, vector<128x32xbf16>, vector<256x32xf32> -> vector<256x32xf32>
    %69 = arith.addf %62, %68 : vector<256x32xf32>
    %70 = vector.extract_strided_slice %17 {offsets = [1, 0, 0], sizes = [15, 16, 128], strides = [1, 1, 1]} : vector<16x16x128xbf16> to vector<15x16x128xbf16>
    %71 = tpu.concatenate %70, %18 in 0 : vector<15x16x128xbf16>, vector<1x16x128xbf16> -> vector<16x16x128xbf16>
    %72 = vector.shape_cast %71 : vector<16x16x128xbf16> to vector<256x128xbf16>
    %c8 = arith.constant 8 : index
    %c0_37 = arith.constant 0 : index
    %c0_38 = arith.constant 0 : index
    %73 = vector.load %arg4[%c8, %c0_37, %c0_38] : memref<9x128x32xbf16, #tpu.memory_space<vmem>>, vector<1x128x32xbf16>
    %74 = vector.shape_cast %73 : vector<1x128x32xbf16> to vector<128x32xbf16>
    %cst_39 = arith.constant dense<0.000000e+00> : vector<256x32xf32>
    %75 = tpu.matmul %72, %74, %cst_39 {dimension_numbers = #tpu.dot_dimension_numbers<[1], [0], [0], [1], [0, 0, 1, 1], [], []>} : vector<256x128xbf16>, vector<128x32xbf16>, vector<256x32xf32> -> vector<256x32xf32>
    %76 = arith.addf %69, %75 : vector<256x32xf32>
    %77 = vector.shape_cast %76 : vector<256x32xf32> to vector<16x16x32xf32>
    %c0_40 = arith.constant 0 : index
    %c0_41 = arith.constant 0 : index
    %c0_42 = arith.constant 0 : index
    %c0_43 = arith.constant 0 : index
    %78 = vector.load %arg5[%c0_40, %c0_41, %c0_42, %c0_43] : memref<1x16x16x32xf32, #tpu.memory_space<vmem>>, vector<1x16x16x32xf32>
    %79 = vector.shape_cast %78 : vector<1x16x16x32xf32> to vector<16x16x32xf32>
    %80 = vector.shape_cast %77 : vector<16x16x32xf32> to vector<1x16x16x32xf32>
    tpu.vector_store %arg5[%c0_40, %c0_41, %c0_42, %c0_43], %80 {strides = array<i32>} : memref<1x16x16x32xf32, #tpu.memory_space<vmem>>, vector<1x16x16x32xf32>,
    return
  }
  func.func @transform_0(%arg0: i32) -> (i32, i32, i32, i32) {
    %c0_i32 = arith.constant 0 : i32
    %c0_i32_0 = arith.constant 0 : i32
    %c0_i32_1 = arith.constant 0 : i32
    %c0_i32_2 = arith.constant 0 : i32
    return %arg0, %c0_i32, %c0_i32_0, %c0_i32_1 : i32, i32, i32, i32
  }
  func.func @transform_1(%arg0: i32) -> (i32, i32, i32) {
    %c0_i32 = arith.constant 0 : i32
    %c0_i32_0 = arith.constant 0 : i32
    %c0_i32_1 = arith.constant 0 : i32
    %c0_i32_2 = arith.constant 0 : i32
    return %c0_i32, %c0_i32_0, %c0_i32_1 : i32, i32, i32
  }
  func.func @transform_2(%arg0: i32) -> (i32, i32, i32) {
    %c0_i32 = arith.constant 0 : i32
    %c0_i32_0 = arith.constant 0 : i32
    %c0_i32_1 = arith.constant 0 : i32
    %c0_i32_2 = arith.constant 0 : i32
    return %c0_i32, %c0_i32_0, %c0_i32_1 : i32, i32, i32
  }
  func.func @transform_3(%arg0: i32) -> (i32, i32, i32) {
    %c0_i32 = arith.constant 0 : i32
    %c0_i32_0 = arith.constant 0 : i32
    %c0_i32_1 = arith.constant 0 : i32
    %c0_i32_2 = arith.constant 0 : i32
    return %c0_i32, %c0_i32_0, %c0_i32_1 : i32, i32, i32
  }
  func.func @transform_4(%arg0: i32) -> (i32, i32, i32, i32) {
    %c0_i32 = arith.constant 0 : i32
    %c0_i32_0 = arith.constant 0 : i32
    %c0_i32_1 = arith.constant 0 : i32
    %c0_i32_2 = arith.constant 0 : i32
    return %arg0, %c0_i32, %c0_i32_0, %c0_i32_1 : i32, i32, i32, i32
  }
}

module attributes {stable_mosaic.version = 11 : i64} {
  func.func @_bn_stats_kernel(%arg0: i32, %arg1: memref<512x64xf32, #tpu.memory_space<vmem>>, %arg2: memref<1x1x64xf32, #tpu.memory_space<vmem>>, %arg3: memref<1x1x64xf32, #tpu.memory_space<vmem>>) attributes {dimension_semantics = [#tpu.dimension_semantics<parallel>], iteration_bounds = array<i64: 1>, scalar_prefetch = 0 : i64, scratch_operands = 0 : i64, tpu.core_type = #tpu.core_type<tc>, window_params = [{transform_indices = @transform_0, window_bounds = array<i64: 512, 64>}, {transform_indices = @transform_1, window_bounds = array<i64: 1, 1, 64>}, {transform_indices = @transform_2, window_bounds = array<i64: 1, 1, 64>}]} {
    %c0 = arith.constant 0 : index
    %c0_0 = arith.constant 0 : index
    %0 = vector.load %arg1[%c0, %c0_0] : memref<512x64xf32, #tpu.memory_space<vmem>>, vector<512x64xf32>
    %cst = arith.constant dense<0.000000e+00> : vector<64xf32>
    %1 = vector.multi_reduction <add>, %0, %cst [0] : vector<512x64xf32> to vector<64xf32>
    %2 = vector.shape_cast %1 : vector<64xf32> to vector<1x64xf32>
    %c0_1 = arith.constant 0 : index
    %c0_2 = arith.constant 0 : index
    %c0_3 = arith.constant 0 : index
    %3 = vector.load %arg2[%c0_1, %c0_2, %c0_3] : memref<1x1x64xf32, #tpu.memory_space<vmem>>, vector<1x1x64xf32>
    %4 = vector.shape_cast %3 : vector<1x1x64xf32> to vector<1x64xf32>
    %5 = vector.shape_cast %2 : vector<1x64xf32> to vector<1x1x64xf32>
    tpu.vector_store %arg2[%c0_1, %c0_2, %c0_3], %5 {strides = array<i32>} : memref<1x1x64xf32, #tpu.memory_space<vmem>>, vector<1x1x64xf32>,
    %6 = arith.mulf %0, %0 : vector<512x64xf32>
    %cst_4 = arith.constant dense<0.000000e+00> : vector<64xf32>
    %7 = vector.multi_reduction <add>, %6, %cst_4 [0] : vector<512x64xf32> to vector<64xf32>
    %8 = vector.shape_cast %7 : vector<64xf32> to vector<1x64xf32>
    %c0_5 = arith.constant 0 : index
    %c0_6 = arith.constant 0 : index
    %c0_7 = arith.constant 0 : index
    %9 = vector.load %arg3[%c0_5, %c0_6, %c0_7] : memref<1x1x64xf32, #tpu.memory_space<vmem>>, vector<1x1x64xf32>
    %10 = vector.shape_cast %9 : vector<1x1x64xf32> to vector<1x64xf32>
    %11 = vector.shape_cast %8 : vector<1x64xf32> to vector<1x1x64xf32>
    tpu.vector_store %arg3[%c0_5, %c0_6, %c0_7], %11 {strides = array<i32>} : memref<1x1x64xf32, #tpu.memory_space<vmem>>, vector<1x1x64xf32>,
    return
  }
  func.func @transform_0(%arg0: i32) -> (i32, i32) {
    %c0_i32 = arith.constant 0 : i32
    %c0_i32_0 = arith.constant 0 : i32
    return %arg0, %c0_i32 : i32, i32
  }
  func.func @transform_1(%arg0: i32) -> (i32, i32, i32) {
    %c0_i32 = arith.constant 0 : i32
    %c0_i32_0 = arith.constant 0 : i32
    %c0_i32_1 = arith.constant 0 : i32
    return %arg0, %c0_i32, %c0_i32_0 : i32, i32, i32
  }
  func.func @transform_2(%arg0: i32) -> (i32, i32, i32) {
    %c0_i32 = arith.constant 0 : i32
    %c0_i32_0 = arith.constant 0 : i32
    %c0_i32_1 = arith.constant 0 : i32
    return %arg0, %c0_i32, %c0_i32_0 : i32, i32, i32
  }
}

module attributes {stable_mosaic.version = 11 : i64} {
  func.func @_bn_relu_conv1x1_kernel(%arg0: i32, %arg1: memref<512x64xf32, #tpu.memory_space<vmem>>, %arg2: memref<1x64xf32, #tpu.memory_space<vmem>>, %arg3: memref<1x64xf32, #tpu.memory_space<vmem>>, %arg4: memref<64x128xbf16, #tpu.memory_space<vmem>>, %arg5: memref<512x128xf32, #tpu.memory_space<vmem>>, %arg6: memref<1x1x128xf32, #tpu.memory_space<vmem>>, %arg7: memref<1x1x128xf32, #tpu.memory_space<vmem>>) attributes {dimension_semantics = [#tpu.dimension_semantics<parallel>], iteration_bounds = array<i64: 1>, scalar_prefetch = 0 : i64, scratch_operands = 0 : i64, tpu.core_type = #tpu.core_type<tc>, window_params = [{transform_indices = @transform_0, window_bounds = array<i64: 512, 64>}, {pipeline_mode = #tpu.pipeline_mode<synchronous>, transform_indices = @transform_1, window_bounds = array<i64: 1, 64>}, {pipeline_mode = #tpu.pipeline_mode<synchronous>, transform_indices = @transform_2, window_bounds = array<i64: 1, 64>}, {pipeline_mode = #tpu.pipeline_mode<synchronous>, transform_indices = @transform_3, window_bounds = array<i64: 64, 128>}, {transform_indices = @transform_4, window_bounds = array<i64: 512, 128>}, {transform_indices = @transform_5, window_bounds = array<i64: 1, 1, 128>}, {transform_indices = @transform_6, window_bounds = array<i64: 1, 1, 128>}]} {
    %c0 = arith.constant 0 : index
    %c0_0 = arith.constant 0 : index
    %0 = vector.load %arg1[%c0, %c0_0] : memref<512x64xf32, #tpu.memory_space<vmem>>, vector<512x64xf32>
    %c0_1 = arith.constant 0 : index
    %c0_2 = arith.constant 0 : index
    %1 = vector.load %arg2[%c0_1, %c0_2] : memref<1x64xf32, #tpu.memory_space<vmem>>, vector<1x64xf32>
    %2 = vector.broadcast %1 : vector<1x64xf32> to vector<512x64xf32>
    %3 = arith.mulf %0, %2 : vector<512x64xf32>
    %c0_3 = arith.constant 0 : index
    %c0_4 = arith.constant 0 : index
    %4 = vector.load %arg3[%c0_3, %c0_4] : memref<1x64xf32, #tpu.memory_space<vmem>>, vector<1x64xf32>
    %5 = vector.broadcast %4 : vector<1x64xf32> to vector<512x64xf32>
    %6 = arith.addf %3, %5 : vector<512x64xf32>
    %cst = arith.constant 0.000000e+00 : f32
    %7 = vector.broadcast %cst : f32 to vector<512x64xf32>
    %8 = arith.maximumf %6, %7 : vector<512x64xf32>
    %9 = arith.truncf %8 : vector<512x64xf32> to vector<512x64xbf16>
    %c0_5 = arith.constant 0 : index
    %c0_6 = arith.constant 0 : index
    %10 = vector.load %arg4[%c0_5, %c0_6] : memref<64x128xbf16, #tpu.memory_space<vmem>>, vector<64x128xbf16>
    %cst_7 = arith.constant dense<0.000000e+00> : vector<512x128xf32>
    %11 = tpu.matmul %9, %10, %cst_7 {dimension_numbers = #tpu.dot_dimension_numbers<[1], [0], [0], [1], [0, 0, 1, 1], [], []>} : vector<512x64xbf16>, vector<64x128xbf16>, vector<512x128xf32> -> vector<512x128xf32>
    %c0_8 = arith.constant 0 : index
    %c0_9 = arith.constant 0 : index
    %12 = vector.load %arg5[%c0_8, %c0_9] : memref<512x128xf32, #tpu.memory_space<vmem>>, vector<512x128xf32>
    tpu.vector_store %arg5[%c0_8, %c0_9], %11 {strides = array<i32>} : memref<512x128xf32, #tpu.memory_space<vmem>>, vector<512x128xf32>,
    %cst_10 = arith.constant dense<0.000000e+00> : vector<128xf32>
    %13 = vector.multi_reduction <add>, %11, %cst_10 [0] : vector<512x128xf32> to vector<128xf32>
    %14 = vector.shape_cast %13 : vector<128xf32> to vector<1x128xf32>
    %c0_11 = arith.constant 0 : index
    %c0_12 = arith.constant 0 : index
    %c0_13 = arith.constant 0 : index
    %15 = vector.load %arg6[%c0_11, %c0_12, %c0_13] : memref<1x1x128xf32, #tpu.memory_space<vmem>>, vector<1x1x128xf32>
    %16 = vector.shape_cast %15 : vector<1x1x128xf32> to vector<1x128xf32>
    %17 = vector.shape_cast %14 : vector<1x128xf32> to vector<1x1x128xf32>
    tpu.vector_store %arg6[%c0_11, %c0_12, %c0_13], %17 {strides = array<i32>} : memref<1x1x128xf32, #tpu.memory_space<vmem>>, vector<1x1x128xf32>,
    %18 = arith.mulf %11, %11 : vector<512x128xf32>
    %cst_14 = arith.constant dense<0.000000e+00> : vector<128xf32>
    %19 = vector.multi_reduction <add>, %18, %cst_14 [0] : vector<512x128xf32> to vector<128xf32>
    %20 = vector.shape_cast %19 : vector<128xf32> to vector<1x128xf32>
    %c0_15 = arith.constant 0 : index
    %c0_16 = arith.constant 0 : index
    %c0_17 = arith.constant 0 : index
    %21 = vector.load %arg7[%c0_15, %c0_16, %c0_17] : memref<1x1x128xf32, #tpu.memory_space<vmem>>, vector<1x1x128xf32>
    %22 = vector.shape_cast %21 : vector<1x1x128xf32> to vector<1x128xf32>
    %23 = vector.shape_cast %20 : vector<1x128xf32> to vector<1x1x128xf32>
    tpu.vector_store %arg7[%c0_15, %c0_16, %c0_17], %23 {strides = array<i32>} : memref<1x1x128xf32, #tpu.memory_space<vmem>>, vector<1x1x128xf32>,
    return
  }
  func.func @transform_0(%arg0: i32) -> (i32, i32) {
    %c0_i32 = arith.constant 0 : i32
    %c0_i32_0 = arith.constant 0 : i32
    return %arg0, %c0_i32 : i32, i32
  }
  func.func @transform_1(%arg0: i32) -> (i32, i32) {
    %c0_i32 = arith.constant 0 : i32
    %c0_i32_0 = arith.constant 0 : i32
    %c0_i32_1 = arith.constant 0 : i32
    return %c0_i32, %c0_i32_0 : i32, i32
  }
  func.func @transform_2(%arg0: i32) -> (i32, i32) {
    %c0_i32 = arith.constant 0 : i32
    %c0_i32_0 = arith.constant 0 : i32
    %c0_i32_1 = arith.constant 0 : i32
    return %c0_i32, %c0_i32_0 : i32, i32
  }
  func.func @transform_3(%arg0: i32) -> (i32, i32) {
    %c0_i32 = arith.constant 0 : i32
    %c0_i32_0 = arith.constant 0 : i32
    %c0_i32_1 = arith.constant 0 : i32
    return %c0_i32, %c0_i32_0 : i32, i32
  }
  func.func @transform_4(%arg0: i32) -> (i32, i32) {
    %c0_i32 = arith.constant 0 : i32
    %c0_i32_0 = arith.constant 0 : i32
    return %arg0, %c0_i32 : i32, i32
  }
  func.func @transform_5(%arg0: i32) -> (i32, i32, i32) {
    %c0_i32 = arith.constant 0 : i32
    %c0_i32_0 = arith.constant 0 : i32
    %c0_i32_1 = arith.constant 0 : i32
    return %arg0, %c0_i32, %c0_i32_0 : i32, i32, i32
  }
  func.func @transform_6(%arg0: i32) -> (i32, i32, i32) {
    %c0_i32 = arith.constant 0 : i32
    %c0_i32_0 = arith.constant 0 : i32
    %c0_i32_1 = arith.constant 0 : i32
    return %arg0, %c0_i32, %c0_i32_0 : i32, i32, i32
  }
}

</mosaic_0001>

<llo_original>
// kernel: dense_block_forward.6
$region0: #{dense_block_forward.6}
  #allocation0 [shape = 'u32[]', space=smem, size = 0x4, offset = 0x4, fixed_abs, tag = 'smem constant byte address 0x4 - core index']
  #allocation1 [shape = 'u32[144,128]{1,0:T(1,128)}', space=vmem, size = 0x12000, scoped, tag = 'internal scratch']
  %s0 = inlined_call_operand.hbm [shape: f32[512,32], index: 0, kind: input, shape index: {}]
  %s1 = inlined_call_operand.vmem [shape: f32[1,1,32], index: 1, kind: output, shape index: {0}]
  %s2 = inlined_call_operand.vmem [shape: f32[1,1,32], index: 2, kind: output, shape index: {1}]
  %3 = xla_tuple %s1, %s2
  %s4 = sld [smem:[#allocation0]]
  $region26: #{dense_block_forward.6} parent=0
    _
  %s6 = ssub.s32 1, %s4
  %s7 = scalar_select 0, %s6, %s4
  $region1: #{dense_block_forward.6} parent=0
    #allocation2 [shape = 'u8[262144]{0}', space=vmem, size = 0x40000, scoped, tag = 'input window, operand 0, single buffered']
    #allocation3 [shape = 's32[1]{0}', space=sflag, size = 0x4, scoped, tag = 'scoped memory for dense_block_forward.6']
    %8 = vsyncpa [#allocation3], 0
    // Predicated region
    $region2: #{dense_block_forward.6} parent=1 // pred_check
      _
    $region3: #{dense_block_forward.6} parent=1 // pred_check_branch
      %10 = sbr.rel (0) target = $region5
    $region4: #{dense_block_forward.6} parent=1 // pred_region
      %s12 = ssub.s32 8192, 8192
      %13 = vsyncadd [#allocation3], %s12
      %s14 = sshll.u32 [#allocation2], 4
      %s15 = int_to_ptr.vmem [resolvable:$true] %s14
      %20 = dma.hbm_to_vmem [thread:$0]  %s0, 8192, %s15, [#allocation3], 128, 128, 8
    $region5: #{dense_block_forward.6} parent=1 // pred_fallthru
      _
    // Predicated region
    $region6: #{dense_block_forward.6} parent=1 // pred_check
      _
    $region7: #{dense_block_forward.6} parent=1 // pred_check_branch
      %22 = sbr.rel (0) target = $region9
    $region8: #{dense_block_forward.6} parent=1 // pred_region
      %23 = dma.done [#allocation3], 8192
    $region9: #{dense_block_forward.6} parent=1 // pred_fallthru
      _
    %v24 = vld [vmem:[#allocation2] sm:$0xff]
    %v25 = vld [vmem:[#allocation2 + $0x8] sm:$0xff]
    %v26 = vld [vmem:[#allocation2 + $0x10] sm:$0xff]
    %v27 = vld [vmem:[#allocation2 + $0x18] sm:$0xff]
    %v28 = vld [vmem:[#allocation2 + $0x20] sm:$0xff]
    %v29 = vld [vmem:[#allocation2 + $0x28] sm:$0xff]
    %v30 = vld [vmem:[#allocation2 + $0x30] sm:$0xff]
    %v31 = vld [vmem:[#allocation2 + $0x38] sm:$0xff]
    %v32 = vld [vmem:[#allocation2 + $0x40] sm:$0xff]
    %v33 = vld [vmem:[#allocation2 + $0x48] sm:$0xff]
    %v34 = vld [vmem:[#allocation2 + $0x50] sm:$0xff]
    %v35 = vld [vmem:[#allocation2 + $0x58] sm:$0xff]
    %v36 = vld [vmem:[#allocation2 + $0x60] sm:$0xff]
    %v37 = vld [vmem:[#allocation2 + $0x68] sm:$0xff]
    %v38 = vld [vmem:[#allocation2 + $0x70] sm:$0xff]
    %v39 = vld [vmem:[#allocation2 + $0x78] sm:$0xff]
    %v40 = vld [vmem:[#allocation2 + $0x80] sm:$0xff]
    %v41 = vld [vmem:[#allocation2 + $0x88] sm:$0xff]
    %v42 = vld [vmem:[#allocation2 + $0x90] sm:$0xff]
    %v43 = vld [vmem:[#allocation2 + $0x98] sm:$0xff]
    %v44 = vld [vmem:[#allocation2 + $0xa0] sm:$0xff]
    %v45 = vld [vmem:[#allocation2 + $0xa8] sm:$0xff]
    %v46 = vld [vmem:[#allocation2 + $0xb0] sm:$0xff]
    %v47 = vld [vmem:[#allocation2 + $0xb8] sm:$0xff]
    %v48 = vld [vmem:[#allocation2 + $0xc0] sm:$0xff]
    %v49 = vld [vmem:[#allocation2 + $0xc8] sm:$0xff]
    %v50 = vld [vmem:[#allocation2 + $0xd0] sm:$0xff]
    %v51 = vld [vmem:[#allocation2 + $0xd8] sm:$0xff]
    %v52 = vld [vmem:[#allocation2 + $0xe0] sm:$0xff]
    %v53 = vld [vmem:[#allocation2 + $0xe8] sm:$0xff]
    %v54 = vld [vmem:[#allocation2 + $0xf0] sm:$0xff]
    %v55 = vld [vmem:[#allocation2 + $0xf8] sm:$0xff]
    %v56 = vld [vmem:[#allocation2 + $0x100] sm:$0xff]
    %v57 = vld [vmem:[#allocation2 + $0x108] sm:$0xff]
    %v58 = vld [vmem:[#allocation2 + $0x110] sm:$0xff]
    %v59 = vld [vmem:[#allocation2 + $0x118] sm:$0xff]
    %v60 = vld [vmem:[#allocation2 + $0x120] sm:$0xff]
    %v61 = vld [vmem:[#allocation2 + $0x128] sm:$0xff]
    %v62 = vld [vmem:[#allocation2 + $0x130] sm:$0xff]
    %v63 = vld [vmem:[#allocation2 + $0x138] sm:$0xff]
    %v64 = vld [vmem:[#allocation2 + $0x140] sm:$0xff]
    %v65 = vld [vmem:[#allocation2 + $0x148] sm:$0xff]
    %v66 = vld [vmem:[#allocation2 + $0x150] sm:$0xff]
    %v67 = vld [vmem:[#allocation2 + $0x158] sm:$0xff]
    %v68 = vld [vmem:[#allocation2 + $0x160] sm:$0xff]
    %v69 = vld [vmem:[#allocation2 + $0x168] sm:$0xff]
    %v70 = vld [vmem:[#allocation2 + $0x170] sm:$0xff]
    %v71 = vld [vmem:[#allocation2 + $0x178] sm:$0xff]
    %v72 = vld [vmem:[#allocation2 + $0x180] sm:$0xff]
    %v73 = vld [vmem:[#allocation2 + $0x188] sm:$0xff]
    %v74 = vld [vmem:[#allocation2 + $0x190] sm:$0xff]
    %v75 = vld [vmem:[#allocation2 + $0x198] sm:$0xff]
    %v76 = vld [vmem:[#allocation2 + $0x1a0] sm:$0xff]
    %v77 = vld [vmem:[#allocation2 + $0x1a8] sm:$0xff]
    %v78 = vld [vmem:[#allocation2 + $0x1b0] sm:$0xff]
    %v79 = vld [vmem:[#allocation2 + $0x1b8] sm:$0xff]
    %v80 = vld [vmem:[#allocation2 + $0x1c0] sm:$0xff]
    %v81 = vld [vmem:[#allocation2 + $0x1c8] sm:$0xff]
    %v82 = vld [vmem:[#allocation2 + $0x1d0] sm:$0xff]
    %v83 = vld [vmem:[#allocation2 + $0x1d8] sm:$0xff]
    %v84 = vld [vmem:[#allocation2 + $0x1e0] sm:$0xff]
    %v85 = vld [vmem:[#allocation2 + $0x1e8] sm:$0xff]
    %v86 = vld [vmem:[#allocation2 + $0x1f0] sm:$0xff]
    %v87 = vld [vmem:[#allocation2 + $0x1f8] sm:$0xff]
    %vm88 = vcmask 261120
    %v89 = vsel %vm88, %v24, 0.0
    %v90 = vsel %vm88, %v25, 0.0
    %v91 = vadd.f32 %v89, %v90
    %v92 = vsel %vm88, %v26, 0.0
    %v93 = vadd.f32 %v91, %v92
    %v94 = vsel %vm88, %v27, 0.0
    %v95 = vadd.f32 %v93, %v94
    %v96 = vsel %vm88, %v28, 0.0
    %v97 = vadd.f32 %v95, %v96
    %v98 = vsel %vm88, %v29, 0.0
    %v99 = vadd.f32 %v97, %v98
    %v100 = vsel %vm88, %v30, 0.0
    %v101 = vadd.f32 %v99, %v100
    %v102 = vsel %vm88, %v31, 0.0
    %v103 = vadd.f32 %v101, %v102
    %v104 = vsel %vm88, %v32, 0.0
    %v105 = vadd.f32 %v103, %v104
    %v106 = vsel %vm88, %v33, 0.0
    %v107 = vadd.f32 %v105, %v106
    %v108 = vsel %vm88, %v34, 0.0
    %v109 = vadd.f32 %v107, %v108
    %v110 = vsel %vm88, %v35, 0.0
    %v111 = vadd.f32 %v109, %v110
    %v112 = vsel %vm88, %v36, 0.0
    %v113 = vadd.f32 %v111, %v112
    %v114 = vsel %vm88, %v37, 0.0
    %v115 = vadd.f32 %v113, %v114
    %v116 = vsel %vm88, %v38, 0.0
    %v117 = vadd.f32 %v115, %v116
    %v118 = vsel %vm88, %v39, 0.0
    %v119 = vadd.f32 %v117, %v118
    %v120 = vsel %vm88, %v40, 0.0
    %v121 = vadd.f32 %v119, %v120
    %v122 = vsel %vm88, %v41, 0.0
    %v123 = vadd.f32 %v121, %v122
    %v124 = vsel %vm88, %v42, 0.0
    %v125 = vadd.f32 %v123, %v124
    %v126 = vsel %vm88, %v43, 0.0
    %v127 = vadd.f32 %v125, %v126
    %v128 = vsel %vm88, %v44, 0.0
    %v129 = vadd.f32 %v127, %v128
    %v130 = vsel %vm88, %v45, 0.0
    %v131 = vadd.f32 %v129, %v130
    %v132 = vsel %vm88, %v46, 0.0
    %v133 = vadd.f32 %v131, %v132
    %v134 = vsel %vm88, %v47, 0.0
    %v135 = vadd.f32 %v133, %v134
    %v136 = vsel %vm88, %v48, 0.0
    %v137 = vadd.f32 %v135, %v136
    %v138 = vsel %vm88, %v49, 0.0
    %v139 = vadd.f32 %v137, %v138
    %v140 = vsel %vm88, %v50, 0.0
    %v141 = vadd.f32 %v139, %v140
    %v142 = vsel %vm88, %v51, 0.0
    %v143 = vadd.f32 %v141, %v142
    %v144 = vsel %vm88, %v52, 0.0
    %v145 = vadd.f32 %v143, %v144
    %v146 = vsel %vm88, %v53, 0.0
    %v147 = vadd.f32 %v145, %v146
    %v148 = vsel %vm88, %v54, 0.0
    %v149 = vadd.f32 %v147, %v148
    %v150 = vsel %vm88, %v55, 0.0
    %v151 = vadd.f32 %v149, %v150
    %v152 = vsel %vm88, %v56, 0.0
    %v153 = vadd.f32 %v151, %v152
    %v154 = vsel %vm88, %v57, 0.0
    %v155 = vadd.f32 %v153, %v154
    %v156 = vsel %vm88, %v58, 0.0
    %v157 = vadd.f32 %v155, %v156
    %v158 = vsel %vm88, %v59, 0.0
    %v159 = vadd.f32 %v157, %v158
    %v160 = vsel %vm88, %v60, 0.0
    %v161 = vadd.f32 %v159, %v160
    %v162 = vsel %vm88, %v61, 0.0
    %v163 = vadd.f32 %v161, %v162
    %v164 = vsel %vm88, %v62, 0.0
    %v165 = vadd.f32 %v163, %v164
    %v166 = vsel %vm88, %v63, 0.0
    %v167 = vadd.f32 %v165, %v166
    %v168 = vsel %vm88, %v64, 0.0
    %v169 = vadd.f32 %v167, %v168
    %v170 = vsel %vm88, %v65, 0.0
    %v171 = vadd.f32 %v169, %v170
    %v172 = vsel %vm88, %v66, 0.0
    %v173 = vadd.f32 %v171, %v172
    %v174 = vsel %vm88, %v67, 0.0
    %v175 = vadd.f32 %v173, %v174
    %v176 = vsel %vm88, %v68, 0.0
    %v177 = vadd.f32 %v175, %v176
    %v178 = vsel %vm88, %v69, 0.0
    %v179 = vadd.f32 %v177, %v178
    %v180 = vsel %vm88, %v70, 0.0
    %v181 = vadd.f32 %v179, %v180
    %v182 = vsel %vm88, %v71, 0.0
    %v183 = vadd.f32 %v181, %v182
    %v184 = vsel %vm88, %v72, 0.0
    %v185 = vadd.f32 %v183, %v184
    %v186 = vsel %vm88, %v73, 0.0
    %v187 = vadd.f32 %v185, %v186
    %v188 = vsel %vm88, %v74, 0.0
    %v189 = vadd.f32 %v187, %v188
    %v190 = vsel %vm88, %v75, 0.0
    %v191 = vadd.f32 %v189, %v190
    %v192 = vsel %vm88, %v76, 0.0
    %v193 = vadd.f32 %v191, %v192
    %v194 = vsel %vm88, %v77, 0.0
    %v195 = vadd.f32 %v193, %v194
    %v196 = vsel %vm88, %v78, 0.0
    %v197 = vadd.f32 %v195, %v196
    %v198 = vsel %vm88, %v79, 0.0
    %v199 = vadd.f32 %v197, %v198
    %v200 = vsel %vm88, %v80, 0.0
    %v201 = vadd.f32 %v199, %v200
    %v202 = vsel %vm88, %v81, 0.0
    %v203 = vadd.f32 %v201, %v202
    %v204 = vsel %vm88, %v82, 0.0
    %v205 = vadd.f32 %v203, %v204
    %v206 = vsel %vm88, %v83, 0.0
    %v207 = vadd.f32 %v205, %v206
    %v208 = vsel %vm88, %v84, 0.0
    %v209 = vadd.f32 %v207, %v208
    %v210 = vsel %vm88, %v85, 0.0
    %v211 = vadd.f32 %v209, %v210
    %v212 = vsel %vm88, %v86, 0.0
    %v213 = vadd.f32 %v211, %v212
    %v214 = vsel %vm88, %v87, 0.0
    %v215 = vadd.f32 %v213, %v214
    %v216 = vrot.slane %v215, 4
    %v217 = vadd.f32 %v215, %v216
    %v218 = vrot.slane %v217, 2
    %v219 = vadd.f32 %v217, %v218
    %v220 = vrot.slane %v219, 1
    %v221 = vadd.f32 %v219, %v220
    %vm222 = vcmask 253952
    %223 = vst.msk [vmem:[%s1] sm:$0x1] %vm222, %v221
    %v224 = vmul.f32 %v24, %v24
    %v225 = vmul.f32 %v25, %v25
    %v226 = vmul.f32 %v26, %v26
    %v227 = vmul.f32 %v27, %v27
    %v228 = vmul.f32 %v28, %v28
    %v229 = vmul.f32 %v29, %v29
    %v230 = vmul.f32 %v30, %v30
    %v231 = vmul.f32 %v31, %v31
    %v232 = vmul.f32 %v32, %v32
    %v233 = vmul.f32 %v33, %v33
    %v234 = vmul.f32 %v34, %v34
    %v235 = vmul.f32 %v35, %v35
    %v236 = vmul.f32 %v36, %v36
    %v237 = vmul.f32 %v37, %v37
    %v238 = vmul.f32 %v38, %v38
    %v239 = vmul.f32 %v39, %v39
    %v240 = vmul.f32 %v40, %v40
    %v241 = vmul.f32 %v41, %v41
    %v242 = vmul.f32 %v42, %v42
    %v243 = vmul.f32 %v43, %v43
    %v244 = vmul.f32 %v44, %v44
    %v245 = vmul.f32 %v45, %v45
    %v246 = vmul.f32 %v46, %v46
    %v247 = vmul.f32 %v47, %v47
    %v248 = vmul.f32 %v48, %v48
    %v249 = vmul.f32 %v49, %v49
    %v250 = vmul.f32 %v50, %v50
    %v251 = vmul.f32 %v51, %v51
    %v252 = vmul.f32 %v52, %v52
    %v253 = vmul.f32 %v53, %v53
    %v254 = vmul.f32 %v54, %v54
    %v255 = vmul.f32 %v55, %v55
    %v256 = vmul.f32 %v56, %v56
    %v257 = vmul.f32 %v57, %v57
    %v258 = vmul.f32 %v58, %v58
    %v259 = vmul.f32 %v59, %v59
    %v260 = vmul.f32 %v60, %v60
    %v261 = vmul.f32 %v61, %v61
    %v262 = vmul.f32 %v62, %v62
    %v263 = vmul.f32 %v63, %v63
    %v264 = vmul.f32 %v64, %v64
    %v265 = vmul.f32 %v65, %v65
    %v266 = vmul.f32 %v66, %v66
    %v267 = vmul.f32 %v67, %v67
    %v268 = vmul.f32 %v68, %v68
    %v269 = vmul.f32 %v69, %v69
    %v270 = vmul.f32 %v70, %v70
    %v271 = vmul.f32 %v71, %v71
    %v272 = vmul.f32 %v72, %v72
    %v273 = vmul.f32 %v73, %v73
    %v274 = vmul.f32 %v74, %v74
    %v275 = vmul.f32 %v75, %v75
    %v276 = vmul.f32 %v76, %v76
    %v277 = vmul.f32 %v77, %v77
    %v278 = vmul.f32 %v78, %v78
    %v279 = vmul.f32 %v79, %v79
    %v280 = vmul.f32 %v80, %v80
    %v281 = vmul.f32 %v81, %v81
    %v282 = vmul.f32 %v82, %v82
    %v283 = vmul.f32 %v83, %v83
    %v284 = vmul.f32 %v84, %v84
    %v285 = vmul.f32 %v85, %v85
    %v286 = vmul.f32 %v86, %v86
    %v287 = vmul.f32 %v87, %v87
    %v288 = vsel %vm88, %v224, 0.0
    %v289 = vsel %vm88, %v225, 0.0
    %v290 = vadd.f32 %v288, %v289
    %v291 = vsel %vm88, %v226, 0.0
    %v292 = vadd.f32 %v290, %v291
    %v293 = vsel %vm88, %v227, 0.0
    %v294 = vadd.f32 %v292, %v293
    %v295 = vsel %vm88, %v228, 0.0
    %v296 = vadd.f32 %v294, %v295
    %v297 = vsel %vm88, %v229, 0.0
    %v298 = vadd.f32 %v296, %v297
    %v299 = vsel %vm88, %v230, 0.0
    %v300 = vadd.f32 %v298, %v299
    %v301 = vsel %vm88, %v231, 0.0
    %v302 = vadd.f32 %v300, %v301
    %v303 = vsel %vm88, %v232, 0.0
    %v304 = vadd.f32 %v302, %v303
    %v305 = vsel %vm88, %v233, 0.0
    %v306 = vadd.f32 %v304, %v305
    %v307 = vsel %vm88, %v234, 0.0
    %v308 = vadd.f32 %v306, %v307
    %v309 = vsel %vm88, %v235, 0.0
    %v310 = vadd.f32 %v308, %v309
    %v311 = vsel %vm88, %v236, 0.0
    %v312 = vadd.f32 %v310, %v311
    %v313 = vsel %vm88, %v237, 0.0
    %v314 = vadd.f32 %v312, %v313
    %v315 = vsel %vm88, %v238, 0.0
    %v316 = vadd.f32 %v314, %v315
    %v317 = vsel %vm88, %v239, 0.0
    %v318 = vadd.f32 %v316, %v317
    %v319 = vsel %vm88, %v240, 0.0
    %v320 = vadd.f32 %v318, %v319
    %v321 = vsel %vm88, %v241, 0.0
    %v322 = vadd.f32 %v320, %v321
    %v323 = vsel %vm88, %v242, 0.0
    %v324 = vadd.f32 %v322, %v323
    %v325 = vsel %vm88, %v243, 0.0
    %v326 = vadd.f32 %v324, %v325
    %v327 = vsel %vm88, %v244, 0.0
    %v328 = vadd.f32 %v326, %v327
    %v329 = vsel %vm88, %v245, 0.0
    %v330 = vadd.f32 %v328, %v329
    %v331 = vsel %vm88, %v246, 0.0
    %v332 = vadd.f32 %v330, %v331
    %v333 = vsel %vm88, %v247, 0.0
    %v334 = vadd.f32 %v332, %v333
    %v335 = vsel %vm88, %v248, 0.0
    %v336 = vadd.f32 %v334, %v335
    %v337 = vsel %vm88, %v249, 0.0
    %v338 = vadd.f32 %v336, %v337
    %v339 = vsel %vm88, %v250, 0.0
    %v340 = vadd.f32 %v338, %v339
    %v341 = vsel %vm88, %v251, 0.0
    %v342 = vadd.f32 %v340, %v341
    %v343 = vsel %vm88, %v252, 0.0
    %v344 = vadd.f32 %v342, %v343
    %v345 = vsel %vm88, %v253, 0.0
    %v346 = vadd.f32 %v344, %v345
    %v347 = vsel %vm88, %v254, 0.0
    %v348 = vadd.f32 %v346, %v347
    %v349 = vsel %vm88, %v255, 0.0
    %v350 = vadd.f32 %v348, %v349
    %v351 = vsel %vm88, %v256, 0.0
    %v352 = vadd.f32 %v350, %v351
    %v353 = vsel %vm88, %v257, 0.0
    %v354 = vadd.f32 %v352, %v353
    %v355 = vsel %vm88, %v258, 0.0
    %v356 = vadd.f32 %v354, %v355
    %v357 = vsel %vm88, %v259, 0.0
    %v358 = vadd.f32 %v356, %v357
    %v359 = vsel %vm88, %v260, 0.0
    %v360 = vadd.f32 %v358, %v359
    %v361 = vsel %vm88, %v261, 0.0
    %v362 = vadd.f32 %v360, %v361
    %v363 = vsel %vm88, %v262, 0.0
    %v364 = vadd.f32 %v362, %v363
    %v365 = vsel %vm88, %v263, 0.0
    %v366 = vadd.f32 %v364, %v365
    %v367 = vsel %vm88, %v264, 0.0
    %v368 = vadd.f32 %v366, %v367
    %v369 = vsel %vm88, %v265, 0.0
    %v370 = vadd.f32 %v368, %v369
    %v371 = vsel %vm88, %v266, 0.0
    %v372 = vadd.f32 %v370, %v371
    %v373 = vsel %vm88, %v267, 0.0
    %v374 = vadd.f32 %v372, %v373
    %v375 = vsel %vm88, %v268, 0.0
    %v376 = vadd.f32 %v374, %v375
    %v377 = vsel %vm88, %v269, 0.0
    %v378 = vadd.f32 %v376, %v377
    %v379 = vsel %vm88, %v270, 0.0
    %v380 = vadd.f32 %v378, %v379
    %v381 = vsel %vm88, %v271, 0.0
    %v382 = vadd.f32 %v380, %v381
    %v383 = vsel %vm88, %v272, 0.0
    %v384 = vadd.f32 %v382, %v383
    %v385 = vsel %vm88, %v273, 0.0
    %v386 = vadd.f32 %v384, %v385
    %v387 = vsel %vm88, %v274, 0.0
    %v388 = vadd.f32 %v386, %v387
    %v389 = vsel %vm88, %v275, 0.0
    %v390 = vadd.f32 %v388, %v389
    %v391 = vsel %vm88, %v276, 0.0
    %v392 = vadd.f32 %v390, %v391
    %v393 = vsel %vm88, %v277, 0.0
    %v394 = vadd.f32 %v392, %v393
    %v395 = vsel %vm88, %v278, 0.0
    %v396 = vadd.f32 %v394, %v395
    %v397 = vsel %vm88, %v279, 0.0
    %v398 = vadd.f32 %v396, %v397
    %v399 = vsel %vm88, %v280, 0.0
    %v400 = vadd.f32 %v398, %v399
    %v401 = vsel %vm88, %v281, 0.0
    %v402 = vadd.f32 %v400, %v401
    %v403 = vsel %vm88, %v282, 0.0
    %v404 = vadd.f32 %v402, %v403
    %v405 = vsel %vm88, %v283, 0.0
    %v406 = vadd.f32 %v404, %v405
    %v407 = vsel %vm88, %v284, 0.0
    %v408 = vadd.f32 %v406, %v407
    %v409 = vsel %vm88, %v285, 0.0
    %v410 = vadd.f32 %v408, %v409
    %v411 = vsel %vm88, %v286, 0.0
    %v412 = vadd.f32 %v410, %v411
    %v413 = vsel %vm88, %v287, 0.0
    %v414 = vadd.f32 %v412, %v413
    %v415 = vrot.slane %v414, 4
    %v416 = vadd.f32 %v414, %v415
    %v417 = vrot.slane %v416, 2
    %v418 = vadd.f32 %v416, %v417
    %v419 = vrot.slane %v418, 1
    %v420 = vadd.f32 %v418, %v419
    %421 = vst.msk [vmem:[%s2] sm:$0x1] %vm222, %v420
    // Predicated region
    $region10: #{dense_block_forward.6} parent=1 // pred_check
      _
    $region11: #{dense_block_forward.6} parent=1 // pred_check_branch
      %423 = sbr.rel (0) target = $region13
    $region12: #{dense_block_forward.6} parent=1 // pred_region
      _
    $region13: #{dense_block_forward.6} parent=1 // pred_fallthru
      _
    // Predicated region
    $region14: #{dense_block_forward.6} parent=1 // pred_check
      _
    $region15: #{dense_block_forward.6} parent=1 // pred_check_branch
      %425 = sbr.rel (0) target = $region17
    $region16: #{dense_block_forward.6} parent=1 // pred_region
      _
    $region17: #{dense_block_forward.6} parent=1 // pred_fallthru
      _
    // Predicated region
    $region18: #{dense_block_forward.6} parent=1 // pred_check
      _
    $region19: #{dense_block_forward.6} parent=1 // pred_check_branch
      %427 = sbr.rel (0) target = $region21
    $region20: #{dense_block_forward.6} parent=1 // pred_region
      _
    $region21: #{dense_block_forward.6} parent=1 // pred_fallthru
      _
    // Predicated region
    $region22: #{dense_block_forward.6} parent=1 // pred_check
      _
    $region23: #{dense_block_forward.6} parent=1 // pred_check_branch
      %429 = sbr.rel (0) target = $region25
    $region24: #{dense_block_forward.6} parent=1 // pred_region
      _
    $region25: #{dense_block_forward.6} parent=1 // pred_fallthru
      _
    %430 = vsyncpa [#allocation3], 1

// kernel: dense_block_forward.7
$region0: #{dense_block_forward.7}
  #allocation0 [shape = 'u32[]', space=smem, size = 0x4, offset = 0x4, fixed_abs, tag = 'smem constant byte address 0x4 - core index']
  #allocation1 [shape = 'u32[144,128]{1,0:T(1,128)}', space=vmem, size = 0x12000, scoped, tag = 'internal scratch']
  %s0 = inlined_call_operand.vmem [shape: f32[512,32], index: 0, kind: input, shape index: {}]
  %s1 = inlined_call_operand.vmem [shape: f32[1,32], index: 1, kind: input, shape index: {}]
  %s2 = inlined_call_operand.vmem [shape: f32[1,32], index: 2, kind: input, shape index: {}]
  %s3 = inlined_call_operand.vmem [shape: bf16[32,128], index: 3, kind: input, shape index: {}]
  %s4 = inlined_call_operand.vmem [shape: f32[512,128], index: 4, kind: output, shape index: {0}]
  %s5 = inlined_call_operand.vmem [shape: f32[1,1,128], index: 5, kind: output, shape index: {1}]
  %s6 = inlined_call_operand.vmem [shape: f32[1,1,128], index: 6, kind: output, shape index: {2}]
  %7 = xla_tuple %s4, %s5, %s6
  %s8 = sld [smem:[#allocation0]]
  $region42: #{dense_block_forward.7} parent=0
    _
  %s10 = ssub.s32 1, %s8
  %s11 = scalar_select 0, %s10, %s8
  // Predicated region
  $region2: #{dense_block_forward.7} parent=0 // pred_check
    _
  $region3: #{dense_block_forward.7} parent=0 // pred_check_branch
    %13 = sbr.rel (0) target = $region5
  $region4: #{dense_block_forward.7} parent=0 // pred_region
    _
  $region5: #{dense_block_forward.7} parent=0 // pred_fallthru
    _
  // Predicated region
  $region6: #{dense_block_forward.7} parent=0 // pred_check
    _
  $region7: #{dense_block_forward.7} parent=0 // pred_check_branch
    %15 = sbr.rel (0) target = $region9
  $region8: #{dense_block_forward.7} parent=0 // pred_region
    _
  $region9: #{dense_block_forward.7} parent=0 // pred_fallthru
    _
  // Predicated region
  $region10: #{dense_block_forward.7} parent=0 // pred_check
    _
  $region11: #{dense_block_forward.7} parent=0 // pred_check_branch
    %17 = sbr.rel (0) target = $region13
  $region12: #{dense_block_forward.7} parent=0 // pred_region
    _
  $region13: #{dense_block_forward.7} parent=0 // pred_fallthru
    _
  // Predicated region
  $region14: #{dense_block_forward.7} parent=0 // pred_check
    _
  $region15: #{dense_block_forward.7} parent=0 // pred_check_branch
    %19 = sbr.rel (0) target = $region17
  $region16: #{dense_block_forward.7} parent=0 // pred_region
    _
  $region17: #{dense_block_forward.7} parent=0 // pred_fallthru
    _
  %v21 = vld [vmem:[%s0] sm:$0xff]
  %v22 = vld [vmem:[%s0 + $0x8] sm:$0xff]
  %v23 = vld [vmem:[%s0 + $0x10] sm:$0xff]
  %v24 = vld [vmem:[%s0 + $0x18] sm:$0xff]
  %v25 = vld [vmem:[%s0 + $0x20] sm:$0xff]
  %v26 = vld [vmem:[%s0 + $0x28] sm:$0xff]
  %v27 = vld [vmem:[%s0 + $0x30] sm:$0xff]
  %v28 = vld [vmem:[%s0 + $0x38] sm:$0xff]
  %v29 = vld [vmem:[%s0 + $0x40] sm:$0xff]
  %v30 = vld [vmem:[%s0 + $0x48] sm:$0xff]
  %v31 = vld [vmem:[%s0 + $0x50] sm:$0xff]
  %v32 = vld [vmem:[%s0 + $0x58] sm:$0xff]
  %v33 = vld [vmem:[%s0 + $0x60] sm:$0xff]
  %v34 = vld [vmem:[%s0 + $0x68] sm:$0xff]
  %v35 = vld [vmem:[%s0 + $0x70] sm:$0xff]
  %v36 = vld [vmem:[%s0 + $0x78] sm:$0xff]
  %v37 = vld [vmem:[%s0 + $0x80] sm:$0xff]
  %v38 = vld [vmem:[%s0 + $0x88] sm:$0xff]
  %v39 = vld [vmem:[%s0 + $0x90] sm:$0xff]
  %v40 = vld [vmem:[%s0 + $0x98] sm:$0xff]
  %v41 = vld [vmem:[%s0 + $0xa0] sm:$0xff]
  %v42 = vld [vmem:[%s0 + $0xa8] sm:$0xff]
  %v43 = vld [vmem:[%s0 + $0xb0] sm:$0xff]
  %v44 = vld [vmem:[%s0 + $0xb8] sm:$0xff]
  %v45 = vld [vmem:[%s0 + $0xc0] sm:$0xff]
  %v46 = vld [vmem:[%s0 + $0xc8] sm:$0xff]
  %v47 = vld [vmem:[%s0 + $0xd0] sm:$0xff]
  %v48 = vld [vmem:[%s0 + $0xd8] sm:$0xff]
  %v49 = vld [vmem:[%s0 + $0xe0] sm:$0xff]
  %v50 = vld [vmem:[%s0 + $0xe8] sm:$0xff]
  %v51 = vld [vmem:[%s0 + $0xf0] sm:$0xff]
  %v52 = vld [vmem:[%s0 + $0xf8] sm:$0xff]
  %v53 = vld [vmem:[%s0 + $0x100] sm:$0xff]
  %v54 = vld [vmem:[%s0 + $0x108] sm:$0xff]
  %v55 = vld [vmem:[%s0 + $0x110] sm:$0xff]
  %v56 = vld [vmem:[%s0 + $0x118] sm:$0xff]
  %v57 = vld [vmem:[%s0 + $0x120] sm:$0xff]
  %v58 = vld [vmem:[%s0 + $0x128] sm:$0xff]
  %v59 = vld [vmem:[%s0 + $0x130] sm:$0xff]
  %v60 = vld [vmem:[%s0 + $0x138] sm:$0xff]
  %v61 = vld [vmem:[%s0 + $0x140] sm:$0xff]
  %v62 = vld [vmem:[%s0 + $0x148] sm:$0xff]
  %v63 = vld [vmem:[%s0 + $0x150] sm:$0xff]
  %v64 = vld [vmem:[%s0 + $0x158] sm:$0xff]
  %v65 = vld [vmem:[%s0 + $0x160] sm:$0xff]
  %v66 = vld [vmem:[%s0 + $0x168] sm:$0xff]
  %v67 = vld [vmem:[%s0 + $0x170] sm:$0xff]
  %v68 = vld [vmem:[%s0 + $0x178] sm:$0xff]
  %v69 = vld [vmem:[%s0 + $0x180] sm:$0xff]
  %v70 = vld [vmem:[%s0 + $0x188] sm:$0xff]
  %v71 = vld [vmem:[%s0 + $0x190] sm:$0xff]
  %v72 = vld [vmem:[%s0 + $0x198] sm:$0xff]
  %v73 = vld [vmem:[%s0 + $0x1a0] sm:$0xff]
  %v74 = vld [vmem:[%s0 + $0x1a8] sm:$0xff]
  %v75 = vld [vmem:[%s0 + $0x1b0] sm:$0xff]
  %v76 = vld [vmem:[%s0 + $0x1b8] sm:$0xff]
  %v77 = vld [vmem:[%s0 + $0x1c0] sm:$0xff]
  %v78 = vld [vmem:[%s0 + $0x1c8] sm:$0xff]
  %v79 = vld [vmem:[%s0 + $0x1d0] sm:$0xff]
  %v80 = vld [vmem:[%s0 + $0x1d8] sm:$0xff]
  %v81 = vld [vmem:[%s0 + $0x1e0] sm:$0xff]
  %v82 = vld [vmem:[%s0 + $0x1e8] sm:$0xff]
  %v83 = vld [vmem:[%s0 + $0x1f0] sm:$0xff]
  %v84 = vld [vmem:[%s0 + $0x1f8] sm:$0xff]
  %v85 = vld [vmem:[%s1] sm:$0x1]
  %v87 = vlaneseq
  %v88 = vshrl.u32 %v87, 7
  %v89 = vsub.s32 0, %v88
  %v90 = vrot.slane %v85, %v89
  %v92 = vmul.f32 %v21, %v90
  %v93 = vmul.f32 %v22, %v90
  %v94 = vmul.f32 %v23, %v90
  %v95 = vmul.f32 %v24, %v90
  %v96 = vmul.f32 %v25, %v90
  %v97 = vmul.f32 %v26, %v90
  %v98 = vmul.f32 %v27, %v90
  %v99 = vmul.f32 %v28, %v90
  %v100 = vmul.f32 %v29, %v90
  %v101 = vmul.f32 %v30, %v90
  %v102 = vmul.f32 %v31, %v90
  %v103 = vmul.f32 %v32, %v90
  %v104 = vmul.f32 %v33, %v90
  %v105 = vmul.f32 %v34, %v90
  %v106 = vmul.f32 %v35, %v90
  %v107 = vmul.f32 %v36, %v90
  %v108 = vmul.f32 %v37, %v90
  %v109 = vmul.f32 %v38, %v90
  %v110 = vmul.f32 %v39, %v90
  %v111 = vmul.f32 %v40, %v90
  %v112 = vmul.f32 %v41, %v90
  %v113 = vmul.f32 %v42, %v90
  %v114 = vmul.f32 %v43, %v90
  %v115 = vmul.f32 %v44, %v90
  %v116 = vmul.f32 %v45, %v90
  %v117 = vmul.f32 %v46, %v90
  %v118 = vmul.f32 %v47, %v90
  %v119 = vmul.f32 %v48, %v90
  %v120 = vmul.f32 %v49, %v90
  %v121 = vmul.f32 %v50, %v90
  %v122 = vmul.f32 %v51, %v90
  %v123 = vmul.f32 %v52, %v90
  %v124 = vmul.f32 %v53, %v90
  %v125 = vmul.f32 %v54, %v90
  %v126 = vmul.f32 %v55, %v90
  %v127 = vmul.f32 %v56, %v90
  %v128 = vmul.f32 %v57, %v90
  %v129 = vmul.f32 %v58, %v90
  %v130 = vmul.f32 %v59, %v90
  %v131 = vmul.f32 %v60, %v90
  %v132 = vmul.f32 %v61, %v90
  %v133 = vmul.f32 %v62, %v90
  %v134 = vmul.f32 %v63, %v90
  %v135 = vmul.f32 %v64, %v90
  %v136 = vmul.f32 %v65, %v90
  %v137 = vmul.f32 %v66, %v90
  %v138 = vmul.f32 %v67, %v90
  %v139 = vmul.f32 %v68, %v90
  %v140 = vmul.f32 %v69, %v90
  %v141 = vmul.f32 %v70, %v90
  %v142 = vmul.f32 %v71, %v90
  %v143 = vmul.f32 %v72, %v90
  %v144 = vmul.f32 %v73, %v90
  %v145 = vmul.f32 %v74, %v90
  %v146 = vmul.f32 %v75, %v90
  %v147 = vmul.f32 %v76, %v90
  %v148 = vmul.f32 %v77, %v90
  %v149 = vmul.f32 %v78, %v90
  %v150 = vmul.f32 %v79, %v90
  %v151 = vmul.f32 %v80, %v90
  %v152 = vmul.f32 %v81, %v90
  %v153 = vmul.f32 %v82, %v90
  %v154 = vmul.f32 %v83, %v90
  %v155 = vmul.f32 %v84, %v90
  %v156 = vld [vmem:[%s2] sm:$0x1]
  %v158 = vlaneseq
  %v159 = vshrl.u32 %v158, 7
  %v160 = vsub.s32 0, %v159
  %v161 = vrot.slane %v156, %v160
  %v163 = vadd.f32 %v92, %v161
  %v164 = vadd.f32 %v93, %v161
  %v165 = vadd.f32 %v94, %v161
  %v166 = vadd.f32 %v95, %v161
  %v167 = vadd.f32 %v96, %v161
  %v168 = vadd.f32 %v97, %v161
  %v169 = vadd.f32 %v98, %v161
  %v170 = vadd.f32 %v99, %v161
  %v171 = vadd.f32 %v100, %v161
  %v172 = vadd.f32 %v101, %v161
  %v173 = vadd.f32 %v102, %v161
  %v174 = vadd.f32 %v103, %v161
  %v175 = vadd.f32 %v104, %v161
  %v176 = vadd.f32 %v105, %v161
  %v177 = vadd.f32 %v106, %v161
  %v178 = vadd.f32 %v107, %v161
  %v179 = vadd.f32 %v108, %v161
  %v180 = vadd.f32 %v109, %v161
  %v181 = vadd.f32 %v110, %v161
  %v182 = vadd.f32 %v111, %v161
  %v183 = vadd.f32 %v112, %v161
  %v184 = vadd.f32 %v113, %v161
  %v185 = vadd.f32 %v114, %v161
  %v186 = vadd.f32 %v115, %v161
  %v187 = vadd.f32 %v116, %v161
  %v188 = vadd.f32 %v117, %v161
  %v189 = vadd.f32 %v118, %v161
  %v190 = vadd.f32 %v119, %v161
  %v191 = vadd.f32 %v120, %v161
  %v192 = vadd.f32 %v121, %v161
  %v193 = vadd.f32 %v122, %v161
  %v194 = vadd.f32 %v123, %v161
  %v195 = vadd.f32 %v124, %v161
  %v196 = vadd.f32 %v125, %v161
  %v197 = vadd.f32 %v126, %v161
  %v198 = vadd.f32 %v127, %v161
  %v199 = vadd.f32 %v128, %v161
  %v200 = vadd.f32 %v129, %v161
  %v201 = vadd.f32 %v130, %v161
  %v202 = vadd.f32 %v131, %v161
  %v203 = vadd.f32 %v132, %v161
  %v204 = vadd.f32 %v133, %v161
  %v205 = vadd.f32 %v134, %v161
  %v206 = vadd.f32 %v135, %v161
  %v207 = vadd.f32 %v136, %v161
  %v208 = vadd.f32 %v137, %v161
  %v209 = vadd.f32 %v138, %v161
  %v210 = vadd.f32 %v139, %v161
  %v211 = vadd.f32 %v140, %v161
  %v212 = vadd.f32 %v141, %v161
  %v213 = vadd.f32 %v142, %v161
  %v214 = vadd.f32 %v143, %v161
  %v215 = vadd.f32 %v144, %v161
  %v216 = vadd.f32 %v145, %v161
  %v217 = vadd.f32 %v146, %v161
  %v218 = vadd.f32 %v147, %v161
  %v219 = vadd.f32 %v148, %v161
  %v220 = vadd.f32 %v149, %v161
  %v221 = vadd.f32 %v150, %v161
  %v222 = vadd.f32 %v151, %v161
  %v223 = vadd.f32 %v152, %v161
  %v224 = vadd.f32 %v153, %v161
  %v225 = vadd.f32 %v154, %v161
  %v226 = vadd.f32 %v155, %v161
  %v227 = vmax.f32 %v163, 0.0
  %v228 = vmax.f32 %v164, 0.0
  %v229 = vmax.f32 %v165, 0.0
  %v230 = vmax.f32 %v166, 0.0
  %v231 = vmax.f32 %v167, 0.0
  %v232 = vmax.f32 %v168, 0.0
  %v233 = vmax.f32 %v169, 0.0
  %v234 = vmax.f32 %v170, 0.0
  %v235 = vmax.f32 %v171, 0.0
  %v236 = vmax.f32 %v172, 0.0
  %v237 = vmax.f32 %v173, 0.0
  %v238 = vmax.f32 %v174, 0.0
  %v239 = vmax.f32 %v175, 0.0
  %v240 = vmax.f32 %v176, 0.0
  %v241 = vmax.f32 %v177, 0.0
  %v242 = vmax.f32 %v178, 0.0
  %v243 = vmax.f32 %v179, 0.0
  %v244 = vmax.f32 %v180, 0.0
  %v245 = vmax.f32 %v181, 0.0
  %v246 = vmax.f32 %v182, 0.0
  %v247 = vmax.f32 %v183, 0.0
  %v248 = vmax.f32 %v184, 0.0
  %v249 = vmax.f32 %v185, 0.0
  %v250 = vmax.f32 %v186, 0.0
  %v251 = vmax.f32 %v187, 0.0
  %v252 = vmax.f32 %v188, 0.0
  %v253 = vmax.f32 %v189, 0.0
  %v254 = vmax.f32 %v190, 0.0
  %v255 = vmax.f32 %v191, 0.0
  %v256 = vmax.f32 %v192, 0.0
  %v257 = vmax.f32 %v193, 0.0
  %v258 = vmax.f32 %v194, 0.0
  %v259 = vmax.f32 %v195, 0.0
  %v260 = vmax.f32 %v196, 0.0
  %v261 = vmax.f32 %v197, 0.0
  %v262 = vmax.f32 %v198, 0.0
  %v263 = vmax.f32 %v199, 0.0
  %v264 = vmax.f32 %v200, 0.0
  %v265 = vmax.f32 %v201, 0.0
  %v266 = vmax.f32 %v202, 0.0
  %v267 = vmax.f32 %v203, 0.0
  %v268 = vmax.f32 %v204, 0.0
  %v269 = vmax.f32 %v205, 0.0
  %v270 = vmax.f32 %v206, 0.0
  %v271 = vmax.f32 %v207, 0.0
  %v272 = vmax.f32 %v208, 0.0
  %v273 = vmax.f32 %v209, 0.0
  %v274 = vmax.f32 %v210, 0.0
  %v275 = vmax.f32 %v211, 0.0
  %v276 = vmax.f32 %v212, 0.0
  %v277 = vmax.f32 %v213, 0.0
  %v278 = vmax.f32 %v214, 0.0
  %v279 = vmax.f32 %v215, 0.0
  %v280 = vmax.f32 %v216, 0.0
  %v281 = vmax.f32 %v217, 0.0
  %v282 = vmax.f32 %v218, 0.0
  %v283 = vmax.f32 %v219, 0.0
  %v284 = vmax.f32 %v220, 0.0
  %v285 = vmax.f32 %v221, 0.0
  %v286 = vmax.f32 %v222, 0.0
  %v287 = vmax.f32 %v223, 0.0
  %v288 = vmax.f32 %v224, 0.0
  %v289 = vmax.f32 %v225, 0.0
  %v290 = vmax.f32 %v226, 0.0
  %v291 = vpack.c.bf16 %v228, %v227
  %v292 = vpack.c.bf16 %v230, %v229
  %v293 = vpack.c.bf16 %v232, %v231
  %v294 = vpack.c.bf16 %v234, %v233
  %v295 = vpack.c.bf16 %v236, %v235
  %v296 = vpack.c.bf16 %v238, %v237
  %v297 = vpack.c.bf16 %v240, %v239
  %v298 = vpack.c.bf16 %v242, %v241
  %v299 = vpack.c.bf16 %v244, %v243
  %v300 = vpack.c.bf16 %v246, %v245
  %v301 = vpack.c.bf16 %v248, %v247
  %v302 = vpack.c.bf16 %v250, %v249
  %v303 = vpack.c.bf16 %v252, %v251
  %v304 = vpack.c.bf16 %v254, %v253
  %v305 = vpack.c.bf16 %v256, %v255
  %v306 = vpack.c.bf16 %v258, %v257
  %v307 = vpack.c.bf16 %v260, %v259
  %v308 = vpack.c.bf16 %v262, %v261
  %v309 = vpack.c.bf16 %v264, %v263
  %v310 = vpack.c.bf16 %v266, %v265
  %v311 = vpack.c.bf16 %v268, %v267
  %v312 = vpack.c.bf16 %v270, %v269
  %v313 = vpack.c.bf16 %v272, %v271
  %v314 = vpack.c.bf16 %v274, %v273
  %v315 = vpack.c.bf16 %v276, %v275
  %v316 = vpack.c.bf16 %v278, %v277
  %v317 = vpack.c.bf16 %v280, %v279
  %v318 = vpack.c.bf16 %v282, %v281
  %v319 = vpack.c.bf16 %v284, %v283
  %v320 = vpack.c.bf16 %v286, %v285
  %v321 = vpack.c.bf16 %v288, %v287
  %v322 = vpack.c.bf16 %v290, %v289
  %v323 = vld [vmem:[%s3] sm:$0xf]
  %v324 = vld [vmem:[%s3 + $0x4] sm:$0xf]
  %v325 = vld [vmem:[%s3 + $0x8] sm:$0xf]
  %v326 = vld [vmem:[%s3 + $0xc] sm:$0xf]
  %v331 = vunpack.c.l.b16 %v323
  %v332 = vunpack.c.l.b16 %v324
  %v333 = vunpack.c.l.b16 %v325
  %v334 = vunpack.c.l.b16 %v326
  %v335 = vpack.c.b16 %v332, %v331
  %v336 = vpack.c.b16 %v334, %v333
  %vm339 = vcmask 261120
  %v341 = vsel %vm339, %v291, 0
  %v344 = vsel %vm339, %v292, 0
  %v347 = vsel %vm339, %v293, 0
  %v350 = vsel %vm339, %v294, 0
  %v353 = vsel %vm339, %v295, 0
  %v356 = vsel %vm339, %v296, 0
  %v359 = vsel %vm339, %v297, 0
  %v362 = vsel %vm339, %v298, 0
  %v365 = vsel %vm339, %v299, 0
  %v368 = vsel %vm339, %v300, 0
  %v371 = vsel %vm339, %v301, 0
  %v374 = vsel %vm339, %v302, 0
  %v377 = vsel %vm339, %v303, 0
  %v380 = vsel %vm339, %v304, 0
  %v383 = vsel %vm339, %v305, 0
  %v386 = vsel %vm339, %v306, 0
  %v389 = vsel %vm339, %v307, 0
  %v392 = vsel %vm339, %v308, 0
  %v395 = vsel %vm339, %v309, 0
  %v398 = vsel %vm339, %v310, 0
  %v401 = vsel %vm339, %v311, 0
  %v404 = vsel %vm339, %v312, 0
  %v407 = vsel %vm339, %v313, 0
  %v410 = vsel %vm339, %v314, 0
  %v413 = vsel %vm339, %v315, 0
  %v416 = vsel %vm339, %v316, 0
  %v419 = vsel %vm339, %v317, 0
  %v422 = vsel %vm339, %v318, 0
  %v425 = vsel %vm339, %v319, 0
  %v428 = vsel %vm339, %v320, 0
  %v431 = vsel %vm339, %v321, 0
  %v434 = vsel %vm339, %v322, 0
  %436 = vmatprep.subr.bf16.mxu0 0
  %437 = vmatpush1.bf16.msra.mxu0 %v335
  %438 = vmatprep.subr.bf16.mxu0 0
  %439 = vmatpush1.bf16.msra.mxu0 %v336
  %440 = vmatprep.subr.bf16.mxu0 0
  %441 = vmatpush1.bf16.msra.mxu0 0
  %442 = vmatprep.subr.bf16.mxu0 0
  %443 = vmatpush1.bf16.msra.mxu0 0
  %444 = vmatprep.subr.bf16.mxu0 0
  %445 = vmatpush1.bf16.msra.mxu0 0
  %446 = vmatprep.subr.bf16.mxu0 0
  %447 = vmatpush1.bf16.msra.mxu0 0
  %448 = vmatprep.subr.bf16.mxu0 0
  %449 = vmatpush1.bf16.msra.mxu0 0
  %450 = vmatprep.subr.bf16.mxu0 0
  %451 = vmatpush1.bf16.msra.mxu0 0
  %452 = vmatprep.subr.bf16.mxu0 0
  %453 = vmatpush1.bf16.msra.mxu0 0
  %454 = vmatprep.subr.bf16.mxu0 0
  %455 = vmatpush1.bf16.msra.mxu0 0
  %456 = vmatprep.subr.bf16.mxu0 0
  %457 = vmatpush1.bf16.msra.mxu0 0
  %458 = vmatprep.subr.bf16.mxu0 0
  %459 = vmatpush1.bf16.msra.mxu0 0
  %460 = vmatprep.subr.bf16.mxu0 0
  %461 = vmatpush1.bf16.msra.mxu0 0
  %462 = vmatprep.subr.bf16.mxu0 0
  %463 = vmatpush1.bf16.msra.mxu0 0
  %464 = vmatprep.subr.bf16.mxu0 0
  %465 = vmatpush1.bf16.msra.mxu0 0
  %466 = vmatprep.subr.bf16.mxu0 0
  %467 = vmatpush1.bf16.msra.mxu0 0
  %468 = vmatprep.mubr.bf16.mxu0 0
  %469 = vmatmul.mubr.bf16.gmra.mrb[0].mxu0 %v341
  %v470 = vpop.f32.mrb[0].mxu0
  %v471 = vadd.f32 0.0, %v470
  %v472 = vpop.f32.mrb[0].mxu0
  %v473 = vpop.f32.mrb[0].mxu0
  %v474 = vadd.f32 0.0, %v473
  %v475 = vpop.f32.mrb[0].mxu0
  %476 = vmatprep.mubr.bf16.mxu0 0
  %477 = vmatmul.mubr.bf16.gmra.mrb[0].mxu0 %v344
  %v478 = vpop.f32.mrb[0].mxu0
  %v479 = vadd.f32 0.0, %v478
  %v480 = vpop.f32.mrb[0].mxu0
  %v481 = vpop.f32.mrb[0].mxu0
  %v482 = vadd.f32 0.0, %v481
  %v483 = vpop.f32.mrb[0].mxu0
  %484 = vmatprep.mubr.bf16.mxu0 0
  %485 = vmatmul.mubr.bf16.gmra.mrb[0].mxu0 %v347
  %v486 = vpop.f32.mrb[0].mxu0
  %v487 = vadd.f32 0.0, %v486
  %v488 = vpop.f32.mrb[0].mxu0
  %v489 = vpop.f32.mrb[0].mxu0
  %v490 = vadd.f32 0.0, %v489
  %v491 = vpop.f32.mrb[0].mxu0
  %492 = vmatprep.mubr.bf16.mxu0 0
  %493 = vmatmul.mubr.bf16.gmra.mrb[0].mxu0 %v350
  %v494 = vpop.f32.mrb[0].mxu0
  %v495 = vadd.f32 0.0, %v494
  %v496 = vpop.f32.mrb[0].mxu0
  %v497 = vpop.f32.mrb[0].mxu0
  %v498 = vadd.f32 0.0, %v497
  %v499 = vpop.f32.mrb[0].mxu0
  %500 = vmatprep.mubr.bf16.mxu0 0
  %501 = vmatmul.mubr.bf16.gmra.mrb[0].mxu0 %v353
  %v502 = vpop.f32.mrb[0].mxu0
  %v503 = vadd.f32 0.0, %v502
  %v504 = vpop.f32.mrb[0].mxu0
  %v505 = vpop.f32.mrb[0].mxu0
  %v506 = vadd.f32 0.0, %v505
  %v507 = vpop.f32.mrb[0].mxu0
  %508 = vmatprep.mubr.bf16.mxu0 0
  %509 = vmatmul.mubr.bf16.gmra.mrb[0].mxu0 %v356
  %v510 = vpop.f32.mrb[0].mxu0
  %v511 = vadd.f32 0.0, %v510
  %v512 = vpop.f32.mrb[0].mxu0
  %v513 = vpop.f32.mrb[0].mxu0
  %v514 = vadd.f32 0.0, %v513
  %v515 = vpop.f32.mrb[0].mxu0
  %516 = vmatprep.mubr.bf16.mxu0 0
  %517 = vmatmul.mubr.bf16.gmra.mrb[0].mxu0 %v359
  %v518 = vpop.f32.mrb[0].mxu0
  %v519 = vadd.f32 0.0, %v518
  %v520 = vpop.f32.mrb[0].mxu0
  %v521 = vpop.f32.mrb[0].mxu0
  %v522 = vadd.f32 0.0, %v521
  %v523 = vpop.f32.mrb[0].mxu0
  %524 = vmatprep.mubr.bf16.mxu0 0
  %525 = vmatmul.mubr.bf16.gmra.mrb[0].mxu0 %v362
  %v526 = vpop.f32.mrb[0].mxu0
  %v527 = vadd.f32 0.0, %v526
  %v528 = vpop.f32.mrb[0].mxu0
  %v529 = vpop.f32.mrb[0].mxu0
  %v530 = vadd.f32 0.0, %v529
  %v531 = vpop.f32.mrb[0].mxu0
  %532 = vmatprep.mubr.bf16.mxu0 0
  %533 = vmatmul.mubr.bf16.gmra.mrb[0].mxu0 %v365
  %v534 = vpop.f32.mrb[0].mxu0
  %v535 = vadd.f32 0.0, %v534
  %v536 = vpop.f32.mrb[0].mxu0
  %v537 = vpop.f32.mrb[0].mxu0
  %v538 = vadd.f32 0.0, %v537
  %v539 = vpop.f32.mrb[0].mxu0
  %540 = vmatprep.mubr.bf16.mxu0 0
  %541 = vmatmul.mubr.bf16.gmra.mrb[0].mxu0 %v368
  %v542 = vpop.f32.mrb[0].mxu0
  %v543 = vadd.f32 0.0, %v542
  %v544 = vpop.f32.mrb[0].mxu0
  %v545 = vpop.f32.mrb[0].mxu0
  %v546 = vadd.f32 0.0, %v545
  %v547 = vpop.f32.mrb[0].mxu0
  %548 = vmatprep.mubr.bf16.mxu0 0
  %549 = vmatmul.mubr.bf16.gmra.mrb[0].mxu0 %v371
  %v550 = vpop.f32.mrb[0].mxu0
  %v551 = vadd.f32 0.0, %v550
  %v552 = vpop.f32.mrb[0].mxu0
  %v553 = vpop.f32.mrb[0].mxu0
  %v554 = vadd.f32 0.0, %v553
  %v555 = vpop.f32.mrb[0].mxu0
  %556 = vmatprep.mubr.bf16.mxu0 0
  %557 = vmatmul.mubr.bf16.gmra.mrb[0].mxu0 %v374
  %v558 = vpop.f32.mrb[0].mxu0
  %v559 = vadd.f32 0.0, %v558
  %v560 = vpop.f32.mrb[0].mxu0
  %v561 = vpop.f32.mrb[0].mxu0
  %v562 = vadd.f32 0.0, %v561
  %v563 = vpop.f32.mrb[0].mxu0
  %564 = vmatprep.mubr.bf16.mxu0 0
  %565 = vmatmul.mubr.bf16.gmra.mrb[0].mxu0 %v377
  %v566 = vpop.f32.mrb[0].mxu0
  %v567 = vadd.f32 0.0, %v566
  %v568 = vpop.f32.mrb[0].mxu0
  %v569 = vpop.f32.mrb[0].mxu0
  %v570 = vadd.f32 0.0, %v569
  %v571 = vpop.f32.mrb[0].mxu0
  %572 = vmatprep.mubr.bf16.mxu0 0
  %573 = vmatmul.mubr.bf16.gmra.mrb[0].mxu0 %v380
  %v574 = vpop.f32.mrb[0].mxu0
  %v575 = vadd.f32 0.0, %v574
  %v576 = vpop.f32.mrb[0].mxu0
  %v577 = vpop.f32.mrb[0].mxu0
  %v578 = vadd.f32 0.0, %v577
  %v579 = vpop.f32.mrb[0].mxu0
  %580 = vmatprep.mubr.bf16.mxu0 0
  %581 = vmatmul.mubr.bf16.gmra.mrb[0].mxu0 %v383
  %v582 = vpop.f32.mrb[0].mxu0
  %v583 = vadd.f32 0.0, %v582
  %v584 = vpop.f32.mrb[0].mxu0
  %v585 = vpop.f32.mrb[0].mxu0
  %v586 = vadd.f32 0.0, %v585
  %v587 = vpop.f32.mrb[0].mxu0
  %588 = vmatprep.mubr.bf16.mxu0 0
  %589 = vmatmul.mubr.bf16.gmra.mrb[0].mxu0 %v386
  %v590 = vpop.f32.mrb[0].mxu0
  %v591 = vadd.f32 0.0, %v590
  %v592 = vpop.f32.mrb[0].mxu0
  %v593 = vpop.f32.mrb[0].mxu0
  %v594 = vadd.f32 0.0, %v593
  %v595 = vpop.f32.mrb[0].mxu0
  %596 = vmatprep.mubr.bf16.mxu0 0
  %597 = vmatmul.mubr.bf16.gmra.mrb[0].mxu0 %v389
  %v598 = vpop.f32.mrb[0].mxu0
  %v599 = vadd.f32 0.0, %v598
  %v600 = vpop.f32.mrb[0].mxu0
  %v601 = vpop.f32.mrb[0].mxu0
  %v602 = vadd.f32 0.0, %v601
  %v603 = vpop.f32.mrb[0].mxu0
  %604 = vmatprep.mubr.bf16.mxu0 0
  %605 = vmatmul.mubr.bf16.gmra.mrb[0].mxu0 %v392
  %v606 = vpop.f32.mrb[0].mxu0
  %v607 = vadd.f32 0.0, %v606
  %v608 = vpop.f32.mrb[0].mxu0
  %v609 = vpop.f32.mrb[0].mxu0
  %v610 = vadd.f32 0.0, %v609
  %v611 = vpop.f32.mrb[0].mxu0
  %612 = vmatprep.mubr.bf16.mxu0 0
  %613 = vmatmul.mubr.bf16.gmra.mrb[0].mxu0 %v395
  %v614 = vpop.f32.mrb[0].mxu0
  %v615 = vadd.f32 0.0, %v614
  %v616 = vpop.f32.mrb[0].mxu0
  %v617 = vpop.f32.mrb[0].mxu0
  %v618 = vadd.f32 0.0, %v617
  %v619 = vpop.f32.mrb[0].mxu0
  %620 = vmatprep.mubr.bf16.mxu0 0
  %621 = vmatmul.mubr.bf16.gmra.mrb[0].mxu0 %v398
  %v622 = vpop.f32.mrb[0].mxu0
  %v623 = vadd.f32 0.0, %v622
  %v624 = vpop.f32.mrb[0].mxu0
  %v625 = vpop.f32.mrb[0].mxu0
  %v626 = vadd.f32 0.0, %v625
  %v627 = vpop.f32.mrb[0].mxu0
  %628 = vmatprep.mubr.bf16.mxu0 0
  %629 = vmatmul.mubr.bf16.gmra.mrb[0].mxu0 %v401
  %v630 = vpop.f32.mrb[0].mxu0
  %v631 = vadd.f32 0.0, %v630
  %v632 = vpop.f32.mrb[0].mxu0
  %v633 = vpop.f32.mrb[0].mxu0
  %v634 = vadd.f32 0.0, %v633
  %v635 = vpop.f32.mrb[0].mxu0
  %636 = vmatprep.mubr.bf16.mxu0 0
  %637 = vmatmul.mubr.bf16.gmra.mrb[0].mxu0 %v404
  %v638 = vpop.f32.mrb[0].mxu0
  %v639 = vadd.f32 0.0, %v638
  %v640 = vpop.f32.mrb[0].mxu0
  %v641 = vpop.f32.mrb[0].mxu0
  %v642 = vadd.f32 0.0, %v641
  %v643 = vpop.f32.mrb[0].mxu0
  %644 = vmatprep.mubr.bf16.mxu0 0
  %645 = vmatmul.mubr.bf16.gmra.mrb[0].mxu0 %v407
  %v646 = vpop.f32.mrb[0].mxu0
  %v647 = vadd.f32 0.0, %v646
  %v648 = vpop.f32.mrb[0].mxu0
  %v649 = vpop.f32.mrb[0].mxu0
  %v650 = vadd.f32 0.0, %v649
  %v651 = vpop.f32.mrb[0].mxu0
  %652 = vmatprep.mubr.bf16.mxu0 0
  %653 = vmatmul.mubr.bf16.gmra.mrb[0].mxu0 %v410
  %v654 = vpop.f32.mrb[0].mxu0
  %v655 = vadd.f32 0.0, %v654
  %v656 = vpop.f32.mrb[0].mxu0
  %v657 = vpop.f32.mrb[0].mxu0
  %v658 = vadd.f32 0.0, %v657
  %v659 = vpop.f32.mrb[0].mxu0
  %660 = vmatprep.mubr.bf16.mxu0 0
  %661 = vmatmul.mubr.bf16.gmra.mrb[0].mxu0 %v413
  %v662 = vpop.f32.mrb[0].mxu0
  %v663 = vadd.f32 0.0, %v662
  %v664 = vpop.f32.mrb[0].mxu0
  %v665 = vpop.f32.mrb[0].mxu0
  %v666 = vadd.f32 0.0, %v665
  %v667 = vpop.f32.mrb[0].mxu0
  %668 = vmatprep.mubr.bf16.mxu0 0
  %669 = vmatmul.mubr.bf16.gmra.mrb[0].mxu0 %v416
  %v670 = vpop.f32.mrb[0].mxu0
  %v671 = vadd.f32 0.0, %v670
  %v672 = vpop.f32.mrb[0].mxu0
  %v673 = vpop.f32.mrb[0].mxu0
  %v674 = vadd.f32 0.0, %v673
  %v675 = vpop.f32.mrb[0].mxu0
  %676 = vmatprep.mubr.bf16.mxu0 0
  %677 = vmatmul.mubr.bf16.gmra.mrb[0].mxu0 %v419
  %v678 = vpop.f32.mrb[0].mxu0
  %v679 = vadd.f32 0.0, %v678
  %v680 = vpop.f32.mrb[0].mxu0
  %v681 = vpop.f32.mrb[0].mxu0
  %v682 = vadd.f32 0.0, %v681
  %v683 = vpop.f32.mrb[0].mxu0
  %684 = vmatprep.mubr.bf16.mxu0 0
  %685 = vmatmul.mubr.bf16.gmra.mrb[0].mxu0 %v422
  %v686 = vpop.f32.mrb[0].mxu0
  %v687 = vadd.f32 0.0, %v686
  %v688 = vpop.f32.mrb[0].mxu0
  %v689 = vpop.f32.mrb[0].mxu0
  %v690 = vadd.f32 0.0, %v689
  %v691 = vpop.f32.mrb[0].mxu0
  %692 = vmatprep.mubr.bf16.mxu0 0
  %693 = vmatmul.mubr.bf16.gmra.mrb[0].mxu0 %v425
  %v694 = vpop.f32.mrb[0].mxu0
  %v695 = vadd.f32 0.0, %v694
  %v696 = vpop.f32.mrb[0].mxu0
  %v697 = vpop.f32.mrb[0].mxu0
  %v698 = vadd.f32 0.0, %v697
  %v699 = vpop.f32.mrb[0].mxu0
  %700 = vmatprep.mubr.bf16.mxu0 0
  %701 = vmatmul.mubr.bf16.gmra.mrb[0].mxu0 %v428
  %v702 = vpop.f32.mrb[0].mxu0
  %v703 = vadd.f32 0.0, %v702
  %v704 = vpop.f32.mrb[0].mxu0
  %v705 = vpop.f32.mrb[0].mxu0
  %v706 = vadd.f32 0.0, %v705
  %v707 = vpop.f32.mrb[0].mxu0
  %708 = vmatprep.mubr.bf16.mxu0 0
  %709 = vmatmul.mubr.bf16.gmra.mrb[0].mxu0 %v431
  %v710 = vpop.f32.mrb[0].mxu0
  %v711 = vadd.f32 0.0, %v710
  %v712 = vpop.f32.mrb[0].mxu0
  %v713 = vpop.f32.mrb[0].mxu0
  %v714 = vadd.f32 0.0, %v713
  %v715 = vpop.f32.mrb[0].mxu0
  %716 = vmatprep.mubr.bf16.mxu0 0
  %717 = vmatmul.mubr.bf16.gmra.mrb[0].mxu0 %v434
  %v718 = vpop.f32.mrb[0].mxu0
  %v719 = vadd.f32 0.0, %v718
  %v720 = vpop.f32.mrb[0].mxu0
  %v721 = vpop.f32.mrb[0].mxu0
  %v722 = vadd.f32 0.0, %v721
  %v723 = vpop.f32.mrb[0].mxu0
  %724 = vdwg.mxu0
  %725 = vst [vmem:[%s4] sm:$0xff] %v471
  %726 = vst [vmem:[%s4 + $0x8] sm:$0xff] %v474
  %727 = vst [vmem:[%s4 + $0x10] sm:$0xff] %v479
  %728 = vst [vmem:[%s4 + $0x18] sm:$0xff] %v482
  %729 = vst [vmem:[%s4 + $0x20] sm:$0xff] %v487
  %730 = vst [vmem:[%s4 + $0x28] sm:$0xff] %v490
  %731 = vst [vmem:[%s4 + $0x30] sm:$0xff] %v495
  %732 = vst [vmem:[%s4 + $0x38] sm:$0xff] %v498
  %733 = vst [vmem:[%s4 + $0x40] sm:$0xff] %v503
  %734 = vst [vmem:[%s4 + $0x48] sm:$0xff] %v506
  %735 = vst [vmem:[%s4 + $0x50] sm:$0xff] %v511
  %736 = vst [vmem:[%s4 + $0x58] sm:$0xff] %v514
  %737 = vst [vmem:[%s4 + $0x60] sm:$0xff] %v519
  %738 = vst [vmem:[%s4 + $0x68] sm:$0xff] %v522
  %739 = vst [vmem:[%s4 + $0x70] sm:$0xff] %v527
  %740 = vst [vmem:[%s4 + $0x78] sm:$0xff] %v530
  %741 = vst [vmem:[%s4 + $0x80] sm:$0xff] %v535
  %742 = vst [vmem:[%s4 + $0x88] sm:$0xff] %v538
  %743 = vst [vmem:[%s4 + $0x90] sm:$0xff] %v543
  %744 = vst [vmem:[%s4 + $0x98] sm:$0xff] %v546
  %745 = vst [vmem:[%s4 + $0xa0] sm:$0xff] %v551
  %746 = vst [vmem:[%s4 + $0xa8] sm:$0xff] %v554
  %747 = vst [vmem:[%s4 + $0xb0] sm:$0xff] %v559
  %748 = vst [vmem:[%s4 + $0xb8] sm:$0xff] %v562
  %749 = vst [vmem:[%s4 + $0xc0] sm:$0xff] %v567
  %750 = vst [vmem:[%s4 + $0xc8] sm:$0xff] %v570
  %751 = vst [vmem:[%s4 + $0xd0] sm:$0xff] %v575
  %752 = vst [vmem:[%s4 + $0xd8] sm:$0xff] %v578
  %753 = vst [vmem:[%s4 + $0xe0] sm:$0xff] %v583
  %754 = vst [vmem:[%s4 + $0xe8] sm:$0xff] %v586
  %755 = vst [vmem:[%s4 + $0xf0] sm:$0xff] %v591
  %756 = vst [vmem:[%s4 + $0xf8] sm:$0xff] %v594
  %757 = vst [vmem:[%s4 + $0x100] sm:$0xff] %v599
  %758 = vst [vmem:[%s4 + $0x108] sm:$0xff] %v602
  %759 = vst [vmem:[%s4 + $0x110] sm:$0xff] %v607
  %760 = vst [vmem:[%s4 + $0x118] sm:$0xff] %v610
  %761 = vst [vmem:[%s4 + $0x120] sm:$0xff] %v615
  %762 = vst [vmem:[%s4 + $0x128] sm:$0xff] %v618
  %763 = vst [vmem:[%s4 + $0x130] sm:$0xff] %v623
  %764 = vst [vmem:[%s4 + $0x138] sm:$0xff] %v626
  %765 = vst [vmem:[%s4 + $0x140] sm:$0xff] %v631
  %766 = vst [vmem:[%s4 + $0x148] sm:$0xff] %v634
  %767 = vst [vmem:[%s4 + $0x150] sm:$0xff] %v639
  %768 = vst [vmem:[%s4 + $0x158] sm:$0xff] %v642
  %769 = vst [vmem:[%s4 + $0x160] sm:$0xff] %v647
  %770 = vst [vmem:[%s4 + $0x168] sm:$0xff] %v650
  %771 = vst [vmem:[%s4 + $0x170] sm:$0xff] %v655
  %772 = vst [vmem:[%s4 + $0x178] sm:$0xff] %v658
  %773 = vst [vmem:[%s4 + $0x180] sm:$0xff] %v663
  %774 = vst [vmem:[%s4 + $0x188] sm:$0xff] %v666
  %775 = vst [vmem:[%s4 + $0x190] sm:$0xff] %v671
  %776 = vst [vmem:[%s4 + $0x198] sm:$0xff] %v674
  %777 = vst [vmem:[%s4 + $0x1a0] sm:$0xff] %v679
  %778 = vst [vmem:[%s4 + $0x1a8] sm:$0xff] %v682
  %779 = vst [vmem:[%s4 + $0x1b0] sm:$0xff] %v687
  %780 = vst [vmem:[%s4 + $0x1b8] sm:$0xff] %v690
  %781 = vst [vmem:[%s4 + $0x1c0] sm:$0xff] %v695
  %782 = vst [vmem:[%s4 + $0x1c8] sm:$0xff] %v698
  %783 = vst [vmem:[%s4 + $0x1d0] sm:$0xff] %v703
  %784 = vst [vmem:[%s4 + $0x1d8] sm:$0xff] %v706
  %785 = vst [vmem:[%s4 + $0x1e0] sm:$0xff] %v711
  %786 = vst [vmem:[%s4 + $0x1e8] sm:$0xff] %v714
  %787 = vst [vmem:[%s4 + $0x1f0] sm:$0xff] %v719
  %788 = vst [vmem:[%s4 + $0x1f8] sm:$0xff] %v722
  %v789 = vadd.f32 %v471, %v474
  %v790 = vadd.f32 %v789, %v479
  %v791 = vadd.f32 %v790, %v482
  %v792 = vadd.f32 %v791, %v487
  %v793 = vadd.f32 %v792, %v490
  %v794 = vadd.f32 %v793, %v495
  %v795 = vadd.f32 %v794, %v498
  %v796 = vadd.f32 %v795, %v503
  %v797 = vadd.f32 %v796, %v506
  %v798 = vadd.f32 %v797, %v511
  %v799 = vadd.f32 %v798, %v514
  %v800 = vadd.f32 %v799, %v519
  %v801 = vadd.f32 %v800, %v522
  %v802 = vadd.f32 %v801, %v527
  %v803 = vadd.f32 %v802, %v530
  %v804 = vadd.f32 %v803, %v535
  %v805 = vadd.f32 %v804, %v538
  %v806 = vadd.f32 %v805, %v543
  %v807 = vadd.f32 %v806, %v546
  %v808 = vadd.f32 %v807, %v551
  %v809 = vadd.f32 %v808, %v554
  %v810 = vadd.f32 %v809, %v559
  %v811 = vadd.f32 %v810, %v562
  %v812 = vadd.f32 %v811, %v567
  %v813 = vadd.f32 %v812, %v570
  %v814 = vadd.f32 %v813, %v575
  %v815 = vadd.f32 %v814, %v578
  %v816 = vadd.f32 %v815, %v583
  %v817 = vadd.f32 %v816, %v586
  %v818 = vadd.f32 %v817, %v591
  %v819 = vadd.f32 %v818, %v594
  %v820 = vadd.f32 %v819, %v599
  %v821 = vadd.f32 %v820, %v602
  %v822 = vadd.f32 %v821, %v607
  %v823 = vadd.f32 %v822, %v610
  %v824 = vadd.f32 %v823, %v615
  %v825 = vadd.f32 %v824, %v618
  %v826 = vadd.f32 %v825, %v623
  %v827 = vadd.f32 %v826, %v626
  %v828 = vadd.f32 %v827, %v631
  %v829 = vadd.f32 %v828, %v634
  %v830 = vadd.f32 %v829, %v639
  %v831 = vadd.f32 %v830, %v642
  %v832 = vadd.f32 %v831, %v647
  %v833 = vadd.f32 %v832, %v650
  %v834 = vadd.f32 %v833, %v655
  %v835 = vadd.f32 %v834, %v658
  %v836 = vadd.f32 %v835, %v663
  %v837 = vadd.f32 %v836, %v666
  %v838 = vadd.f32 %v837, %v671
  %v839 = vadd.f32 %v838, %v674
  %v840 = vadd.f32 %v839, %v679
  %v841 = vadd.f32 %v840, %v682
  %v842 = vadd.f32 %v841, %v687
  %v843 = vadd.f32 %v842, %v690
  %v844 = vadd.f32 %v843, %v695
  %v845 = vadd.f32 %v844, %v698
  %v846 = vadd.f32 %v845, %v703
  %v847 = vadd.f32 %v846, %v706
  %v848 = vadd.f32 %v847, %v711
  %v849 = vadd.f32 %v848, %v714
  %v850 = vadd.f32 %v849, %v719
  %v851 = vadd.f32 %v850, %v722
  %v852 = vrot.slane %v851, 4
  %v853 = vadd.f32 %v851, %v852
  %v854 = vrot.slane %v853, 2
  %v855 = vadd.f32 %v853, %v854
  %v856 = vrot.slane %v855, 1
  %v857 = vadd.f32 %v855, %v856
  %858 = vst [vmem:[%s5] sm:$0x1] %v857
  %v859 = vmul.f32 %v471, %v471
  %v860 = vmul.f32 %v474, %v474
  %v861 = vmul.f32 %v479, %v479
  %v862 = vmul.f32 %v482, %v482
  %v863 = vmul.f32 %v487, %v487
  %v864 = vmul.f32 %v490, %v490
  %v865 = vmul.f32 %v495, %v495
  %v866 = vmul.f32 %v498, %v498
  %v867 = vmul.f32 %v503, %v503
  %v868 = vmul.f32 %v506, %v506
  %v869 = vmul.f32 %v511, %v511
  %v870 = vmul.f32 %v514, %v514
  %v871 = vmul.f32 %v519, %v519
  %v872 = vmul.f32 %v522, %v522
  %v873 = vmul.f32 %v527, %v527
  %v874 = vmul.f32 %v530, %v530
  %v875 = vmul.f32 %v535, %v535
  %v876 = vmul.f32 %v538, %v538
  %v877 = vmul.f32 %v543, %v543
  %v878 = vmul.f32 %v546, %v546
  %v879 = vmul.f32 %v551, %v551
  %v880 = vmul.f32 %v554, %v554
  %v881 = vmul.f32 %v559, %v559
  %v882 = vmul.f32 %v562, %v562
  %v883 = vmul.f32 %v567, %v567
  %v884 = vmul.f32 %v570, %v570
  %v885 = vmul.f32 %v575, %v575
  %v886 = vmul.f32 %v578, %v578
  %v887 = vmul.f32 %v583, %v583
  %v888 = vmul.f32 %v586, %v586
  %v889 = vmul.f32 %v591, %v591
  %v890 = vmul.f32 %v594, %v594
  %v891 = vmul.f32 %v599, %v599
  %v892 = vmul.f32 %v602, %v602
  %v893 = vmul.f32 %v607, %v607
  %v894 = vmul.f32 %v610, %v610
  %v895 = vmul.f32 %v615, %v615
  %v896 = vmul.f32 %v618, %v618
  %v897 = vmul.f32 %v623, %v623
  %v898 = vmul.f32 %v626, %v626
  %v899 = vmul.f32 %v631, %v631
  %v900 = vmul.f32 %v634, %v634
  %v901 = vmul.f32 %v639, %v639
  %v902 = vmul.f32 %v642, %v642
  %v903 = vmul.f32 %v647, %v647
  %v904 = vmul.f32 %v650, %v650
  %v905 = vmul.f32 %v655, %v655
  %v906 = vmul.f32 %v658, %v658
  %v907 = vmul.f32 %v663, %v663
  %v908 = vmul.f32 %v666, %v666
  %v909 = vmul.f32 %v671, %v671
  %v910 = vmul.f32 %v674, %v674
  %v911 = vmul.f32 %v679, %v679
  %v912 = vmul.f32 %v682, %v682
  %v913 = vmul.f32 %v687, %v687
  %v914 = vmul.f32 %v690, %v690
  %v915 = vmul.f32 %v695, %v695
  %v916 = vmul.f32 %v698, %v698
  %v917 = vmul.f32 %v703, %v703
  %v918 = vmul.f32 %v706, %v706
  %v919 = vmul.f32 %v711, %v711
  %v920 = vmul.f32 %v714, %v714
  %v921 = vmul.f32 %v719, %v719
  %v922 = vmul.f32 %v722, %v722
  %v923 = vadd.f32 %v859, %v860
  %v924 = vadd.f32 %v923, %v861
  %v925 = vadd.f32 %v924, %v862
  %v926 = vadd.f32 %v925, %v863
  %v927 = vadd.f32 %v926, %v864
  %v928 = vadd.f32 %v927, %v865
  %v929 = vadd.f32 %v928, %v866
  %v930 = vadd.f32 %v929, %v867
  %v931 = vadd.f32 %v930, %v868
  %v932 = vadd.f32 %v931, %v869
  %v933 = vadd.f32 %v932, %v870
  %v934 = vadd.f32 %v933, %v871
  %v935 = vadd.f32 %v934, %v872
  %v936 = vadd.f32 %v935, %v873
  %v937 = vadd.f32 %v936, %v874
  %v938 = vadd.f32 %v937, %v875
  %v939 = vadd.f32 %v938, %v876
  %v940 = vadd.f32 %v939, %v877
  %v941 = vadd.f32 %v940, %v878
  %v942 = vadd.f32 %v941, %v879
  %v943 = vadd.f32 %v942, %v880
  %v944 = vadd.f32 %v943, %v881
  %v945 = vadd.f32 %v944, %v882
  %v946 = vadd.f32 %v945, %v883
  %v947 = vadd.f32 %v946, %v884
  %v948 = vadd.f32 %v947, %v885
  %v949 = vadd.f32 %v948, %v886
  %v950 = vadd.f32 %v949, %v887
  %v951 = vadd.f32 %v950, %v888
  %v952 = vadd.f32 %v951, %v889
  %v953 = vadd.f32 %v952, %v890
  %v954 = vadd.f32 %v953, %v891
  %v955 = vadd.f32 %v954, %v892
  %v956 = vadd.f32 %v955, %v893
  %v957 = vadd.f32 %v956, %v894
  %v958 = vadd.f32 %v957, %v895
  %v959 = vadd.f32 %v958, %v896
  %v960 = vadd.f32 %v959, %v897
  %v961 = vadd.f32 %v960, %v898
  %v962 = vadd.f32 %v961, %v899
  %v963 = vadd.f32 %v962, %v900
  %v964 = vadd.f32 %v963, %v901
  %v965 = vadd.f32 %v964, %v902
  %v966 = vadd.f32 %v965, %v903
  %v967 = vadd.f32 %v966, %v904
  %v968 = vadd.f32 %v967, %v905
  %v969 = vadd.f32 %v968, %v906
  %v970 = vadd.f32 %v969, %v907
  %v971 = vadd.f32 %v970, %v908
  %v972 = vadd.f32 %v971, %v909
  %v973 = vadd.f32 %v972, %v910
  %v974 = vadd.f32 %v973, %v911
  %v975 = vadd.f32 %v974, %v912
  %v976 = vadd.f32 %v975, %v913
  %v977 = vadd.f32 %v976, %v914
  %v978 = vadd.f32 %v977, %v915
  %v979 = vadd.f32 %v978, %v916
  %v980 = vadd.f32 %v979, %v917
  %v981 = vadd.f32 %v980, %v918
  %v982 = vadd.f32 %v981, %v919
  %v983 = vadd.f32 %v982, %v920
  %v984 = vadd.f32 %v983, %v921
  %v985 = vadd.f32 %v984, %v922
  %v986 = vrot.slane %v985, 4
  %v987 = vadd.f32 %v985, %v986
  %v988 = vrot.slane %v987, 2
  %v989 = vadd.f32 %v987, %v988
  %v990 = vrot.slane %v989, 1
  %v991 = vadd.f32 %v989, %v990
  %992 = vst [vmem:[%s6] sm:$0x1] %v991
  // Predicated region
  $region18: #{dense_block_forward.7} parent=0 // pred_check
    _
  $region19: #{dense_block_forward.7} parent=0 // pred_check_branch
    %994 = sbr.rel (0) target = $region21
  $region20: #{dense_block_forward.7} parent=0 // pred_region
    _
  $region21: #{dense_block_forward.7} parent=0 // pred_fallthru
    _
  // Predicated region
  $region22: #{dense_block_forward.7} parent=0 // pred_check
    _
  $region23: #{dense_block_forward.7} parent=0 // pred_check_branch
    %996 = sbr.rel (0) target = $region25
  $region24: #{dense_block_forward.7} parent=0 // pred_region
    _
  $region25: #{dense_block_forward.7} parent=0 // pred_fallthru
    _
  // Predicated region
  $region26: #{dense_block_forward.7} parent=0 // pred_check
    _
  $region27: #{dense_block_forward.7} parent=0 // pred_check_branch
    %998 = sbr.rel (0) target = $region29
  $region28: #{dense_block_forward.7} parent=0 // pred_region
    _
  $region29: #{dense_block_forward.7} parent=0 // pred_fallthru
    _
  // Predicated region
  $region30: #{dense_block_forward.7} parent=0 // pred_check
    _
  $region31: #{dense_block_forward.7} parent=0 // pred_check_branch
    %1000 = sbr.rel (0) target = $region33
  $region32: #{dense_block_forward.7} parent=0 // pred_region
    _
  $region33: #{dense_block_forward.7} parent=0 // pred_fallthru
    _
  // Predicated region
  $region34: #{dense_block_forward.7} parent=0 // pred_check
    _
  $region35: #{dense_block_forward.7} parent=0 // pred_check_branch
    %1002 = sbr.rel (0) target = $region37
  $region36: #{dense_block_forward.7} parent=0 // pred_region
    _
  $region37: #{dense_block_forward.7} parent=0 // pred_fallthru
    _
  // Predicated region
  $region38: #{dense_block_forward.7} parent=0 // pred_check
    _
  $region39: #{dense_block_forward.7} parent=0 // pred_check_branch
    %1004 = sbr.rel (0) target = $region41
  $region40: #{dense_block_forward.7} parent=0 // pred_region
    _
  $region41: #{dense_block_forward.7} parent=0 // pred_fallthru
    _

// kernel: dense_block_forward.9
$region0: #{dense_block_forward.9}
  #allocation0 [shape = 'u32[]', space=smem, size = 0x4, offset = 0x4, fixed_abs, tag = 'smem constant byte address 0x4 - core index']
  #allocation1 [shape = 'u32[144,128]{1,0:T(1,128)}', space=vmem, size = 0x12000, scoped, tag = 'internal scratch']
  %s0 = inlined_call_operand.vmem [shape: f32[512,64], index: 0, kind: input, shape index: {}]
  %s1 = inlined_call_operand.vmem [shape: f32[1,1,64], index: 1, kind: output, shape index: {0}]
  %s2 = inlined_call_operand.vmem [shape: f32[1,1,64], index: 2, kind: output, shape index: {1}]
  %3 = xla_tuple %s1, %s2
  %s4 = sld [smem:[#allocation0]]
  $region22: #{dense_block_forward.9} parent=0
    _
  %s6 = ssub.s32 1, %s4
  %s7 = scalar_select 0, %s6, %s4
  // Predicated region
  $region2: #{dense_block_forward.9} parent=0 // pred_check
    _
  $region3: #{dense_block_forward.9} parent=0 // pred_check_branch
    %9 = sbr.rel (0) target = $region5
  $region4: #{dense_block_forward.9} parent=0 // pred_region
    _
  $region5: #{dense_block_forward.9} parent=0 // pred_fallthru
    _
  %v10 = vld [vmem:[%s0] sm:$0xff]
  %v11 = vld [vmem:[%s0 + $0x8] sm:$0xff]
  %v12 = vld [vmem:[%s0 + $0x10] sm:$0xff]
  %v13 = vld [vmem:[%s0 + $0x18] sm:$0xff]
  %v14 = vld [vmem:[%s0 + $0x20] sm:$0xff]
  %v15 = vld [vmem:[%s0 + $0x28] sm:$0xff]
  %v16 = vld [vmem:[%s0 + $0x30] sm:$0xff]
  %v17 = vld [vmem:[%s0 + $0x38] sm:$0xff]
  %v18 = vld [vmem:[%s0 + $0x40] sm:$0xff]
  %v19 = vld [vmem:[%s0 + $0x48] sm:$0xff]
  %v20 = vld [vmem:[%s0 + $0x50] sm:$0xff]
  %v21 = vld [vmem:[%s0 + $0x58] sm:$0xff]
  %v22 = vld [vmem:[%s0 + $0x60] sm:$0xff]
  %v23 = vld [vmem:[%s0 + $0x68] sm:$0xff]
  %v24 = vld [vmem:[%s0 + $0x70] sm:$0xff]
  %v25 = vld [vmem:[%s0 + $0x78] sm:$0xff]
  %v26 = vld [vmem:[%s0 + $0x80] sm:$0xff]
  %v27 = vld [vmem:[%s0 + $0x88] sm:$0xff]
  %v28 = vld [vmem:[%s0 + $0x90] sm:$0xff]
  %v29 = vld [vmem:[%s0 + $0x98] sm:$0xff]
  %v30 = vld [vmem:[%s0 + $0xa0] sm:$0xff]
  %v31 = vld [vmem:[%s0 + $0xa8] sm:$0xff]
  %v32 = vld [vmem:[%s0 + $0xb0] sm:$0xff]
  %v33 = vld [vmem:[%s0 + $0xb8] sm:$0xff]
  %v34 = vld [vmem:[%s0 + $0xc0] sm:$0xff]
  %v35 = vld [vmem:[%s0 + $0xc8] sm:$0xff]
  %v36 = vld [vmem:[%s0 + $0xd0] sm:$0xff]
  %v37 = vld [vmem:[%s0 + $0xd8] sm:$0xff]
  %v38 = vld [vmem:[%s0 + $0xe0] sm:$0xff]
  %v39 = vld [vmem:[%s0 + $0xe8] sm:$0xff]
  %v40 = vld [vmem:[%s0 + $0xf0] sm:$0xff]
  %v41 = vld [vmem:[%s0 + $0xf8] sm:$0xff]
  %v42 = vld [vmem:[%s0 + $0x100] sm:$0xff]
  %v43 = vld [vmem:[%s0 + $0x108] sm:$0xff]
  %v44 = vld [vmem:[%s0 + $0x110] sm:$0xff]
  %v45 = vld [vmem:[%s0 + $0x118] sm:$0xff]
  %v46 = vld [vmem:[%s0 + $0x120] sm:$0xff]
  %v47 = vld [vmem:[%s0 + $0x128] sm:$0xff]
  %v48 = vld [vmem:[%s0 + $0x130] sm:$0xff]
  %v49 = vld [vmem:[%s0 + $0x138] sm:$0xff]
  %v50 = vld [vmem:[%s0 + $0x140] sm:$0xff]
  %v51 = vld [vmem:[%s0 + $0x148] sm:$0xff]
  %v52 = vld [vmem:[%s0 + $0x150] sm:$0xff]
  %v53 = vld [vmem:[%s0 + $0x158] sm:$0xff]
  %v54 = vld [vmem:[%s0 + $0x160] sm:$0xff]
  %v55 = vld [vmem:[%s0 + $0x168] sm:$0xff]
  %v56 = vld [vmem:[%s0 + $0x170] sm:$0xff]
  %v57 = vld [vmem:[%s0 + $0x178] sm:$0xff]
  %v58 = vld [vmem:[%s0 + $0x180] sm:$0xff]
  %v59 = vld [vmem:[%s0 + $0x188] sm:$0xff]
  %v60 = vld [vmem:[%s0 + $0x190] sm:$0xff]
  %v61 = vld [vmem:[%s0 + $0x198] sm:$0xff]
  %v62 = vld [vmem:[%s0 + $0x1a0] sm:$0xff]
  %v63 = vld [vmem:[%s0 + $0x1a8] sm:$0xff]
  %v64 = vld [vmem:[%s0 + $0x1b0] sm:$0xff]
  %v65 = vld [vmem:[%s0 + $0x1b8] sm:$0xff]
  %v66 = vld [vmem:[%s0 + $0x1c0] sm:$0xff]
  %v67 = vld [vmem:[%s0 + $0x1c8] sm:$0xff]
  %v68 = vld [vmem:[%s0 + $0x1d0] sm:$0xff]
  %v69 = vld [vmem:[%s0 + $0x1d8] sm:$0xff]
  %v70 = vld [vmem:[%s0 + $0x1e0] sm:$0xff]
  %v71 = vld [vmem:[%s0 + $0x1e8] sm:$0xff]
  %v72 = vld [vmem:[%s0 + $0x1f0] sm:$0xff]
  %v73 = vld [vmem:[%s0 + $0x1f8] sm:$0xff]
  %vm74 = vcmask 523264
  %v75 = vsel %vm74, %v10, 0.0
  %v76 = vsel %vm74, %v11, 0.0
  %v77 = vadd.f32 %v75, %v76
  %v78 = vsel %vm74, %v12, 0.0
  %v79 = vadd.f32 %v77, %v78
  %v80 = vsel %vm74, %v13, 0.0
  %v81 = vadd.f32 %v79, %v80
  %v82 = vsel %vm74, %v14, 0.0
  %v83 = vadd.f32 %v81, %v82
  %v84 = vsel %vm74, %v15, 0.0
  %v85 = vadd.f32 %v83, %v84
  %v86 = vsel %vm74, %v16, 0.0
  %v87 = vadd.f32 %v85, %v86
  %v88 = vsel %vm74, %v17, 0.0
  %v89 = vadd.f32 %v87, %v88
  %v90 = vsel %vm74, %v18, 0.0
  %v91 = vadd.f32 %v89, %v90
  %v92 = vsel %vm74, %v19, 0.0
  %v93 = vadd.f32 %v91, %v92
  %v94 = vsel %vm74, %v20, 0.0
  %v95 = vadd.f32 %v93, %v94
  %v96 = vsel %vm74, %v21, 0.0
  %v97 = vadd.f32 %v95, %v96
  %v98 = vsel %vm74, %v22, 0.0
  %v99 = vadd.f32 %v97, %v98
  %v100 = vsel %vm74, %v23, 0.0
  %v101 = vadd.f32 %v99, %v100
  %v102 = vsel %vm74, %v24, 0.0
  %v103 = vadd.f32 %v101, %v102
  %v104 = vsel %vm74, %v25, 0.0
  %v105 = vadd.f32 %v103, %v104
  %v106 = vsel %vm74, %v26, 0.0
  %v107 = vadd.f32 %v105, %v106
  %v108 = vsel %vm74, %v27, 0.0
  %v109 = vadd.f32 %v107, %v108
  %v110 = vsel %vm74, %v28, 0.0
  %v111 = vadd.f32 %v109, %v110
  %v112 = vsel %vm74, %v29, 0.0
  %v113 = vadd.f32 %v111, %v112
  %v114 = vsel %vm74, %v30, 0.0
  %v115 = vadd.f32 %v113, %v114
  %v116 = vsel %vm74, %v31, 0.0
  %v117 = vadd.f32 %v115, %v116
  %v118 = vsel %vm74, %v32, 0.0
  %v119 = vadd.f32 %v117, %v118
  %v120 = vsel %vm74, %v33, 0.0
  %v121 = vadd.f32 %v119, %v120
  %v122 = vsel %vm74, %v34, 0.0
  %v123 = vadd.f32 %v121, %v122
  %v124 = vsel %vm74, %v35, 0.0
  %v125 = vadd.f32 %v123, %v124
  %v126 = vsel %vm74, %v36, 0.0
  %v127 = vadd.f32 %v125, %v126
  %v128 = vsel %vm74, %v37, 0.0
  %v129 = vadd.f32 %v127, %v128
  %v130 = vsel %vm74, %v38, 0.0
  %v131 = vadd.f32 %v129, %v130
  %v132 = vsel %vm74, %v39, 0.0
  %v133 = vadd.f32 %v131, %v132
  %v134 = vsel %vm74, %v40, 0.0
  %v135 = vadd.f32 %v133, %v134
  %v136 = vsel %vm74, %v41, 0.0
  %v137 = vadd.f32 %v135, %v136
  %v138 = vsel %vm74, %v42, 0.0
  %v139 = vadd.f32 %v137, %v138
  %v140 = vsel %vm74, %v43, 0.0
  %v141 = vadd.f32 %v139, %v140
  %v142 = vsel %vm74, %v44, 0.0
  %v143 = vadd.f32 %v141, %v142
  %v144 = vsel %vm74, %v45, 0.0
  %v145 = vadd.f32 %v143, %v144
  %v146 = vsel %vm74, %v46, 0.0
  %v147 = vadd.f32 %v145, %v146
  %v148 = vsel %vm74, %v47, 0.0
  %v149 = vadd.f32 %v147, %v148
  %v150 = vsel %vm74, %v48, 0.0
  %v151 = vadd.f32 %v149, %v150
  %v152 = vsel %vm74, %v49, 0.0
  %v153 = vadd.f32 %v151, %v152
  %v154 = vsel %vm74, %v50, 0.0
  %v155 = vadd.f32 %v153, %v154
  %v156 = vsel %vm74, %v51, 0.0
  %v157 = vadd.f32 %v155, %v156
  %v158 = vsel %vm74, %v52, 0.0
  %v159 = vadd.f32 %v157, %v158
  %v160 = vsel %vm74, %v53, 0.0
  %v161 = vadd.f32 %v159, %v160
  %v162 = vsel %vm74, %v54, 0.0
  %v163 = vadd.f32 %v161, %v162
  %v164 = vsel %vm74, %v55, 0.0
  %v165 = vadd.f32 %v163, %v164
  %v166 = vsel %vm74, %v56, 0.0
  %v167 = vadd.f32 %v165, %v166
  %v168 = vsel %vm74, %v57, 0.0
  %v169 = vadd.f32 %v167, %v168
  %v170 = vsel %vm74, %v58, 0.0
  %v171 = vadd.f32 %v169, %v170
  %v172 = vsel %vm74, %v59, 0.0
  %v173 = vadd.f32 %v171, %v172
  %v174 = vsel %vm74, %v60, 0.0
  %v175 = vadd.f32 %v173, %v174
  %v176 = vsel %vm74, %v61, 0.0
  %v177 = vadd.f32 %v175, %v176
  %v178 = vsel %vm74, %v62, 0.0
  %v179 = vadd.f32 %v177, %v178
  %v180 = vsel %vm74, %v63, 0.0
  %v181 = vadd.f32 %v179, %v180
  %v182 = vsel %vm74, %v64, 0.0
  %v183 = vadd.f32 %v181, %v182
  %v184 = vsel %vm74, %v65, 0.0
  %v185 = vadd.f32 %v183, %v184
  %v186 = vsel %vm74, %v66, 0.0
  %v187 = vadd.f32 %v185, %v186
  %v188 = vsel %vm74, %v67, 0.0
  %v189 = vadd.f32 %v187, %v188
  %v190 = vsel %vm74, %v68, 0.0
  %v191 = vadd.f32 %v189, %v190
  %v192 = vsel %vm74, %v69, 0.0
  %v193 = vadd.f32 %v191, %v192
  %v194 = vsel %vm74, %v70, 0.0
  %v195 = vadd.f32 %v193, %v194
  %v196 = vsel %vm74, %v71, 0.0
  %v197 = vadd.f32 %v195, %v196
  %v198 = vsel %vm74, %v72, 0.0
  %v199 = vadd.f32 %v197, %v198
  %v200 = vsel %vm74, %v73, 0.0
  %v201 = vadd.f32 %v199, %v200
  %v202 = vrot.slane %v201, 4
  %v203 = vadd.f32 %v201, %v202
  %v204 = vrot.slane %v203, 2
  %v205 = vadd.f32 %v203, %v204
  %v206 = vrot.slane %v205, 1
  %v207 = vadd.f32 %v205, %v206
  %vm208 = vcmask 516096
  %209 = vst.msk [vmem:[%s1] sm:$0x1] %vm208, %v207
  %v210 = vmul.f32 %v10, %v10
  %v211 = vmul.f32 %v11, %v11
  %v212 = vmul.f32 %v12, %v12
  %v213 = vmul.f32 %v13, %v13
  %v214 = vmul.f32 %v14, %v14
  %v215 = vmul.f32 %v15, %v15
  %v216 = vmul.f32 %v16, %v16
  %v217 = vmul.f32 %v17, %v17
  %v218 = vmul.f32 %v18, %v18
  %v219 = vmul.f32 %v19, %v19
  %v220 = vmul.f32 %v20, %v20
  %v221 = vmul.f32 %v21, %v21
  %v222 = vmul.f32 %v22, %v22
  %v223 = vmul.f32 %v23, %v23
  %v224 = vmul.f32 %v24, %v24
  %v225 = vmul.f32 %v25, %v25
  %v226 = vmul.f32 %v26, %v26
  %v227 = vmul.f32 %v27, %v27
  %v228 = vmul.f32 %v28, %v28
  %v229 = vmul.f32 %v29, %v29
  %v230 = vmul.f32 %v30, %v30
  %v231 = vmul.f32 %v31, %v31
  %v232 = vmul.f32 %v32, %v32
  %v233 = vmul.f32 %v33, %v33
  %v234 = vmul.f32 %v34, %v34
  %v235 = vmul.f32 %v35, %v35
  %v236 = vmul.f32 %v36, %v36
  %v237 = vmul.f32 %v37, %v37
  %v238 = vmul.f32 %v38, %v38
  %v239 = vmul.f32 %v39, %v39
  %v240 = vmul.f32 %v40, %v40
  %v241 = vmul.f32 %v41, %v41
  %v242 = vmul.f32 %v42, %v42
  %v243 = vmul.f32 %v43, %v43
  %v244 = vmul.f32 %v44, %v44
  %v245 = vmul.f32 %v45, %v45
  %v246 = vmul.f32 %v46, %v46
  %v247 = vmul.f32 %v47, %v47
  %v248 = vmul.f32 %v48, %v48
  %v249 = vmul.f32 %v49, %v49
  %v250 = vmul.f32 %v50, %v50
  %v251 = vmul.f32 %v51, %v51
  %v252 = vmul.f32 %v52, %v52
  %v253 = vmul.f32 %v53, %v53
  %v254 = vmul.f32 %v54, %v54
  %v255 = vmul.f32 %v55, %v55
  %v256 = vmul.f32 %v56, %v56
  %v257 = vmul.f32 %v57, %v57
  %v258 = vmul.f32 %v58, %v58
  %v259 = vmul.f32 %v59, %v59
  %v260 = vmul.f32 %v60, %v60
  %v261 = vmul.f32 %v61, %v61
  %v262 = vmul.f32 %v62, %v62
  %v263 = vmul.f32 %v63, %v63
  %v264 = vmul.f32 %v64, %v64
  %v265 = vmul.f32 %v65, %v65
  %v266 = vmul.f32 %v66, %v66
  %v267 = vmul.f32 %v67, %v67
  %v268 = vmul.f32 %v68, %v68
  %v269 = vmul.f32 %v69, %v69
  %v270 = vmul.f32 %v70, %v70
  %v271 = vmul.f32 %v71, %v71
  %v272 = vmul.f32 %v72, %v72
  %v273 = vmul.f32 %v73, %v73
  %v274 = vsel %vm74, %v210, 0.0
  %v275 = vsel %vm74, %v211, 0.0
  %v276 = vadd.f32 %v274, %v275
  %v277 = vsel %vm74, %v212, 0.0
  %v278 = vadd.f32 %v276, %v277
  %v279 = vsel %vm74, %v213, 0.0
  %v280 = vadd.f32 %v278, %v279
  %v281 = vsel %vm74, %v214, 0.0
  %v282 = vadd.f32 %v280, %v281
  %v283 = vsel %vm74, %v215, 0.0
  %v284 = vadd.f32 %v282, %v283
  %v285 = vsel %vm74, %v216, 0.0
  %v286 = vadd.f32 %v284, %v285
  %v287 = vsel %vm74, %v217, 0.0
  %v288 = vadd.f32 %v286, %v287
  %v289 = vsel %vm74, %v218, 0.0
  %v290 = vadd.f32 %v288, %v289
  %v291 = vsel %vm74, %v219, 0.0
  %v292 = vadd.f32 %v290, %v291
  %v293 = vsel %vm74, %v220, 0.0
  %v294 = vadd.f32 %v292, %v293
  %v295 = vsel %vm74, %v221, 0.0
  %v296 = vadd.f32 %v294, %v295
  %v297 = vsel %vm74, %v222, 0.0
  %v298 = vadd.f32 %v296, %v297
  %v299 = vsel %vm74, %v223, 0.0
  %v300 = vadd.f32 %v298, %v299
  %v301 = vsel %vm74, %v224, 0.0
  %v302 = vadd.f32 %v300, %v301
  %v303 = vsel %vm74, %v225, 0.0
  %v304 = vadd.f32 %v302, %v303
  %v305 = vsel %vm74, %v226, 0.0
  %v306 = vadd.f32 %v304, %v305
  %v307 = vsel %vm74, %v227, 0.0
  %v308 = vadd.f32 %v306, %v307
  %v309 = vsel %vm74, %v228, 0.0
  %v310 = vadd.f32 %v308, %v309
  %v311 = vsel %vm74, %v229, 0.0
  %v312 = vadd.f32 %v310, %v311
  %v313 = vsel %vm74, %v230, 0.0
  %v314 = vadd.f32 %v312, %v313
  %v315 = vsel %vm74, %v231, 0.0
  %v316 = vadd.f32 %v314, %v315
  %v317 = vsel %vm74, %v232, 0.0
  %v318 = vadd.f32 %v316, %v317
  %v319 = vsel %vm74, %v233, 0.0
  %v320 = vadd.f32 %v318, %v319
  %v321 = vsel %vm74, %v234, 0.0
  %v322 = vadd.f32 %v320, %v321
  %v323 = vsel %vm74, %v235, 0.0
  %v324 = vadd.f32 %v322, %v323
  %v325 = vsel %vm74, %v236, 0.0
  %v326 = vadd.f32 %v324, %v325
  %v327 = vsel %vm74, %v237, 0.0
  %v328 = vadd.f32 %v326, %v327
  %v329 = vsel %vm74, %v238, 0.0
  %v330 = vadd.f32 %v328, %v329
  %v331 = vsel %vm74, %v239, 0.0
  %v332 = vadd.f32 %v330, %v331
  %v333 = vsel %vm74, %v240, 0.0
  %v334 = vadd.f32 %v332, %v333
  %v335 = vsel %vm74, %v241, 0.0
  %v336 = vadd.f32 %v334, %v335
  %v337 = vsel %vm74, %v242, 0.0
  %v338 = vadd.f32 %v336, %v337
  %v339 = vsel %vm74, %v243, 0.0
  %v340 = vadd.f32 %v338, %v339
  %v341 = vsel %vm74, %v244, 0.0
  %v342 = vadd.f32 %v340, %v341
  %v343 = vsel %vm74, %v245, 0.0
  %v344 = vadd.f32 %v342, %v343
  %v345 = vsel %vm74, %v246, 0.0
  %v346 = vadd.f32 %v344, %v345
  %v347 = vsel %vm74, %v247, 0.0
  %v348 = vadd.f32 %v346, %v347
  %v349 = vsel %vm74, %v248, 0.0
  %v350 = vadd.f32 %v348, %v349
  %v351 = vsel %vm74, %v249, 0.0
  %v352 = vadd.f32 %v350, %v351
  %v353 = vsel %vm74, %v250, 0.0
  %v354 = vadd.f32 %v352, %v353
  %v355 = vsel %vm74, %v251, 0.0
  %v356 = vadd.f32 %v354, %v355
  %v357 = vsel %vm74, %v252, 0.0
  %v358 = vadd.f32 %v356, %v357
  %v359 = vsel %vm74, %v253, 0.0
  %v360 = vadd.f32 %v358, %v359
  %v361 = vsel %vm74, %v254, 0.0
  %v362 = vadd.f32 %v360, %v361
  %v363 = vsel %vm74, %v255, 0.0
  %v364 = vadd.f32 %v362, %v363
  %v365 = vsel %vm74, %v256, 0.0
  %v366 = vadd.f32 %v364, %v365
  %v367 = vsel %vm74, %v257, 0.0
  %v368 = vadd.f32 %v366, %v367
  %v369 = vsel %vm74, %v258, 0.0
  %v370 = vadd.f32 %v368, %v369
  %v371 = vsel %vm74, %v259, 0.0
  %v372 = vadd.f32 %v370, %v371
  %v373 = vsel %vm74, %v260, 0.0
  %v374 = vadd.f32 %v372, %v373
  %v375 = vsel %vm74, %v261, 0.0
  %v376 = vadd.f32 %v374, %v375
  %v377 = vsel %vm74, %v262, 0.0
  %v378 = vadd.f32 %v376, %v377
  %v379 = vsel %vm74, %v263, 0.0
  %v380 = vadd.f32 %v378, %v379
  %v381 = vsel %vm74, %v264, 0.0
  %v382 = vadd.f32 %v380, %v381
  %v383 = vsel %vm74, %v265, 0.0
  %v384 = vadd.f32 %v382, %v383
  %v385 = vsel %vm74, %v266, 0.0
  %v386 = vadd.f32 %v384, %v385
  %v387 = vsel %vm74, %v267, 0.0
  %v388 = vadd.f32 %v386, %v387
  %v389 = vsel %vm74, %v268, 0.0
  %v390 = vadd.f32 %v388, %v389
  %v391 = vsel %vm74, %v269, 0.0
  %v392 = vadd.f32 %v390, %v391
  %v393 = vsel %vm74, %v270, 0.0
  %v394 = vadd.f32 %v392, %v393
  %v395 = vsel %vm74, %v271, 0.0
  %v396 = vadd.f32 %v394, %v395
  %v397 = vsel %vm74, %v272, 0.0
  %v398 = vadd.f32 %v396, %v397
  %v399 = vsel %vm74, %v273, 0.0
  %v400 = vadd.f32 %v398, %v399
  %v401 = vrot.slane %v400, 4
  %v402 = vadd.f32 %v400, %v401
  %v403 = vrot.slane %v402, 2
  %v404 = vadd.f32 %v402, %v403
  %v405 = vrot.slane %v404, 1
  %v406 = vadd.f32 %v404, %v405
  %407 = vst.msk [vmem:[%s2] sm:$0x1] %vm208, %v406
  // Predicated region
  $region6: #{dense_block_forward.9} parent=0 // pred_check
    _
  $region7: #{dense_block_forward.9} parent=0 // pred_check_branch
    %409 = sbr.rel (0) target = $region9
  $region8: #{dense_block_forward.9} parent=0 // pred_region
    _
  $region9: #{dense_block_forward.9} parent=0 // pred_fallthru
    _
  // Predicated region
  $region10: #{dense_block_forward.9} parent=0 // pred_check
    _
  $region11: #{dense_block_forward.9} parent=0 // pred_check_branch
    %411 = sbr.rel (0) target = $region13
  $region12: #{dense_block_forward.9} parent=0 // pred_region
    _
  $region13: #{dense_block_forward.9} parent=0 // pred_fallthru
    _
  // Predicated region
  $region14: #{dense_block_forward.9} parent=0 // pred_check
    _
  $region15: #{dense_block_forward.9} parent=0 // pred_check_branch
    %413 = sbr.rel (0) target = $region17
  $region16: #{dense_block_forward.9} parent=0 // pred_region
    _
  $region17: #{dense_block_forward.9} parent=0 // pred_fallthru
    _
  // Predicated region
  $region18: #{dense_block_forward.9} parent=0 // pred_check
    _
  $region19: #{dense_block_forward.9} parent=0 // pred_check_branch
    %415 = sbr.rel (0) target = $region21
  $region20: #{dense_block_forward.9} parent=0 // pred_region
    _
  $region21: #{dense_block_forward.9} parent=0 // pred_fallthru
    _

// kernel: dense_block_forward.8
$region0: #{dense_block_forward.8}
  #allocation0 [shape = 'u32[]', space=smem, size = 0x4, offset = 0x4, fixed_abs, tag = 'smem constant byte address 0x4 - core index']
  #allocation1 [shape = 'u32[144,128]{1,0:T(1,128)}', space=vmem, size = 0x12000, scoped, tag = 'internal scratch']
  %s0 = inlined_call_operand.vmem [shape: f32[2,16,16,128], index: 0, kind: input, shape index: {}]
  %s1 = inlined_call_operand.vmem [shape: f32[1,1,128], index: 1, kind: input, shape index: {}]
  %s2 = inlined_call_operand.vmem [shape: f32[1,1,128], index: 2, kind: input, shape index: {}]
  %s3 = inlined_call_operand.vmem [shape: bf16[9,128,32], index: 3, kind: input, shape index: {}]
  %s4 = inlined_call_operand.vmem [shape: f32[2,16,16,32], index: 4, kind: output, shape index: {}]
  %s5 = sld [smem:[#allocation0]]
  $region49: #{dense_block_forward.8} parent=0
    _
  %s7 = ssub.s32 1, %s5
  %s8 = scalar_select 0, %s7, %s5
  loop: start=0, step=1, limit=4
  $region2: #{dense_block_forward.8} parent=0 // loop_pre_header
    _
  $region3: #{dense_block_forward.8} parent=0 // loop_header
    %s10 = sphi 0, %s14
    %p11 = scmp.ge.s32.totalorder %s10, 4
    %s20 = sphi 0, %s22
    %s23 = sphi 0, %s20
    %s24 = sphi 0, %s23
    %s40 = sphi 0, %s24
    %s44 = sphi 0, %s44
    %s46 = sphi 0, %s44
    %s47 = sphi 0, %s46
    %s61 = sphi 0, %s47
    %s65 = sphi 0, %s65
    %s67 = sphi 0, %s65
    %s68 = sphi 0, %s67
    %s82 = sphi 0, %s68
    %s86 = sphi 0, %s86
    %s88 = sphi 0, %s86
    %s89 = sphi 0, %s88
    %s103 = sphi 0, %s89
    %s109 = sphi 0, %s111
    %s112 = sphi 0, %s109
    %s113 = sphi 0, %s112
    %s129 = sphi 0, %s113
  $region4: #{dense_block_forward.8} parent=0 // loop_header_branch
    %13 = sbr.rel (%p11) target = $region8
  $region5: #{dense_block_forward.8} parent=0 // loop_body
    %s15 = ssub.s32 %s10, 1
    %s16 = ssub.s32 %s10, 2
    %s17 = sadd.s32 %s10, 1
    %s18 = ssub.s32 %s10, %s17
    %p19 = scmp.eq.s32.totalorder %s18, 0
    %s21 = sadd.s32 %s20, 1
    %s22 = scalar_select %p19, %s20, %s21
    %p25 = pneg %p19
    %p26 = scmp.eq.s32.totalorder %s10, 1
    %p27 = por %p25, %p26
    %p28 = scmp.ne.s32.totalorder %s20, %s23
    %p29 = scmp.eq.s32.totalorder %s10, 0
    %p30 = por %p28, %p29
    %p31 = scmp.ne.s32.totalorder %s20, %s23
    %p32 = scmp.eq.s32.totalorder %s15, 1
    %p33 = por %p31, %p32
    %p34 = scmp.ne.s32.totalorder %s23, %s24
    %p35 = scmp.eq.s32.totalorder %s15, 0
    %p36 = por %p34, %p35
    %p37 = scmp.ne.s32.totalorder %s23, %s24
    %p38 = scmp.eq.s32.totalorder %s16, 1
    %p39 = por %p37, %p38
    %p41 = scmp.ne.s32.totalorder %s24, %s40
    %p42 = scmp.eq.s32.totalorder %s16, 0
    %p43 = por %p41, %p42
    %s45 = sadd.s32 %s44, 1
    %p48 = scmp.eq.s32.totalorder %s10, 1
    %p49 = scmp.ne.s32.totalorder %s44, %s46
    %p50 = scmp.eq.s32.totalorder %s10, 0
    %p51 = por %p49, %p50
    %p52 = scmp.ne.s32.totalorder %s44, %s46
    %p53 = scmp.eq.s32.totalorder %s15, 1
    %p54 = por %p52, %p53
    %p55 = scmp.ne.s32.totalorder %s46, %s47
    %p56 = scmp.eq.s32.totalorder %s15, 0
    %p57 = por %p55, %p56
    %p58 = scmp.ne.s32.totalorder %s46, %s47
    %p59 = scmp.eq.s32.totalorder %s16, 1
    %p60 = por %p58, %p59
    %p62 = scmp.ne.s32.totalorder %s47, %s61
    %p63 = scmp.eq.s32.totalorder %s16, 0
    %p64 = por %p62, %p63
    %s66 = sadd.s32 %s65, 1
    %p69 = scmp.eq.s32.totalorder %s10, 1
    %p70 = scmp.ne.s32.totalorder %s65, %s67
    %p71 = scmp.eq.s32.totalorder %s10, 0
    %p72 = por %p70, %p71
    %p73 = scmp.ne.s32.totalorder %s65, %s67
    %p74 = scmp.eq.s32.totalorder %s15, 1
    %p75 = por %p73, %p74
    %p76 = scmp.ne.s32.totalorder %s67, %s68
    %p77 = scmp.eq.s32.totalorder %s15, 0
    %p78 = por %p76, %p77
    %p79 = scmp.ne.s32.totalorder %s67, %s68
    %p80 = scmp.eq.s32.totalorder %s16, 1
    %p81 = por %p79, %p80
    %p83 = scmp.ne.s32.totalorder %s68, %s82
    %p84 = scmp.eq.s32.totalorder %s16, 0
    %p85 = por %p83, %p84
    %s87 = sadd.s32 %s86, 1
    %p90 = scmp.eq.s32.totalorder %s10, 1
    %p91 = scmp.ne.s32.totalorder %s86, %s88
    %p92 = scmp.eq.s32.totalorder %s10, 0
    %p93 = por %p91, %p92
    %p94 = scmp.ne.s32.totalorder %s86, %s88
    %p95 = scmp.eq.s32.totalorder %s15, 1
    %p96 = por %p94, %p95
    %p97 = scmp.ne.s32.totalorder %s88, %s89
    %p98 = scmp.eq.s32.totalorder %s15, 0
    %p99 = por %p97, %p98
    %p100 = scmp.ne.s32.totalorder %s88, %s89
    %p101 = scmp.eq.s32.totalorder %s16, 1
    %p102 = por %p100, %p101
    %p104 = scmp.ne.s32.totalorder %s89, %s103
    %p105 = scmp.eq.s32.totalorder %s16, 0
    %p106 = por %p104, %p105
    %s107 = ssub.s32 %s10, %s17
    %p108 = scmp.eq.s32.totalorder %s107, 0
    %s110 = sadd.s32 %s109, 1
    %s111 = scalar_select %p108, %s109, %s110
    %p114 = pneg %p108
    %p115 = scmp.eq.s32.totalorder %s10, 1
    %p116 = por %p114, %p115
    %p117 = scmp.ne.s32.totalorder %s109, %s112
    %p118 = scmp.eq.s32.totalorder %s10, 0
    %p119 = por %p117, %p118
    %p120 = scmp.ne.s32.totalorder %s109, %s112
    %p121 = scmp.eq.s32.totalorder %s15, 1
    %p122 = por %p120, %p121
    %p123 = scmp.ne.s32.totalorder %s112, %s113
    %p124 = scmp.eq.s32.totalorder %s15, 0
    %p125 = por %p123, %p124
    %p126 = scmp.ne.s32.totalorder %s112, %s113
    %p127 = scmp.eq.s32.totalorder %s16, 1
    %p128 = por %p126, %p127
    %p130 = scmp.ne.s32.totalorder %s113, %s129
    %p131 = scmp.eq.s32.totalorder %s16, 0
    %p132 = por %p130, %p131
    %p133 = scmp.le.s32.totalorder 1, %s10
    %p134 = scmp.lt.s32.totalorder %s10, 3
    %p135 = pnand %p133, %p134
    %p136 = pneg %p135
    // Predicated region
    $region9: #{dense_block_forward.8} parent=5 // pred_check
      _
    $region10: #{dense_block_forward.8} parent=5 // pred_check_branch
      %138 = sbr.rel (%p135) target = $region12
    $region11: #{dense_block_forward.8} parent=5 // pred_region
      %s139 = ssub.s32 %s10, 1
      // Predicated region
      $region13: #{dense_block_forward.8} parent=11 // pred_check
        %p140 = pneg %p57
      $region14: #{dense_block_forward.8} parent=11 // pred_check_branch
        %142 = sbr.rel (%p140) target = $region16
      $region15: #{dense_block_forward.8} parent=11 // pred_region
        _
      $region16: #{dense_block_forward.8} parent=11 // pred_fallthru
        _
      // Predicated region
      $region17: #{dense_block_forward.8} parent=11 // pred_check
        %p143 = pneg %p78
      $region18: #{dense_block_forward.8} parent=11 // pred_check_branch
        %145 = sbr.rel (%p143) target = $region20
      $region19: #{dense_block_forward.8} parent=11 // pred_region
        _
      $region20: #{dense_block_forward.8} parent=11 // pred_fallthru
        _
      // Predicated region
      $region21: #{dense_block_forward.8} parent=11 // pred_check
        %p146 = pneg %p99
      $region22: #{dense_block_forward.8} parent=11 // pred_check_branch
        %148 = sbr.rel (%p146) target = $region24
      $region23: #{dense_block_forward.8} parent=11 // pred_region
        _
      $region24: #{dense_block_forward.8} parent=11 // pred_fallthru
        _
    $region12: #{dense_block_forward.8} parent=5 // pred_fallthru
      _
    %p149 = scmp.lt.s32.totalorder %s10, 2
    // Predicated region
    $region25: #{dense_block_forward.8} parent=5 // pred_check
      %p150 = pneg %p149
    $region26: #{dense_block_forward.8} parent=5 // pred_check_branch
      %152 = sbr.rel (%p150) target = $region28
    $region27: #{dense_block_forward.8} parent=5 // pred_region
      // Predicated region
      $region29: #{dense_block_forward.8} parent=27 // pred_check
        %p153 = pneg %p30
      $region30: #{dense_block_forward.8} parent=27 // pred_check_branch
        %155 = sbr.rel (%p153) target = $region32
      $region31: #{dense_block_forward.8} parent=27 // pred_region
        %p156 = scmp.lt.s32.totalorder %s10, 1
        %s157 = scalar_select %p156, %s10, 1
        %s158 = smul.addr %s157, 32
        %s159 = smul.addr %s158, 8
        %s160 = scalar_lea.vmem %s0, %s159
      $region32: #{dense_block_forward.8} parent=27 // pred_fallthru
        _
    $region28: #{dense_block_forward.8} parent=5 // pred_fallthru
      _
    %p161 = scmp.le.s32.totalorder 1, %s10
    %p162 = scmp.lt.s32.totalorder %s10, 3
    %p163 = pnand %p161, %p162
    %p164 = pneg %p163
    // Predicated region
    $region33: #{dense_block_forward.8} parent=5 // pred_check
      _
    $region34: #{dense_block_forward.8} parent=5 // pred_check_branch
      %166 = sbr.rel (%p163) target = $region36
    $region35: #{dense_block_forward.8} parent=5 // pred_region
      %s167 = ssub.s32 %s10, 1
      %p168 = scmp.lt.s32.totalorder %s15, 1
      %s169 = scalar_select %p168, %s15, 1
      %s170 = smul.addr %s169, 32
      %s171 = smul.addr %s170, 8
      %s172 = scalar_lea.vmem %s0, %s171
      %p173 = pneg %p36
      %p174 = pneg %p33
      %p175 = pneg %p57
      %p176 = pneg %p54
      %p177 = pneg %p78
      %p178 = pneg %p75
      %p179 = pneg %p99
      %p180 = pneg %p96
      %p181 = pneg %p125
      %p182 = pneg %p122
      %p183 = scmp.lt.s32.totalorder %s15, 1
      %s184 = scalar_select %p183, %s15, 1
      %s185 = smul.addr %s184, 32
      %s186 = smul.addr %s185, 8
      %s187 = scalar_lea.vmem %s4, %s186
      %p188 = scmp.lt.s32.totalorder %s15, 1
      %s189 = scalar_select %p188, %s15, 1
      %s190 = smul.addr %s189, 32
      %s191 = smul.addr %s190, 8
      %s192 = scalar_lea.vmem %s0, %s191
      %p193 = scmp.lt.s32.totalorder %s15, 1
      %s194 = scalar_select %p193, %s15, 1
      %s195 = smul.addr %s194, 32
      %s196 = smul.addr %s195, 8
      %s197 = scalar_lea.vmem %s4, %s196
      %v199 = vld [vmem:[%s192] sm:$0xff]
      %v200 = vld [vmem:[%s192 + $0x8] sm:$0xff]
      %v201 = vld [vmem:[%s192 + $0x10] sm:$0xff]
      %v202 = vld [vmem:[%s192 + $0x18] sm:$0xff]
      %v203 = vld [vmem:[%s192 + $0x20] sm:$0xff]
      %v204 = vld [vmem:[%s192 + $0x28] sm:$0xff]
      %v205 = vld [vmem:[%s192 + $0x30] sm:$0xff]
      %v206 = vld [vmem:[%s192 + $0x38] sm:$0xff]
      %v207 = vld [vmem:[%s192 + $0x40] sm:$0xff]
      %v208 = vld [vmem:[%s192 + $0x48] sm:$0xff]
      %v209 = vld [vmem:[%s192 + $0x50] sm:$0xff]
      %v210 = vld [vmem:[%s192 + $0x58] sm:$0xff]
      %v211 = vld [vmem:[%s192 + $0x60] sm:$0xff]
      %v212 = vld [vmem:[%s192 + $0x68] sm:$0xff]
      %v213 = vld [vmem:[%s192 + $0x70] sm:$0xff]
      %v214 = vld [vmem:[%s192 + $0x78] sm:$0xff]
      %v215 = vld [vmem:[%s192 + $0x80] sm:$0xff]
      %v216 = vld [vmem:[%s192 + $0x88] sm:$0xff]
      %v217 = vld [vmem:[%s192 + $0x90] sm:$0xff]
      %v218 = vld [vmem:[%s192 + $0x98] sm:$0xff]
      %v219 = vld [vmem:[%s192 + $0xa0] sm:$0xff]
      %v220 = vld [vmem:[%s192 + $0xa8] sm:$0xff]
      %v221 = vld [vmem:[%s192 + $0xb0] sm:$0xff]
      %v222 = vld [vmem:[%s192 + $0xb8] sm:$0xff]
      %v223 = vld [vmem:[%s192 + $0xc0] sm:$0xff]
      %v224 = vld [vmem:[%s192 + $0xc8] sm:$0xff]
      %v225 = vld [vmem:[%s192 + $0xd0] sm:$0xff]
      %v226 = vld [vmem:[%s192 + $0xd8] sm:$0xff]
      %v227 = vld [vmem:[%s192 + $0xe0] sm:$0xff]
      %v228 = vld [vmem:[%s192 + $0xe8] sm:$0xff]
      %v229 = vld [vmem:[%s192 + $0xf0] sm:$0xff]
      %v230 = vld [vmem:[%s192 + $0xf8] sm:$0xff]
      %v231 = vld [vmem:[%s1] sm:$0x1]
      %v233 = vlaneseq
      %v234 = vshrl.u32 %v233, 7
      %v235 = vsub.s32 0, %v234
      %v236 = vrot.slane %v231, %v235
      %v238 = vmul.f32 %v199, %v236
      %v239 = vmul.f32 %v200, %v236
      %v240 = vmul.f32 %v201, %v236
      %v241 = vmul.f32 %v202, %v236
      %v242 = vmul.f32 %v203, %v236
      %v243 = vmul.f32 %v204, %v236
      %v244 = vmul.f32 %v205, %v236
      %v245 = vmul.f32 %v206, %v236
      %v246 = vmul.f32 %v207, %v236
      %v247 = vmul.f32 %v208, %v236
      %v248 = vmul.f32 %v209, %v236
      %v249 = vmul.f32 %v210, %v236
      %v250 = vmul.f32 %v211, %v236
      %v251 = vmul.f32 %v212, %v236
      %v252 = vmul.f32 %v213, %v236
      %v253 = vmul.f32 %v214, %v236
      %v254 = vmul.f32 %v215, %v236
      %v255 = vmul.f32 %v216, %v236
      %v256 = vmul.f32 %v217, %v236
      %v257 = vmul.f32 %v218, %v236
      %v258 = vmul.f32 %v219, %v236
      %v259 = vmul.f32 %v220, %v236
      %v260 = vmul.f32 %v221, %v236
      %v261 = vmul.f32 %v222, %v236
      %v262 = vmul.f32 %v223, %v236
      %v263 = vmul.f32 %v224, %v236
      %v264 = vmul.f32 %v225, %v236
      %v265 = vmul.f32 %v226, %v236
      %v266 = vmul.f32 %v227, %v236
      %v267 = vmul.f32 %v228, %v236
      %v268 = vmul.f32 %v229, %v236
      %v269 = vmul.f32 %v230, %v236
      %v270 = vld [vmem:[%s2] sm:$0x1]
      %v272 = vlaneseq
      %v273 = vshrl.u32 %v272, 7
      %v274 = vsub.s32 0, %v273
      %v275 = vrot.slane %v270, %v274
      %v277 = vadd.f32 %v238, %v275
      %v278 = vadd.f32 %v239, %v275
      %v279 = vadd.f32 %v240, %v275
      %v280 = vadd.f32 %v241, %v275
      %v281 = vadd.f32 %v242, %v275
      %v282 = vadd.f32 %v243, %v275
      %v283 = vadd.f32 %v244, %v275
      %v284 = vadd.f32 %v245, %v275
      %v285 = vadd.f32 %v246, %v275
      %v286 = vadd.f32 %v247, %v275
      %v287 = vadd.f32 %v248, %v275
      %v288 = vadd.f32 %v249, %v275
      %v289 = vadd.f32 %v250, %v275
      %v290 = vadd.f32 %v251, %v275
      %v291 = vadd.f32 %v252, %v275
      %v292 = vadd.f32 %v253, %v275
      %v293 = vadd.f32 %v254, %v275
      %v294 = vadd.f32 %v255, %v275
      %v295 = vadd.f32 %v256, %v275
      %v296 = vadd.f32 %v257, %v275
      %v297 = vadd.f32 %v258, %v275
      %v298 = vadd.f32 %v259, %v275
      %v299 = vadd.f32 %v260, %v275
      %v300 = vadd.f32 %v261, %v275
      %v301 = vadd.f32 %v262, %v275
      %v302 = vadd.f32 %v263, %v275
      %v303 = vadd.f32 %v264, %v275
      %v304 = vadd.f32 %v265, %v275
      %v305 = vadd.f32 %v266, %v275
      %v306 = vadd.f32 %v267, %v275
      %v307 = vadd.f32 %v268, %v275
      %v308 = vadd.f32 %v269, %v275
      %v309 = vmax.f32 %v277, 0.0
      %v310 = vmax.f32 %v278, 0.0
      %v311 = vmax.f32 %v279, 0.0
      %v312 = vmax.f32 %v280, 0.0
      %v313 = vmax.f32 %v281, 0.0
      %v314 = vmax.f32 %v282, 0.0
      %v315 = vmax.f32 %v283, 0.0
      %v316 = vmax.f32 %v284, 0.0
      %v317 = vmax.f32 %v285, 0.0
      %v318 = vmax.f32 %v286, 0.0
      %v319 = vmax.f32 %v287, 0.0
      %v320 = vmax.f32 %v288, 0.0
      %v321 = vmax.f32 %v289, 0.0
      %v322 = vmax.f32 %v290, 0.0
      %v323 = vmax.f32 %v291, 0.0
      %v324 = vmax.f32 %v292, 0.0
      %v325 = vmax.f32 %v293, 0.0
      %v326 = vmax.f32 %v294, 0.0
      %v327 = vmax.f32 %v295, 0.0
      %v328 = vmax.f32 %v296, 0.0
      %v329 = vmax.f32 %v297, 0.0
      %v330 = vmax.f32 %v298, 0.0
      %v331 = vmax.f32 %v299, 0.0
      %v332 = vmax.f32 %v300, 0.0
      %v333 = vmax.f32 %v301, 0.0
      %v334 = vmax.f32 %v302, 0.0
      %v335 = vmax.f32 %v303, 0.0
      %v336 = vmax.f32 %v304, 0.0
      %v337 = vmax.f32 %v305, 0.0
      %v338 = vmax.f32 %v306, 0.0
      %v339 = vmax.f32 %v307, 0.0
      %v340 = vmax.f32 %v308, 0.0
      %vm373 = vcmask 1040384
      %v374 = vrot.slane %v309, 7
      %v375 = vrot.slane %v310, 7
      %v376 = vsel %vm373, %v374, %v375
      %v377 = vrot.slane %v311, 7
      %v378 = vrot.slane %v312, 7
      %v379 = vsel %vm373, %v377, %v378
      %v380 = vrot.slane %v313, 7
      %v381 = vrot.slane %v314, 7
      %v382 = vsel %vm373, %v380, %v381
      %v383 = vrot.slane %v315, 7
      %v384 = vrot.slane %v316, 7
      %v385 = vsel %vm373, %v383, %v384
      %v386 = vrot.slane %v317, 7
      %v387 = vrot.slane %v318, 7
      %v388 = vsel %vm373, %v386, %v387
      %v389 = vrot.slane %v319, 7
      %v390 = vrot.slane %v320, 7
      %v391 = vsel %vm373, %v389, %v390
      %v392 = vrot.slane %v321, 7
      %v393 = vrot.slane %v322, 7
      %v394 = vsel %vm373, %v392, %v393
      %v395 = vrot.slane %v323, 7
      %v396 = vrot.slane %v324, 7
      %v397 = vsel %vm373, %v395, %v396
      %v398 = vrot.slane %v325, 7
      %v399 = vrot.slane %v326, 7
      %v400 = vsel %vm373, %v398, %v399
      %v401 = vrot.slane %v327, 7
      %v402 = vrot.slane %v328, 7
      %v403 = vsel %vm373, %v401, %v402
      %v404 = vrot.slane %v329, 7
      %v405 = vrot.slane %v330, 7
      %v406 = vsel %vm373, %v404, %v405
      %v407 = vrot.slane %v331, 7
      %v408 = vrot.slane %v332, 7
      %v409 = vsel %vm373, %v407, %v408
      %v410 = vrot.slane %v333, 7
      %v411 = vrot.slane %v334, 7
      %v412 = vsel %vm373, %v410, %v411
      %v413 = vrot.slane %v335, 7
      %v414 = vrot.slane %v336, 7
      %v415 = vsel %vm373, %v413, %v414
      %v416 = vrot.slane %v337, 7
      %v417 = vrot.slane %v338, 7
      %v418 = vsel %vm373, %v416, %v417
      %v419 = vrot.slane %v339, 7
      %v420 = vrot.slane %v340, 7
      %v421 = vsel %vm373, %v419, %v420
      %v454 = vsel %vm373, 0.0, %v374
      %v455 = vsel %vm373, 0.0, %v377
      %v456 = vsel %vm373, 0.0, %v380
      %v457 = vsel %vm373, 0.0, %v383
      %v458 = vsel %vm373, 0.0, %v386
      %v459 = vsel %vm373, 0.0, %v389
      %v460 = vsel %vm373, 0.0, %v392
      %v461 = vsel %vm373, 0.0, %v395
      %v462 = vsel %vm373, 0.0, %v398
      %v463 = vsel %vm373, 0.0, %v401
      %v464 = vsel %vm373, 0.0, %v404
      %v465 = vsel %vm373, 0.0, %v407
      %v466 = vsel %vm373, 0.0, %v410
      %v467 = vsel %vm373, 0.0, %v413
      %v468 = vsel %vm373, 0.0, %v416
      %v469 = vsel %vm373, 0.0, %v419
      %v470 = vpack.c.bf16 %v376, %v454
      %v471 = vpack.c.bf16 %v379, %v455
      %v472 = vpack.c.bf16 %v382, %v456
      %v473 = vpack.c.bf16 %v385, %v457
      %v474 = vpack.c.bf16 %v388, %v458
      %v475 = vpack.c.bf16 %v391, %v459
      %v476 = vpack.c.bf16 %v394, %v460
      %v477 = vpack.c.bf16 %v397, %v461
      %v478 = vpack.c.bf16 %v400, %v462
      %v479 = vpack.c.bf16 %v403, %v463
      %v480 = vpack.c.bf16 %v406, %v464
      %v481 = vpack.c.bf16 %v409, %v465
      %v482 = vpack.c.bf16 %v412, %v466
      %v483 = vpack.c.bf16 %v415, %v467
      %v484 = vpack.c.bf16 %v418, %v468
      %v485 = vpack.c.bf16 %v421, %v469
      %v486 = vpack.c.bf16 %v310, %v309
      %v487 = vpack.c.bf16 %v312, %v311
      %v488 = vpack.c.bf16 %v314, %v313
      %v489 = vpack.c.bf16 %v316, %v315
      %v490 = vpack.c.bf16 %v318, %v317
      %v491 = vpack.c.bf16 %v320, %v319
      %v492 = vpack.c.bf16 %v322, %v321
      %v493 = vpack.c.bf16 %v324, %v323
      %v494 = vpack.c.bf16 %v326, %v325
      %v495 = vpack.c.bf16 %v328, %v327
      %v496 = vpack.c.bf16 %v330, %v329
      %v497 = vpack.c.bf16 %v332, %v331
      %v498 = vpack.c.bf16 %v334, %v333
      %v499 = vpack.c.bf16 %v336, %v335
      %v500 = vpack.c.bf16 %v338, %v337
      %v501 = vpack.c.bf16 %v340, %v339
      %vm502 = vcmask 1046528
      %v503 = vrot.slane %v309, 1
      %v504 = vrot.slane %v310, 1
      %v505 = vsel %vm502, %v503, %v504
      %v506 = vrot.slane %v311, 1
      %v507 = vrot.slane %v312, 1
      %v508 = vsel %vm502, %v506, %v507
      %v509 = vrot.slane %v313, 1
      %v510 = vrot.slane %v314, 1
      %v511 = vsel %vm502, %v509, %v510
      %v512 = vrot.slane %v315, 1
      %v513 = vrot.slane %v316, 1
      %v514 = vsel %vm502, %v512, %v513
      %v515 = vrot.slane %v317, 1
      %v516 = vrot.slane %v318, 1
      %v517 = vsel %vm502, %v515, %v516
      %v518 = vrot.slane %v319, 1
      %v519 = vrot.slane %v320, 1
      %v520 = vsel %vm502, %v518, %v519
      %v521 = vrot.slane %v321, 1
      %v522 = vrot.slane %v322, 1
      %v523 = vsel %vm502, %v521, %v522
      %v524 = vrot.slane %v323, 1
      %v525 = vrot.slane %v324, 1
      %v526 = vsel %vm502, %v524, %v525
      %v527 = vrot.slane %v325, 1
      %v528 = vrot.slane %v326, 1
      %v529 = vsel %vm502, %v527, %v528
      %v530 = vrot.slane %v327, 1
      %v531 = vrot.slane %v328, 1
      %v532 = vsel %vm502, %v530, %v531
      %v533 = vrot.slane %v329, 1
      %v534 = vrot.slane %v330, 1
      %v535 = vsel %vm502, %v533, %v534
      %v536 = vrot.slane %v331, 1
      %v537 = vrot.slane %v332, 1
      %v538 = vsel %vm502, %v536, %v537
      %v539 = vrot.slane %v333, 1
      %v540 = vrot.slane %v334, 1
      %v541 = vsel %vm502, %v539, %v540
      %v542 = vrot.slane %v335, 1
      %v543 = vrot.slane %v336, 1
      %v544 = vsel %vm502, %v542, %v543
      %v545 = vrot.slane %v337, 1
      %v546 = vrot.slane %v338, 1
      %v547 = vsel %vm502, %v545, %v546
      %v548 = vrot.slane %v339, 1
      %v549 = vrot.slane %v340, 1
      %v550 = vsel %vm502, %v548, %v549
      %v583 = vsel %vm502, %v504, 0.0
      %v584 = vsel %vm502, %v507, 0.0
      %v585 = vsel %vm502, %v510, 0.0
      %v586 = vsel %vm502, %v513, 0.0
      %v587 = vsel %vm502, %v516, 0.0
      %v588 = vsel %vm502, %v519, 0.0
      %v589 = vsel %vm502, %v522, 0.0
      %v590 = vsel %vm502, %v525, 0.0
      %v591 = vsel %vm502, %v528, 0.0
      %v592 = vsel %vm502, %v531, 0.0
      %v593 = vsel %vm502, %v534, 0.0
      %v594 = vsel %vm502, %v537, 0.0
      %v595 = vsel %vm502, %v540, 0.0
      %v596 = vsel %vm502, %v543, 0.0
      %v597 = vsel %vm502, %v546, 0.0
      %v598 = vsel %vm502, %v549, 0.0
      %v599 = vpack.c.bf16 %v583, %v505
      %v600 = vpack.c.bf16 %v584, %v508
      %v601 = vpack.c.bf16 %v585, %v511
      %v602 = vpack.c.bf16 %v586, %v514
      %v603 = vpack.c.bf16 %v587, %v517
      %v604 = vpack.c.bf16 %v588, %v520
      %v605 = vpack.c.bf16 %v589, %v523
      %v606 = vpack.c.bf16 %v590, %v526
      %v607 = vpack.c.bf16 %v591, %v529
      %v608 = vpack.c.bf16 %v592, %v532
      %v609 = vpack.c.bf16 %v593, %v535
      %v610 = vpack.c.bf16 %v594, %v538
      %v611 = vpack.c.bf16 %v595, %v541
      %v612 = vpack.c.bf16 %v596, %v544
      %v613 = vpack.c.bf16 %v597, %v547
      %v614 = vpack.c.bf16 %v598, %v550
      %v615 = vld [vmem:[%s3] sm:$0xf]
      %v616 = vld [vmem:[%s3 + $0x4] sm:$0xf]
      %v617 = vld [vmem:[%s3 + $0x8] sm:$0xf]
      %v618 = vld [vmem:[%s3 + $0xc] sm:$0xf]
      %v619 = vld [vmem:[%s3 + $0x10] sm:$0xf]
      %v620 = vld [vmem:[%s3 + $0x14] sm:$0xf]
      %v621 = vld [vmem:[%s3 + $0x18] sm:$0xf]
      %v622 = vld [vmem:[%s3 + $0x1c] sm:$0xf]
      %v623 = vld [vmem:[%s3 + $0x20] sm:$0xf]
      %v624 = vld [vmem:[%s3 + $0x24] sm:$0xf]
      %v625 = vld [vmem:[%s3 + $0x28] sm:$0xf]
      %v626 = vld [vmem:[%s3 + $0x2c] sm:$0xf]
      %v627 = vld [vmem:[%s3 + $0x30] sm:$0xf]
      %v628 = vld [vmem:[%s3 + $0x34] sm:$0xf]
      %v629 = vld [vmem:[%s3 + $0x38] sm:$0xf]
      %v630 = vld [vmem:[%s3 + $0x3c] sm:$0xf]
      %s631 = scalar_lea.vmem %s3, 64
      %v632 = vld [vmem:[%s631] sm:$0xf]
      %v633 = vld [vmem:[%s631 + $0x4] sm:$0xf]
      %v634 = vld [vmem:[%s631 + $0x8] sm:$0xf]
      %v635 = vld [vmem:[%s631 + $0xc] sm:$0xf]
      %v636 = vld [vmem:[%s631 + $0x10] sm:$0xf]
      %v637 = vld [vmem:[%s631 + $0x14] sm:$0xf]
      %v638 = vld [vmem:[%s631 + $0x18] sm:$0xf]
      %v639 = vld [vmem:[%s631 + $0x1c] sm:$0xf]
      %v640 = vld [vmem:[%s631 + $0x20] sm:$0xf]
      %v641 = vld [vmem:[%s631 + $0x24] sm:$0xf]
      %v642 = vld [vmem:[%s631 + $0x28] sm:$0xf]
      %v643 = vld [vmem:[%s631 + $0x2c] sm:$0xf]
      %v644 = vld [vmem:[%s631 + $0x30] sm:$0xf]
      %v645 = vld [vmem:[%s631 + $0x34] sm:$0xf]
      %v646 = vld [vmem:[%s631 + $0x38] sm:$0xf]
      %v647 = vld [vmem:[%s631 + $0x3c] sm:$0xf]
      %v664 = vunpack.c.l.b16 %v632
      %v665 = vunpack.c.l.b16 %v633
      %v666 = vunpack.c.l.b16 %v634
      %v667 = vunpack.c.l.b16 %v635
      %v668 = vunpack.c.l.b16 %v636
      %v669 = vunpack.c.l.b16 %v637
      %v670 = vunpack.c.l.b16 %v638
      %v671 = vunpack.c.l.b16 %v639
      %v672 = vunpack.c.l.b16 %v640
      %v673 = vunpack.c.l.b16 %v641
      %v674 = vunpack.c.l.b16 %v642
      %v675 = vunpack.c.l.b16 %v643
      %v676 = vunpack.c.l.b16 %v644
      %v677 = vunpack.c.l.b16 %v645
      %v678 = vunpack.c.l.b16 %v646
      %v679 = vunpack.c.l.b16 %v647
      %v680 = vpack.c.b16 %v665, %v664
      %v681 = vpack.c.b16 %v667, %v666
      %v682 = vpack.c.b16 %v669, %v668
      %v683 = vpack.c.b16 %v671, %v670
      %v684 = vpack.c.b16 %v673, %v672
      %v685 = vpack.c.b16 %v675, %v674
      %v686 = vpack.c.b16 %v677, %v676
      %v687 = vpack.c.b16 %v679, %v678
      %696 = vmatprep.subr.bf16.mxu0 0
      %697 = vmatpush1.bf16.msra.mxu0 %v680
      %698 = vmatprep.subr.bf16.mxu0 0
      %699 = vmatpush1.bf16.msra.mxu0 %v681
      %700 = vmatprep.subr.bf16.mxu0 0
      %701 = vmatpush1.bf16.msra.mxu0 %v682
      %702 = vmatprep.subr.bf16.mxu0 0
      %703 = vmatpush1.bf16.msra.mxu0 %v683
      %704 = vmatprep.subr.bf16.mxu0 0
      %705 = vmatpush1.bf16.msra.mxu0 %v684
      %706 = vmatprep.subr.bf16.mxu0 0
      %707 = vmatpush1.bf16.msra.mxu0 %v685
      %708 = vmatprep.subr.bf16.mxu0 0
      %709 = vmatpush1.bf16.msra.mxu0 %v686
      %710 = vmatprep.subr.bf16.mxu0 0
      %711 = vmatpush1.bf16.msra.mxu0 %v687
      %712 = vmatprep.subr.bf16.mxu0 0
      %713 = vmatpush1.bf16.msra.mxu0 0
      %714 = vmatprep.subr.bf16.mxu0 0
      %715 = vmatpush1.bf16.msra.mxu0 0
      %716 = vmatprep.subr.bf16.mxu0 0
      %717 = vmatpush1.bf16.msra.mxu0 0
      %718 = vmatprep.subr.bf16.mxu0 0
      %719 = vmatpush1.bf16.msra.mxu0 0
      %720 = vmatprep.subr.bf16.mxu0 0
      %721 = vmatpush1.bf16.msra.mxu0 0
      %722 = vmatprep.subr.bf16.mxu0 0
      %723 = vmatpush1.bf16.msra.mxu0 0
      %724 = vmatprep.subr.bf16.mxu0 0
      %725 = vmatpush1.bf16.msra.mxu0 0
      %726 = vmatprep.subr.bf16.mxu0 0
      %727 = vmatpush1.bf16.msra.mxu0 0
      %728 = vmatprep.mubr.bf16.mxu0 0
      %729 = vmatmul.mubr.bf16.gmra.mrb[0].mxu0 0
      %v730 = vpop.f32.mrb[0].mxu0
      %v731 = vadd.f32 0.0, %v730
      %v732 = vpop.f32.mrb[0].mxu0
      %v733 = vpop.f32.mrb[0].mxu0
      %v734 = vadd.f32 0.0, %v733
      %v735 = vpop.f32.mrb[0].mxu0
      %736 = vmatprep.mubr.bf16.mxu0 0
      %737 = vmatmul.mubr.bf16.gmra.mrb[0].mxu0 %v486
      %v738 = vpop.f32.mrb[0].mxu0
      %v739 = vadd.f32 0.0, %v738
      %v740 = vpop.f32.mrb[0].mxu0
      %v741 = vpop.f32.mrb[0].mxu0
      %v742 = vadd.f32 0.0, %v741
      %v743 = vpop.f32.mrb[0].mxu0
      %744 = vmatprep.mubr.bf16.mxu0 0
      %745 = vmatmul.mubr.bf16.gmra.mrb[0].mxu0 %v487
      %v746 = vpop.f32.mrb[0].mxu0
      %v747 = vadd.f32 0.0, %v746
      %v748 = vpop.f32.mrb[0].mxu0
      %v749 = vpop.f32.mrb[0].mxu0
      %v750 = vadd.f32 0.0, %v749
      %v751 = vpop.f32.mrb[0].mxu0
      %752 = vmatprep.mubr.bf16.mxu0 0
      %753 = vmatmul.mubr.bf16.gmra.mrb[0].mxu0 %v488
      %v754 = vpop.f32.mrb[0].mxu0
      %v755 = vadd.f32 0.0, %v754
      %v756 = vpop.f32.mrb[0].mxu0
      %v757 = vpop.f32.mrb[0].mxu0
      %v758 = vadd.f32 0.0, %v757
      %v759 = vpop.f32.mrb[0].mxu0
      %760 = vmatprep.mubr.bf16.mxu0 0
      %761 = vmatmul.mubr.bf16.gmra.mrb[0].mxu0 %v489
      %v762 = vpop.f32.mrb[0].mxu0
      %v763 = vadd.f32 0.0, %v762
      %v764 = vpop.f32.mrb[0].mxu0
      %v765 = vpop.f32.mrb[0].mxu0
      %v766 = vadd.f32 0.0, %v765
      %v767 = vpop.f32.mrb[0].mxu0
      %768 = vmatprep.mubr.bf16.mxu0 0
      %769 = vmatmul.mubr.bf16.gmra.mrb[0].mxu0 %v490
      %v770 = vpop.f32.mrb[0].mxu0
      %v771 = vadd.f32 0.0, %v770
      %v772 = vpop.f32.mrb[0].mxu0
      %v773 = vpop.f32.mrb[0].mxu0
      %v774 = vadd.f32 0.0, %v773
      %v775 = vpop.f32.mrb[0].mxu0
      %776 = vmatprep.mubr.bf16.mxu0 0
      %777 = vmatmul.mubr.bf16.gmra.mrb[0].mxu0 %v491
      %v778 = vpop.f32.mrb[0].mxu0
      %v779 = vadd.f32 0.0, %v778
      %v780 = vpop.f32.mrb[0].mxu0
      %v781 = vpop.f32.mrb[0].mxu0
      %v782 = vadd.f32 0.0, %v781
      %v783 = vpop.f32.mrb[0].mxu0
      %784 = vmatprep.mubr.bf16.mxu0 0
      %785 = vmatmul.mubr.bf16.gmra.mrb[0].mxu0 %v492
      %v786 = vpop.f32.mrb[0].mxu0
      %v787 = vadd.f32 0.0, %v786
      %v788 = vpop.f32.mrb[0].mxu0
      %v789 = vpop.f32.mrb[0].mxu0
      %v790 = vadd.f32 0.0, %v789
      %v791 = vpop.f32.mrb[0].mxu0
      %792 = vmatprep.mubr.bf16.mxu0 0
      %793 = vmatmul.mubr.bf16.gmra.mrb[0].mxu0 %v493
      %v794 = vpop.f32.mrb[0].mxu0
      %v795 = vadd.f32 0.0, %v794
      %v796 = vpop.f32.mrb[0].mxu0
      %v797 = vpop.f32.mrb[0].mxu0
      %v798 = vadd.f32 0.0, %v797
      %v799 = vpop.f32.mrb[0].mxu0
      %800 = vmatprep.mubr.bf16.mxu0 0
      %801 = vmatmul.mubr.bf16.gmra.mrb[0].mxu0 %v494
      %v802 = vpop.f32.mrb[0].mxu0
      %v803 = vadd.f32 0.0, %v802
      %v804 = vpop.f32.mrb[0].mxu0
      %v805 = vpop.f32.mrb[0].mxu0
      %v806 = vadd.f32 0.0, %v805
      %v807 = vpop.f32.mrb[0].mxu0
      %808 = vmatprep.mubr.bf16.mxu0 0
      %809 = vmatmul.mubr.bf16.gmra.mrb[0].mxu0 %v495
      %v810 = vpop.f32.mrb[0].mxu0
      %v811 = vadd.f32 0.0, %v810
      %v812 = vpop.f32.mrb[0].mxu0
      %v813 = vpop.f32.mrb[0].mxu0
      %v814 = vadd.f32 0.0, %v813
      %v815 = vpop.f32.mrb[0].mxu0
      %816 = vmatprep.mubr.bf16.mxu0 0
      %817 = vmatmul.mubr.bf16.gmra.mrb[0].mxu0 %v496
      %v818 = vpop.f32.mrb[0].mxu0
      %v819 = vadd.f32 0.0, %v818
      %v820 = vpop.f32.mrb[0].mxu0
      %v821 = vpop.f32.mrb[0].mxu0
      %v822 = vadd.f32 0.0, %v821
      %v823 = vpop.f32.mrb[0].mxu0
      %824 = vmatprep.mubr.bf16.mxu0 0
      %825 = vmatmul.mubr.bf16.gmra.mrb[0].mxu0 %v497
      %v826 = vpop.f32.mrb[0].mxu0
      %v827 = vadd.f32 0.0, %v826
      %v828 = vpop.f32.mrb[0].mxu0
      %v829 = vpop.f32.mrb[0].mxu0
      %v830 = vadd.f32 0.0, %v829
      %v831 = vpop.f32.mrb[0].mxu0
      %832 = vmatprep.mubr.bf16.mxu0 0
      %833 = vmatmul.mubr.bf16.gmra.mrb[0].mxu0 %v498
      %v834 = vpop.f32.mrb[0].mxu0
      %v835 = vadd.f32 0.0, %v834
      %v836 = vpop.f32.mrb[0].mxu0
      %v837 = vpop.f32.mrb[0].mxu0
      %v838 = vadd.f32 0.0, %v837
      %v839 = vpop.f32.mrb[0].mxu0
      %840 = vmatprep.mubr.bf16.mxu0 0
      %841 = vmatmul.mubr.bf16.gmra.mrb[0].mxu0 %v499
      %v842 = vpop.f32.mrb[0].mxu0
      %v843 = vadd.f32 0.0, %v842
      %v844 = vpop.f32.mrb[0].mxu0
      %v845 = vpop.f32.mrb[0].mxu0
      %v846 = vadd.f32 0.0, %v845
      %v847 = vpop.f32.mrb[0].mxu0
      %848 = vmatprep.mubr.bf16.mxu0 0
      %849 = vmatmul.mubr.bf16.gmra.mrb[0].mxu0 %v500
      %v850 = vpop.f32.mrb[0].mxu0
      %v851 = vadd.f32 0.0, %v850
      %v852 = vpop.f32.mrb[0].mxu0
      %v853 = vpop.f32.mrb[0].mxu0
      %v854 = vadd.f32 0.0, %v853
      %v855 = vpop.f32.mrb[0].mxu0
      %856 = vdwg.mxu0
      %v873 = vunpack.c.l.b16 %v615
      %v874 = vunpack.c.l.b16 %v616
      %v875 = vunpack.c.l.b16 %v617
      %v876 = vunpack.c.l.b16 %v618
      %v877 = vunpack.c.l.b16 %v619
      %v878 = vunpack.c.l.b16 %v620
      %v879 = vunpack.c.l.b16 %v621
      %v880 = vunpack.c.l.b16 %v622
      %v881 = vunpack.c.l.b16 %v623
      %v882 = vunpack.c.l.b16 %v624
      %v883 = vunpack.c.l.b16 %v625
      %v884 = vunpack.c.l.b16 %v626
      %v885 = vunpack.c.l.b16 %v627
      %v886 = vunpack.c.l.b16 %v628
      %v887 = vunpack.c.l.b16 %v629
      %v888 = vunpack.c.l.b16 %v630
      %v889 = vpack.c.b16 %v874, %v873
      %v890 = vpack.c.b16 %v876, %v875
      %v891 = vpack.c.b16 %v878, %v877
      %v892 = vpack.c.b16 %v880, %v879
      %v893 = vpack.c.b16 %v882, %v881
      %v894 = vpack.c.b16 %v884, %v883
      %v895 = vpack.c.b16 %v886, %v885
      %v896 = vpack.c.b16 %v888, %v887
      %905 = vmatprep.subr.bf16.mxu0 0
      %906 = vmatpush1.bf16.msra.mxu0 %v889
      %907 = vmatprep.subr.bf16.mxu0 0
      %908 = vmatpush1.bf16.msra.mxu0 %v890
      %909 = vmatprep.subr.bf16.mxu0 0
      %910 = vmatpush1.bf16.msra.mxu0 %v891
      %911 = vmatprep.subr.bf16.mxu0 0
      %912 = vmatpush1.bf16.msra.mxu0 %v892
      %913 = vmatprep.subr.bf16.mxu0 0
      %914 = vmatpush1.bf16.msra.mxu0 %v893
      %915 = vmatprep.subr.bf16.mxu0 0
      %916 = vmatpush1.bf16.msra.mxu0 %v894
      %917 = vmatprep.subr.bf16.mxu0 0
      %918 = vmatpush1.bf16.msra.mxu0 %v895
      %919 = vmatprep.subr.bf16.mxu0 0
      %920 = vmatpush1.bf16.msra.mxu0 %v896
      %921 = vmatprep.subr.bf16.mxu0 0
      %922 = vmatpush1.bf16.msra.mxu0 0
      %923 = vmatprep.subr.bf16.mxu0 0
      %924 = vmatpush1.bf16.msra.mxu0 0
      %925 = vmatprep.subr.bf16.mxu0 0
      %926 = vmatpush1.bf16.msra.mxu0 0
      %927 = vmatprep.subr.bf16.mxu0 0
      %928 = vmatpush1.bf16.msra.mxu0 0
      %929 = vmatprep.subr.bf16.mxu0 0
      %930 = vmatpush1.bf16.msra.mxu0 0
      %931 = vmatprep.subr.bf16.mxu0 0
      %932 = vmatpush1.bf16.msra.mxu0 0
      %933 = vmatprep.subr.bf16.mxu0 0
      %934 = vmatpush1.bf16.msra.mxu0 0
      %935 = vmatprep.subr.bf16.mxu0 0
      %936 = vmatpush1.bf16.msra.mxu0 0
      %937 = vmatprep.mubr.bf16.mxu0 0
      %938 = vmatmul.mubr.bf16.gmra.mrb[0].mxu0 0
      %v939 = vpop.f32.mrb[0].mxu0
      %v940 = vadd.f32 %v731, %v939
      %v941 = vpop.f32.mrb[0].mxu0
      %v942 = vpop.f32.mrb[0].mxu0
      %v943 = vadd.f32 %v734, %v942
      %v944 = vpop.f32.mrb[0].mxu0
      %945 = vmatprep.mubr.bf16.mxu0 0
      %946 = vmatmul.mubr.bf16.gmra.mrb[0].mxu0 %v470
      %v947 = vpop.f32.mrb[0].mxu0
      %v948 = vadd.f32 %v739, %v947
      %v949 = vpop.f32.mrb[0].mxu0
      %v950 = vpop.f32.mrb[0].mxu0
      %v951 = vadd.f32 %v742, %v950
      %v952 = vpop.f32.mrb[0].mxu0
      %953 = vmatprep.mubr.bf16.mxu0 0
      %954 = vmatmul.mubr.bf16.gmra.mrb[0].mxu0 %v471
      %v955 = vpop.f32.mrb[0].mxu0
      %v956 = vadd.f32 %v747, %v955
      %v957 = vpop.f32.mrb[0].mxu0
      %v958 = vpop.f32.mrb[0].mxu0
      %v959 = vadd.f32 %v750, %v958
      %v960 = vpop.f32.mrb[0].mxu0
      %961 = vmatprep.mubr.bf16.mxu0 0
      %962 = vmatmul.mubr.bf16.gmra.mrb[0].mxu0 %v472
      %v963 = vpop.f32.mrb[0].mxu0
      %v964 = vadd.f32 %v755, %v963
      %v965 = vpop.f32.mrb[0].mxu0
      %v966 = vpop.f32.mrb[0].mxu0
      %v967 = vadd.f32 %v758, %v966
      %v968 = vpop.f32.mrb[0].mxu0
      %969 = vmatprep.mubr.bf16.mxu0 0
      %970 = vmatmul.mubr.bf16.gmra.mrb[0].mxu0 %v473
      %v971 = vpop.f32.mrb[0].mxu0
      %v972 = vadd.f32 %v763, %v971
      %v973 = vpop.f32.mrb[0].mxu0
      %v974 = vpop.f32.mrb[0].mxu0
      %v975 = vadd.f32 %v766, %v974
      %v976 = vpop.f32.mrb[0].mxu0
      %977 = vmatprep.mubr.bf16.mxu0 0
      %978 = vmatmul.mubr.bf16.gmra.mrb[0].mxu0 %v474
      %v979 = vpop.f32.mrb[0].mxu0
      %v980 = vadd.f32 %v771, %v979
      %v981 = vpop.f32.mrb[0].mxu0
      %v982 = vpop.f32.mrb[0].mxu0
      %v983 = vadd.f32 %v774, %v982
      %v984 = vpop.f32.mrb[0].mxu0
      %985 = vmatprep.mubr.bf16.mxu0 0
      %986 = vmatmul.mubr.bf16.gmra.mrb[0].mxu0 %v475
      %v987 = vpop.f32.mrb[0].mxu0
      %v988 = vadd.f32 %v779, %v987
      %v989 = vpop.f32.mrb[0].mxu0
      %v990 = vpop.f32.mrb[0].mxu0
      %v991 = vadd.f32 %v782, %v990
      %v992 = vpop.f32.mrb[0].mxu0
      %993 = vmatprep.mubr.bf16.mxu0 0
      %994 = vmatmul.mubr.bf16.gmra.mrb[0].mxu0 %v476
      %v995 = vpop.f32.mrb[0].mxu0
      %v996 = vadd.f32 %v787, %v995
      %v997 = vpop.f32.mrb[0].mxu0
      %v998 = vpop.f32.mrb[0].mxu0
      %v999 = vadd.f32 %v790, %v998
      %v1000 = vpop.f32.mrb[0].mxu0
      %1001 = vmatprep.mubr.bf16.mxu0 0
      %1002 = vmatmul.mubr.bf16.gmra.mrb[0].mxu0 %v477
      %v1003 = vpop.f32.mrb[0].mxu0
      %v1004 = vadd.f32 %v795, %v1003
      %v1005 = vpop.f32.mrb[0].mxu0
      %v1006 = vpop.f32.mrb[0].mxu0
      %v1007 = vadd.f32 %v798, %v1006
      %v1008 = vpop.f32.mrb[0].mxu0
      %1009 = vmatprep.mubr.bf16.mxu0 0
      %1010 = vmatmul.mubr.bf16.gmra.mrb[0].mxu0 %v478
      %v1011 = vpop.f32.mrb[0].mxu0
      %v1012 = vadd.f32 %v803, %v1011
      %v1013 = vpop.f32.mrb[0].mxu0
      %v1014 = vpop.f32.mrb[0].mxu0
      %v1015 = vadd.f32 %v806, %v1014
      %v1016 = vpop.f32.mrb[0].mxu0
      %1017 = vmatprep.mubr.bf16.mxu0 0
      %1018 = vmatmul.mubr.bf16.gmra.mrb[0].mxu0 %v479
      %v1019 = vpop.f32.mrb[0].mxu0
      %v1020 = vadd.f32 %v811, %v1019
      %v1021 = vpop.f32.mrb[0].mxu0
      %v1022 = vpop.f32.mrb[0].mxu0
      %v1023 = vadd.f32 %v814, %v1022
      %v1024 = vpop.f32.mrb[0].mxu0
      %1025 = vmatprep.mubr.bf16.mxu0 0
      %1026 = vmatmul.mubr.bf16.gmra.mrb[0].mxu0 %v480
      %v1027 = vpop.f32.mrb[0].mxu0
      %v1028 = vadd.f32 %v819, %v1027
      %v1029 = vpop.f32.mrb[0].mxu0
      %v1030 = vpop.f32.mrb[0].mxu0
      %v1031 = vadd.f32 %v822, %v1030
      %v1032 = vpop.f32.mrb[0].mxu0
      %1033 = vmatprep.mubr.bf16.mxu0 0
      %1034 = vmatmul.mubr.bf16.gmra.mrb[0].mxu0 %v481
      %v1035 = vpop.f32.mrb[0].mxu0
      %v1036 = vadd.f32 %v827, %v1035
      %v1037 = vpop.f32.mrb[0].mxu0
      %v1038 = vpop.f32.mrb[0].mxu0
      %v1039 = vadd.f32 %v830, %v1038
      %v1040 = vpop.f32.mrb[0].mxu0
      %1041 = vmatprep.mubr.bf16.mxu0 0
      %1042 = vmatmul.mubr.bf16.gmra.mrb[0].mxu0 %v482
      %v1043 = vpop.f32.mrb[0].mxu0
      %v1044 = vadd.f32 %v835, %v1043
      %v1045 = vpop.f32.mrb[0].mxu0
      %v1046 = vpop.f32.mrb[0].mxu0
      %v1047 = vadd.f32 %v838, %v1046
      %v1048 = vpop.f32.mrb[0].mxu0
      %1049 = vmatprep.mubr.bf16.mxu0 0
      %1050 = vmatmul.mubr.bf16.gmra.mrb[0].mxu0 %v483
      %v1051 = vpop.f32.mrb[0].mxu0
      %v1052 = vadd.f32 %v843, %v1051
      %v1053 = vpop.f32.mrb[0].mxu0
      %v1054 = vpop.f32.mrb[0].mxu0
      %v1055 = vadd.f32 %v846, %v1054
      %v1056 = vpop.f32.mrb[0].mxu0
      %1057 = vmatprep.mubr.bf16.mxu0 0
      %1058 = vmatmul.mubr.bf16.gmra.mrb[0].mxu0 %v484
      %v1059 = vpop.f32.mrb[0].mxu0
      %v1060 = vadd.f32 %v851, %v1059
      %v1061 = vpop.f32.mrb[0].mxu0
      %v1062 = vpop.f32.mrb[0].mxu0
      %v1063 = vadd.f32 %v854, %v1062
      %v1064 = vpop.f32.mrb[0].mxu0
      %1065 = vdwg.mxu0
      %s1066 = scalar_lea.vmem %s3, 128
      %v1067 = vld [vmem:[%s1066] sm:$0xf]
      %v1068 = vld [vmem:[%s1066 + $0x4] sm:$0xf]
      %v1069 = vld [vmem:[%s1066 + $0x8] sm:$0xf]
      %v1070 = vld [vmem:[%s1066 + $0xc] sm:$0xf]
      %v1071 = vld [vmem:[%s1066 + $0x10] sm:$0xf]
      %v1072 = vld [vmem:[%s1066 + $0x14] sm:$0xf]
      %v1073 = vld [vmem:[%s1066 + $0x18] sm:$0xf]
      %v1074 = vld [vmem:[%s1066 + $0x1c] sm:$0xf]
      %v1075 = vld [vmem:[%s1066 + $0x20] sm:$0xf]
      %v1076 = vld [vmem:[%s1066 + $0x24] sm:$0xf]
      %v1077 = vld [vmem:[%s1066 + $0x28] sm:$0xf]
      %v1078 = vld [vmem:[%s1066 + $0x2c] sm:$0xf]
      %v1079 = vld [vmem:[%s1066 + $0x30] sm:$0xf]
      %v1080 = vld [vmem:[%s1066 + $0x34] sm:$0xf]
      %v1081 = vld [vmem:[%s1066 + $0x38] sm:$0xf]
      %v1082 = vld [vmem:[%s1066 + $0x3c] sm:$0xf]
      %v1099 = vunpack.c.l.b16 %v1067
      %v1100 = vunpack.c.l.b16 %v1068
      %v1101 = vunpack.c.l.b16 %v1069
      %v1102 = vunpack.c.l.b16 %v1070
      %v1103 = vunpack.c.l.b16 %v1071
      %v1104 = vunpack.c.l.b16 %v1072
      %v1105 = vunpack.c.l.b16 %v1073
      %v1106 = vunpack.c.l.b16 %v1074
      %v1107 = vunpack.c.l.b16 %v1075
      %v1108 = vunpack.c.l.b16 %v1076
      %v1109 = vunpack.c.l.b16 %v1077
      %v1110 = vunpack.c.l.b16 %v1078
      %v1111 = vunpack.c.l.b16 %v1079
      %v1112 = vunpack.c.l.b16 %v1080
      %v1113 = vunpack.c.l.b16 %v1081
      %v1114 = vunpack.c.l.b16 %v1082
      %v1115 = vpack.c.b16 %v1100, %v1099
      %v1116 = vpack.c.b16 %v1102, %v1101
      %v1117 = vpack.c.b16 %v1104, %v1103
      %v1118 = vpack.c.b16 %v1106, %v1105
      %v1119 = vpack.c.b16 %v1108, %v1107
      %v1120 = vpack.c.b16 %v1110, %v1109
      %v1121 = vpack.c.b16 %v1112, %v1111
      %v1122 = vpack.c.b16 %v1114, %v1113
      %1131 = vmatprep.subr.bf16.mxu0 0
      %1132 = vmatpush1.bf16.msra.mxu0 %v1115
      %1133 = vmatprep.subr.bf16.mxu0 0
      %1134 = vmatpush1.bf16.msra.mxu0 %v1116
      %1135 = vmatprep.subr.bf16.mxu0 0
      %1136 = vmatpush1.bf16.msra.mxu0 %v1117
      %1137 = vmatprep.subr.bf16.mxu0 0
      %1138 = vmatpush1.bf16.msra.mxu0 %v1118
      %1139 = vmatprep.subr.bf16.mxu0 0
      %1140 = vmatpush1.bf16.msra.mxu0 %v1119
      %1141 = vmatprep.subr.bf16.mxu0 0
      %1142 = vmatpush1.bf16.msra.mxu0 %v1120
      %1143 = vmatprep.subr.bf16.mxu0 0
      %1144 = vmatpush1.bf16.msra.mxu0 %v1121
      %1145 = vmatprep.subr.bf16.mxu0 0
      %1146 = vmatpush1.bf16.msra.mxu0 %v1122
      %1147 = vmatprep.subr.bf16.mxu0 0
      %1148 = vmatpush1.bf16.msra.mxu0 0
      %1149 = vmatprep.subr.bf16.mxu0 0
      %1150 = vmatpush1.bf16.msra.mxu0 0
      %1151 = vmatprep.subr.bf16.mxu0 0
      %1152 = vmatpush1.bf16.msra.mxu0 0
      %1153 = vmatprep.subr.bf16.mxu0 0
      %1154 = vmatpush1.bf16.msra.mxu0 0
      %1155 = vmatprep.subr.bf16.mxu0 0
      %1156 = vmatpush1.bf16.msra.mxu0 0
      %1157 = vmatprep.subr.bf16.mxu0 0
      %1158 = vmatpush1.bf16.msra.mxu0 0
      %1159 = vmatprep.subr.bf16.mxu0 0
      %1160 = vmatpush1.bf16.msra.mxu0 0
      %1161 = vmatprep.subr.bf16.mxu0 0
      %1162 = vmatpush1.bf16.msra.mxu0 0
      %1163 = vmatprep.mubr.bf16.mxu0 0
      %1164 = vmatmul.mubr.bf16.gmra.mrb[0].mxu0 0
      %v1165 = vpop.f32.mrb[0].mxu0
      %v1166 = vadd.f32 0.0, %v1165
      %v1167 = vpop.f32.mrb[0].mxu0
      %v1168 = vpop.f32.mrb[0].mxu0
      %v1169 = vadd.f32 0.0, %v1168
      %v1170 = vpop.f32.mrb[0].mxu0
      %1171 = vmatprep.mubr.bf16.mxu0 0
      %1172 = vmatmul.mubr.bf16.gmra.mrb[0].mxu0 %v599
      %v1173 = vpop.f32.mrb[0].mxu0
      %v1174 = vadd.f32 0.0, %v1173
      %v1175 = vpop.f32.mrb[0].mxu0
      %v1176 = vpop.f32.mrb[0].mxu0
      %v1177 = vadd.f32 0.0, %v1176
      %v1178 = vpop.f32.mrb[0].mxu0
      %1179 = vmatprep.mubr.bf16.mxu0 0
      %1180 = vmatmul.mubr.bf16.gmra.mrb[0].mxu0 %v600
      %v1181 = vpop.f32.mrb[0].mxu0
      %v1182 = vadd.f32 0.0, %v1181
      %v1183 = vpop.f32.mrb[0].mxu0
      %v1184 = vpop.f32.mrb[0].mxu0
      %v1185 = vadd.f32 0.0, %v1184
      %v1186 = vpop.f32.mrb[0].mxu0
      %1187 = vmatprep.mubr.bf16.mxu0 0
      %1188 = vmatmul.mubr.bf16.gmra.mrb[0].mxu0 %v601
      %v1189 = vpop.f32.mrb[0].mxu0
      %v1190 = vadd.f32 0.0, %v1189
      %v1191 = vpop.f32.mrb[0].mxu0
      %v1192 = vpop.f32.mrb[0].mxu0
      %v1193 = vadd.f32 0.0, %v1192
      %v1194 = vpop.f32.mrb[0].mxu0
      %1195 = vmatprep.mubr.bf16.mxu0 0
      %1196 = vmatmul.mubr.bf16.gmra.mrb[0].mxu0 %v602
      %v1197 = vpop.f32.mrb[0].mxu0
      %v1198 = vadd.f32 0.0, %v1197
      %v1199 = vpop.f32.mrb[0].mxu0
      %v1200 = vpop.f32.mrb[0].mxu0
      %v1201 = vadd.f32 0.0, %v1200
      %v1202 = vpop.f32.mrb[0].mxu0
      %1203 = vmatprep.mubr.bf16.mxu0 0
      %1204 = vmatmul.mubr.bf16.gmra.mrb[0].mxu0 %v603
      %v1205 = vpop.f32.mrb[0].mxu0
      %v1206 = vadd.f32 0.0, %v1205
      %v1207 = vpop.f32.mrb[0].mxu0
      %v1208 = vpop.f32.mrb[0].mxu0
      %v1209 = vadd.f32 0.0, %v1208
      %v1210 = vpop.f32.mrb[0].mxu0
      %1211 = vmatprep.mubr.bf16.mxu0 0
      %1212 = vmatmul.mubr.bf16.gmra.mrb[0].mxu0 %v604
      %v1213 = vpop.f32.mrb[0].mxu0
      %v1214 = vadd.f32 0.0, %v1213
      %v1215 = vpop.f32.mrb[0].mxu0
      %v1216 = vpop.f32.mrb[0].mxu0
      %v1217 = vadd.f32 0.0, %v1216
      %v1218 = vpop.f32.mrb[0].mxu0
      %1219 = vmatprep.mubr.bf16.mxu0 0
      %1220 = vmatmul.mubr.bf16.gmra.mrb[0].mxu0 %v605
      %v1221 = vpop.f32.mrb[0].mxu0
      %v1222 = vadd.f32 0.0, %v1221
      %v1223 = vpop.f32.mrb[0].mxu0
      %v1224 = vpop.f32.mrb[0].mxu0
      %v1225 = vadd.f32 0.0, %v1224
      %v1226 = vpop.f32.mrb[0].mxu0
      %1227 = vmatprep.mubr.bf16.mxu0 0
      %1228 = vmatmul.mubr.bf16.gmra.mrb[0].mxu0 %v606
      %v1229 = vpop.f32.mrb[0].mxu0
      %v1230 = vadd.f32 0.0, %v1229
      %v1231 = vpop.f32.mrb[0].mxu0
      %v1232 = vpop.f32.mrb[0].mxu0
      %v1233 = vadd.f32 0.0, %v1232
      %v1234 = vpop.f32.mrb[0].mxu0
      %1235 = vmatprep.mubr.bf16.mxu0 0
      %1236 = vmatmul.mubr.bf16.gmra.mrb[0].mxu0 %v607
      %v1237 = vpop.f32.mrb[0].mxu0
      %v1238 = vadd.f32 0.0, %v1237
      %v1239 = vpop.f32.mrb[0].mxu0
      %v1240 = vpop.f32.mrb[0].mxu0
      %v1241 = vadd.f32 0.0, %v1240
      %v1242 = vpop.f32.mrb[0].mxu0
      %1243 = vmatprep.mubr.bf16.mxu0 0
      %1244 = vmatmul.mubr.bf16.gmra.mrb[0].mxu0 %v608
      %v1245 = vpop.f32.mrb[0].mxu0
      %v1246 = vadd.f32 0.0, %v1245
      %v1247 = vpop.f32.mrb[0].mxu0
      %v1248 = vpop.f32.mrb[0].mxu0
      %v1249 = vadd.f32 0.0, %v1248
      %v1250 = vpop.f32.mrb[0].mxu0
      %1251 = vmatprep.mubr.bf16.mxu0 0
      %1252 = vmatmul.mubr.bf16.gmra.mrb[0].mxu0 %v609
      %v1253 = vpop.f32.mrb[0].mxu0
      %v1254 = vadd.f32 0.0, %v1253
      %v1255 = vpop.f32.mrb[0].mxu0
      %v1256 = vpop.f32.mrb[0].mxu0
      %v1257 = vadd.f32 0.0, %v1256
      %v1258 = vpop.f32.mrb[0].mxu0
      %1259 = vmatprep.mubr.bf16.mxu0 0
      %1260 = vmatmul.mubr.bf16.gmra.mrb[0].mxu0 %v610
      %v1261 = vpop.f32.mrb[0].mxu0
      %v1262 = vadd.f32 0.0, %v1261
      %v1263 = vpop.f32.mrb[0].mxu0
      %v1264 = vpop.f32.mrb[0].mxu0
      %v1265 = vadd.f32 0.0, %v1264
      %v1266 = vpop.f32.mrb[0].mxu0
      %1267 = vmatprep.mubr.bf16.mxu0 0
      %1268 = vmatmul.mubr.bf16.gmra.mrb[0].mxu0 %v611
      %v1269 = vpop.f32.mrb[0].mxu0
      %v1270 = vadd.f32 0.0, %v1269
      %v1271 = vpop.f32.mrb[0].mxu0
      %v1272 = vpop.f32.mrb[0].mxu0
      %v1273 = vadd.f32 0.0, %v1272
      %v1274 = vpop.f32.mrb[0].mxu0
      %1275 = vmatprep.mubr.bf16.mxu0 0
      %1276 = vmatmul.mubr.bf16.gmra.mrb[0].mxu0 %v612
      %v1277 = vpop.f32.mrb[0].mxu0
      %v1278 = vadd.f32 0.0, %v1277
      %v1279 = vpop.f32.mrb[0].mxu0
      %v1280 = vpop.f32.mrb[0].mxu0
      %v1281 = vadd.f32 0.0, %v1280
      %v1282 = vpop.f32.mrb[0].mxu0
      %1283 = vmatprep.mubr.bf16.mxu0 0
      %1284 = vmatmul.mubr.bf16.gmra.mrb[0].mxu0 %v613
      %v1285 = vpop.f32.mrb[0].mxu0
      %v1286 = vadd.f32 0.0, %v1285
      %v1287 = vpop.f32.mrb[0].mxu0
      %v1288 = vpop.f32.mrb[0].mxu0
      %v1289 = vadd.f32 0.0, %v1288
      %v1290 = vpop.f32.mrb[0].mxu0
      %1291 = vdwg.mxu0
      %v1292 = vadd.f32 %v940, %v1166
      %v1293 = vadd.f32 %v943, %v1169
      %v1294 = vadd.f32 %v948, %v1174
      %v1295 = vadd.f32 %v951, %v1177
      %v1296 = vadd.f32 %v956, %v1182
      %v1297 = vadd.f32 %v959, %v1185
      %v1298 = vadd.f32 %v964, %v1190
      %v1299 = vadd.f32 %v967, %v1193
      %v1300 = vadd.f32 %v972, %v1198
      %v1301 = vadd.f32 %v975, %v1201
      %v1302 = vadd.f32 %v980, %v1206
      %v1303 = vadd.f32 %v983, %v1209
      %v1304 = vadd.f32 %v988, %v1214
      %v1305 = vadd.f32 %v991, %v1217
      %v1306 = vadd.f32 %v996, %v1222
      %v1307 = vadd.f32 %v999, %v1225
      %v1308 = vadd.f32 %v1004, %v1230
      %v1309 = vadd.f32 %v1007, %v1233
      %v1310 = vadd.f32 %v1012, %v1238
      %v1311 = vadd.f32 %v1015, %v1241
      %v1312 = vadd.f32 %v1020, %v1246
      %v1313 = vadd.f32 %v1023, %v1249
      %v1314 = vadd.f32 %v1028, %v1254
      %v1315 = vadd.f32 %v1031, %v1257
      %v1316 = vadd.f32 %v1036, %v1262
      %v1317 = vadd.f32 %v1039, %v1265
      %v1318 = vadd.f32 %v1044, %v1270
      %v1319 = vadd.f32 %v1047, %v1273
      %v1320 = vadd.f32 %v1052, %v1278
      %v1321 = vadd.f32 %v1055, %v1281
      %v1322 = vadd.f32 %v1060, %v1286
      %v1323 = vadd.f32 %v1063, %v1289
      %s1324 = scalar_lea.vmem %s3, 192
      %v1325 = vld [vmem:[%s1324] sm:$0xf]
      %v1326 = vld [vmem:[%s1324 + $0x4] sm:$0xf]
      %v1327 = vld [vmem:[%s1324 + $0x8] sm:$0xf]
      %v1328 = vld [vmem:[%s1324 + $0xc] sm:$0xf]
      %v1329 = vld [vmem:[%s1324 + $0x10] sm:$0xf]
      %v1330 = vld [vmem:[%s1324 + $0x14] sm:$0xf]
      %v1331 = vld [vmem:[%s1324 + $0x18] sm:$0xf]
      %v1332 = vld [vmem:[%s1324 + $0x1c] sm:$0xf]
      %v1333 = vld [vmem:[%s1324 + $0x20] sm:$0xf]
      %v1334 = vld [vmem:[%s1324 + $0x24] sm:$0xf]
      %v1335 = vld [vmem:[%s1324 + $0x28] sm:$0xf]
      %v1336 = vld [vmem:[%s1324 + $0x2c] sm:$0xf]
      %v1337 = vld [vmem:[%s1324 + $0x30] sm:$0xf]
      %v1338 = vld [vmem:[%s1324 + $0x34] sm:$0xf]
      %v1339 = vld [vmem:[%s1324 + $0x38] sm:$0xf]
      %v1340 = vld [vmem:[%s1324 + $0x3c] sm:$0xf]
      %v1357 = vunpack.c.l.b16 %v1325
      %v1358 = vunpack.c.l.b16 %v1326
      %v1359 = vunpack.c.l.b16 %v1327
      %v1360 = vunpack.c.l.b16 %v1328
      %v1361 = vunpack.c.l.b16 %v1329
      %v1362 = vunpack.c.l.b16 %v1330
      %v1363 = vunpack.c.l.b16 %v1331
      %v1364 = vunpack.c.l.b16 %v1332
      %v1365 = vunpack.c.l.b16 %v1333
      %v1366 = vunpack.c.l.b16 %v1334
      %v1367 = vunpack.c.l.b16 %v1335
      %v1368 = vunpack.c.l.b16 %v1336
      %v1369 = vunpack.c.l.b16 %v1337
      %v1370 = vunpack.c.l.b16 %v1338
      %v1371 = vunpack.c.l.b16 %v1339
      %v1372 = vunpack.c.l.b16 %v1340
      %v1373 = vpack.c.b16 %v1358, %v1357
      %v1374 = vpack.c.b16 %v1360, %v1359
      %v1375 = vpack.c.b16 %v1362, %v1361
      %v1376 = vpack.c.b16 %v1364, %v1363
      %v1377 = vpack.c.b16 %v1366, %v1365
      %v1378 = vpack.c.b16 %v1368, %v1367
      %v1379 = vpack.c.b16 %v1370, %v1369
      %v1380 = vpack.c.b16 %v1372, %v1371
      %1389 = vmatprep.subr.bf16.mxu0 0
      %1390 = vmatpush1.bf16.msra.mxu0 %v1373
      %1391 = vmatprep.subr.bf16.mxu0 0
      %1392 = vmatpush1.bf16.msra.mxu0 %v1374
      %1393 = vmatprep.subr.bf16.mxu0 0
      %1394 = vmatpush1.bf16.msra.mxu0 %v1375
      %1395 = vmatprep.subr.bf16.mxu0 0
      %1396 = vmatpush1.bf16.msra.mxu0 %v1376
      %1397 = vmatprep.subr.bf16.mxu0 0
      %1398 = vmatpush1.bf16.msra.mxu0 %v1377
      %1399 = vmatprep.subr.bf16.mxu0 0
      %1400 = vmatpush1.bf16.msra.mxu0 %v1378
      %1401 = vmatprep.subr.bf16.mxu0 0
      %1402 = vmatpush1.bf16.msra.mxu0 %v1379
      %1403 = vmatprep.subr.bf16.mxu0 0
      %1404 = vmatpush1.bf16.msra.mxu0 %v1380
      %1405 = vmatprep.subr.bf16.mxu0 0
      %1406 = vmatpush1.bf16.msra.mxu0 0
      %1407 = vmatprep.subr.bf16.mxu0 0
      %1408 = vmatpush1.bf16.msra.mxu0 0
      %1409 = vmatprep.subr.bf16.mxu0 0
      %1410 = vmatpush1.bf16.msra.mxu0 0
      %1411 = vmatprep.subr.bf16.mxu0 0
      %1412 = vmatpush1.bf16.msra.mxu0 0
      %1413 = vmatprep.subr.bf16.mxu0 0
      %1414 = vmatpush1.bf16.msra.mxu0 0
      %1415 = vmatprep.subr.bf16.mxu0 0
      %1416 = vmatpush1.bf16.msra.mxu0 0
      %1417 = vmatprep.subr.bf16.mxu0 0
      %1418 = vmatpush1.bf16.msra.mxu0 0
      %1419 = vmatprep.subr.bf16.mxu0 0
      %1420 = vmatpush1.bf16.msra.mxu0 0
      %1421 = vmatprep.mubr.bf16.mxu0 0
      %1422 = vmatmul.mubr.bf16.gmra.mrb[0].mxu0 %v470
      %v1423 = vpop.f32.mrb[0].mxu0
      %v1424 = vadd.f32 0.0, %v1423
      %v1425 = vpop.f32.mrb[0].mxu0
      %v1426 = vpop.f32.mrb[0].mxu0
      %v1427 = vadd.f32 0.0, %v1426
      %v1428 = vpop.f32.mrb[0].mxu0
      %1429 = vmatprep.mubr.bf16.mxu0 0
      %1430 = vmatmul.mubr.bf16.gmra.mrb[0].mxu0 %v471
      %v1431 = vpop.f32.mrb[0].mxu0
      %v1432 = vadd.f32 0.0, %v1431
      %v1433 = vpop.f32.mrb[0].mxu0
      %v1434 = vpop.f32.mrb[0].mxu0
      %v1435 = vadd.f32 0.0, %v1434
      %v1436 = vpop.f32.mrb[0].mxu0
      %1437 = vmatprep.mubr.bf16.mxu0 0
      %1438 = vmatmul.mubr.bf16.gmra.mrb[0].mxu0 %v472
      %v1439 = vpop.f32.mrb[0].mxu0
      %v1440 = vadd.f32 0.0, %v1439
      %v1441 = vpop.f32.mrb[0].mxu0
      %v1442 = vpop.f32.mrb[0].mxu0
      %v1443 = vadd.f32 0.0, %v1442
      %v1444 = vpop.f32.mrb[0].mxu0
      %1445 = vmatprep.mubr.bf16.mxu0 0
      %1446 = vmatmul.mubr.bf16.gmra.mrb[0].mxu0 %v473
      %v1447 = vpop.f32.mrb[0].mxu0
      %v1448 = vadd.f32 0.0, %v1447
      %v1449 = vpop.f32.mrb[0].mxu0
      %v1450 = vpop.f32.mrb[0].mxu0
      %v1451 = vadd.f32 0.0, %v1450
      %v1452 = vpop.f32.mrb[0].mxu0
      %1453 = vmatprep.mubr.bf16.mxu0 0
      %1454 = vmatmul.mubr.bf16.gmra.mrb[0].mxu0 %v474
      %v1455 = vpop.f32.mrb[0].mxu0
      %v1456 = vadd.f32 0.0, %v1455
      %v1457 = vpop.f32.mrb[0].mxu0
      %v1458 = vpop.f32.mrb[0].mxu0
      %v1459 = vadd.f32 0.0, %v1458
      %v1460 = vpop.f32.mrb[0].mxu0
      %1461 = vmatprep.mubr.bf16.mxu0 0
      %1462 = vmatmul.mubr.bf16.gmra.mrb[0].mxu0 %v475
      %v1463 = vpop.f32.mrb[0].mxu0
      %v1464 = vadd.f32 0.0, %v1463
      %v1465 = vpop.f32.mrb[0].mxu0
      %v1466 = vpop.f32.mrb[0].mxu0
      %v1467 = vadd.f32 0.0, %v1466
      %v1468 = vpop.f32.mrb[0].mxu0
      %1469 = vmatprep.mubr.bf16.mxu0 0
      %1470 = vmatmul.mubr.bf16.gmra.mrb[0].mxu0 %v476
      %v1471 = vpop.f32.mrb[0].mxu0
      %v1472 = vadd.f32 0.0, %v1471
      %v1473 = vpop.f32.mrb[0].mxu0
      %v1474 = vpop.f32.mrb[0].mxu0
      %v1475 = vadd.f32 0.0, %v1474
      %v1476 = vpop.f32.mrb[0].mxu0
      %1477 = vmatprep.mubr.bf16.mxu0 0
      %1478 = vmatmul.mubr.bf16.gmra.mrb[0].mxu0 %v477
      %v1479 = vpop.f32.mrb[0].mxu0
      %v1480 = vadd.f32 0.0, %v1479
      %v1481 = vpop.f32.mrb[0].mxu0
      %v1482 = vpop.f32.mrb[0].mxu0
      %v1483 = vadd.f32 0.0, %v1482
      %v1484 = vpop.f32.mrb[0].mxu0
      %1485 = vmatprep.mubr.bf16.mxu0 0
      %1486 = vmatmul.mubr.bf16.gmra.mrb[0].mxu0 %v478
      %v1487 = vpop.f32.mrb[0].mxu0
      %v1488 = vadd.f32 0.0, %v1487
      %v1489 = vpop.f32.mrb[0].mxu0
      %v1490 = vpop.f32.mrb[0].mxu0
      %v1491 = vadd.f32 0.0, %v1490
      %v1492 = vpop.f32.mrb[0].mxu0
      %1493 = vmatprep.mubr.bf16.mxu0 0
      %1494 = vmatmul.mubr.bf16.gmra.mrb[0].mxu0 %v479
      %v1495 = vpop.f32.mrb[0].mxu0
      %v1496 = vadd.f32 0.0, %v1495
      %v1497 = vpop.f32.mrb[0].mxu0
      %v1498 = vpop.f32.mrb[0].mxu0
      %v1499 = vadd.f32 0.0, %v1498
      %v1500 = vpop.f32.mrb[0].mxu0
      %1501 = vmatprep.mubr.bf16.mxu0 0
      %1502 = vmatmul.mubr.bf16.gmra.mrb[0].mxu0 %v480
      %v1503 = vpop.f32.mrb[0].mxu0
      %v1504 = vadd.f32 0.0, %v1503
      %v1505 = vpop.f32.mrb[0].mxu0
      %v1506 = vpop.f32.mrb[0].mxu0
      %v1507 = vadd.f32 0.0, %v1506
      %v1508 = vpop.f32.mrb[0].mxu0
      %1509 = vmatprep.mubr.bf16.mxu0 0
      %1510 = vmatmul.mubr.bf16.gmra.mrb[0].mxu0 %v481
      %v1511 = vpop.f32.mrb[0].mxu0
      %v1512 = vadd.f32 0.0, %v1511
      %v1513 = vpop.f32.mrb[0].mxu0
      %v1514 = vpop.f32.mrb[0].mxu0
      %v1515 = vadd.f32 0.0, %v1514
      %v1516 = vpop.f32.mrb[0].mxu0
      %1517 = vmatprep.mubr.bf16.mxu0 0
      %1518 = vmatmul.mubr.bf16.gmra.mrb[0].mxu0 %v482
      %v1519 = vpop.f32.mrb[0].mxu0
      %v1520 = vadd.f32 0.0, %v1519
      %v1521 = vpop.f32.mrb[0].mxu0
      %v1522 = vpop.f32.mrb[0].mxu0
      %v1523 = vadd.f32 0.0, %v1522
      %v1524 = vpop.f32.mrb[0].mxu0
      %1525 = vmatprep.mubr.bf16.mxu0 0
      %1526 = vmatmul.mubr.bf16.gmra.mrb[0].mxu0 %v483
      %v1527 = vpop.f32.mrb[0].mxu0
      %v1528 = vadd.f32 0.0, %v1527
      %v1529 = vpop.f32.mrb[0].mxu0
      %v1530 = vpop.f32.mrb[0].mxu0
      %v1531 = vadd.f32 0.0, %v1530
      %v1532 = vpop.f32.mrb[0].mxu0
      %1533 = vmatprep.mubr.bf16.mxu0 0
      %1534 = vmatmul.mubr.bf16.gmra.mrb[0].mxu0 %v484
      %v1535 = vpop.f32.mrb[0].mxu0
      %v1536 = vadd.f32 0.0, %v1535
      %v1537 = vpop.f32.mrb[0].mxu0
      %v1538 = vpop.f32.mrb[0].mxu0
      %v1539 = vadd.f32 0.0, %v1538
      %v1540 = vpop.f32.mrb[0].mxu0
      %1541 = vmatprep.mubr.bf16.mxu0 0
      %1542 = vmatmul.mubr.bf16.gmra.mrb[0].mxu0 %v485
      %v1543 = vpop.f32.mrb[0].mxu0
      %v1544 = vadd.f32 0.0, %v1543
      %v1545 = vpop.f32.mrb[0].mxu0
      %v1546 = vpop.f32.mrb[0].mxu0
      %v1547 = vadd.f32 0.0, %v1546
      %v1548 = vpop.f32.mrb[0].mxu0
      %1549 = vdwg.mxu0
      %v1550 = vadd.f32 %v1292, %v1424
      %v1551 = vadd.f32 %v1293, %v1427
      %v1552 = vadd.f32 %v1294, %v1432
      %v1553 = vadd.f32 %v1295, %v1435
      %v1554 = vadd.f32 %v1296, %v1440
      %v1555 = vadd.f32 %v1297, %v1443
      %v1556 = vadd.f32 %v1298, %v1448
      %v1557 = vadd.f32 %v1299, %v1451
      %v1558 = vadd.f32 %v1300, %v1456
      %v1559 = vadd.f32 %v1301, %v1459
      %v1560 = vadd.f32 %v1302, %v1464
      %v1561 = vadd.f32 %v1303, %v1467
      %v1562 = vadd.f32 %v1304, %v1472
      %v1563 = vadd.f32 %v1305, %v1475
      %v1564 = vadd.f32 %v1306, %v1480
      %v1565 = vadd.f32 %v1307, %v1483
      %v1566 = vadd.f32 %v1308, %v1488
      %v1567 = vadd.f32 %v1309, %v1491
      %v1568 = vadd.f32 %v1310, %v1496
      %v1569 = vadd.f32 %v1311, %v1499
      %v1570 = vadd.f32 %v1312, %v1504
      %v1571 = vadd.f32 %v1313, %v1507
      %v1572 = vadd.f32 %v1314, %v1512
      %v1573 = vadd.f32 %v1315, %v1515
      %v1574 = vadd.f32 %v1316, %v1520
      %v1575 = vadd.f32 %v1317, %v1523
      %v1576 = vadd.f32 %v1318, %v1528
      %v1577 = vadd.f32 %v1319, %v1531
      %v1578 = vadd.f32 %v1320, %v1536
      %v1579 = vadd.f32 %v1321, %v1539
      %v1580 = vadd.f32 %v1322, %v1544
      %v1581 = vadd.f32 %v1323, %v1547
      %s1582 = scalar_lea.vmem %s3, 256
      %v1583 = vld [vmem:[%s1582] sm:$0xf]
      %v1584 = vld [vmem:[%s1582 + $0x4] sm:$0xf]
      %v1585 = vld [vmem:[%s1582 + $0x8] sm:$0xf]
      %v1586 = vld [vmem:[%s1582 + $0xc] sm:$0xf]
      %v1587 = vld [vmem:[%s1582 + $0x10] sm:$0xf]
      %v1588 = vld [vmem:[%s1582 + $0x14] sm:$0xf]
      %v1589 = vld [vmem:[%s1582 + $0x18] sm:$0xf]
      %v1590 = vld [vmem:[%s1582 + $0x1c] sm:$0xf]
      %v1591 = vld [vmem:[%s1582 + $0x20] sm:$0xf]
      %v1592 = vld [vmem:[%s1582 + $0x24] sm:$0xf]
      %v1593 = vld [vmem:[%s1582 + $0x28] sm:$0xf]
      %v1594 = vld [vmem:[%s1582 + $0x2c] sm:$0xf]
      %v1595 = vld [vmem:[%s1582 + $0x30] sm:$0xf]
      %v1596 = vld [vmem:[%s1582 + $0x34] sm:$0xf]
      %v1597 = vld [vmem:[%s1582 + $0x38] sm:$0xf]
      %v1598 = vld [vmem:[%s1582 + $0x3c] sm:$0xf]
      %v1615 = vunpack.c.l.b16 %v1583
      %v1616 = vunpack.c.l.b16 %v1584
      %v1617 = vunpack.c.l.b16 %v1585
      %v1618 = vunpack.c.l.b16 %v1586
      %v1619 = vunpack.c.l.b16 %v1587
      %v1620 = vunpack.c.l.b16 %v1588
      %v1621 = vunpack.c.l.b16 %v1589
      %v1622 = vunpack.c.l.b16 %v1590
      %v1623 = vunpack.c.l.b16 %v1591
      %v1624 = vunpack.c.l.b16 %v1592
      %v1625 = vunpack.c.l.b16 %v1593
      %v1626 = vunpack.c.l.b16 %v1594
      %v1627 = vunpack.c.l.b16 %v1595
      %v1628 = vunpack.c.l.b16 %v1596
      %v1629 = vunpack.c.l.b16 %v1597
      %v1630 = vunpack.c.l.b16 %v1598
      %v1631 = vpack.c.b16 %v1616, %v1615
      %v1632 = vpack.c.b16 %v1618, %v1617
      %v1633 = vpack.c.b16 %v1620, %v1619
      %v1634 = vpack.c.b16 %v1622, %v1621
      %v1635 = vpack.c.b16 %v1624, %v1623
      %v1636 = vpack.c.b16 %v1626, %v1625
      %v1637 = vpack.c.b16 %v1628, %v1627
      %v1638 = vpack.c.b16 %v1630, %v1629
      %1647 = vmatprep.subr.bf16.mxu0 0
      %1648 = vmatpush1.bf16.msra.mxu0 %v1631
      %1649 = vmatprep.subr.bf16.mxu0 0
      %1650 = vmatpush1.bf16.msra.mxu0 %v1632
      %1651 = vmatprep.subr.bf16.mxu0 0
      %1652 = vmatpush1.bf16.msra.mxu0 %v1633
      %1653 = vmatprep.subr.bf16.mxu0 0
      %1654 = vmatpush1.bf16.msra.mxu0 %v1634
      %1655 = vmatprep.subr.bf16.mxu0 0
      %1656 = vmatpush1.bf16.msra.mxu0 %v1635
      %1657 = vmatprep.subr.bf16.mxu0 0
      %1658 = vmatpush1.bf16.msra.mxu0 %v1636
      %1659 = vmatprep.subr.bf16.mxu0 0
      %1660 = vmatpush1.bf16.msra.mxu0 %v1637
      %1661 = vmatprep.subr.bf16.mxu0 0
      %1662 = vmatpush1.bf16.msra.mxu0 %v1638
      %1663 = vmatprep.subr.bf16.mxu0 0
      %1664 = vmatpush1.bf16.msra.mxu0 0
      %1665 = vmatprep.subr.bf16.mxu0 0
      %1666 = vmatpush1.bf16.msra.mxu0 0
      %1667 = vmatprep.subr.bf16.mxu0 0
      %1668 = vmatpush1.bf16.msra.mxu0 0
      %1669 = vmatprep.subr.bf16.mxu0 0
      %1670 = vmatpush1.bf16.msra.mxu0 0
      %1671 = vmatprep.subr.bf16.mxu0 0
      %1672 = vmatpush1.bf16.msra.mxu0 0
      %1673 = vmatprep.subr.bf16.mxu0 0
      %1674 = vmatpush1.bf16.msra.mxu0 0
      %1675 = vmatprep.subr.bf16.mxu0 0
      %1676 = vmatpush1.bf16.msra.mxu0 0
      %1677 = vmatprep.subr.bf16.mxu0 0
      %1678 = vmatpush1.bf16.msra.mxu0 0
      %1679 = vmatprep.mubr.bf16.mxu0 0
      %1680 = vmatmul.mubr.bf16.gmra.mrb[0].mxu0 %v486
      %v1681 = vpop.f32.mrb[0].mxu0
      %v1682 = vadd.f32 0.0, %v1681
      %v1683 = vpop.f32.mrb[0].mxu0
      %v1684 = vpop.f32.mrb[0].mxu0
      %v1685 = vadd.f32 0.0, %v1684
      %v1686 = vpop.f32.mrb[0].mxu0
      %1687 = vmatprep.mubr.bf16.mxu0 0
      %1688 = vmatmul.mubr.bf16.gmra.mrb[0].mxu0 %v487
      %v1689 = vpop.f32.mrb[0].mxu0
      %v1690 = vadd.f32 0.0, %v1689
      %v1691 = vpop.f32.mrb[0].mxu0
      %v1692 = vpop.f32.mrb[0].mxu0
      %v1693 = vadd.f32 0.0, %v1692
      %v1694 = vpop.f32.mrb[0].mxu0
      %1695 = vmatprep.mubr.bf16.mxu0 0
      %1696 = vmatmul.mubr.bf16.gmra.mrb[0].mxu0 %v488
      %v1697 = vpop.f32.mrb[0].mxu0
      %v1698 = vadd.f32 0.0, %v1697
      %v1699 = vpop.f32.mrb[0].mxu0
      %v1700 = vpop.f32.mrb[0].mxu0
      %v1701 = vadd.f32 0.0, %v1700
      %v1702 = vpop.f32.mrb[0].mxu0
      %1703 = vmatprep.mubr.bf16.mxu0 0
      %1704 = vmatmul.mubr.bf16.gmra.mrb[0].mxu0 %v489
      %v1705 = vpop.f32.mrb[0].mxu0
      %v1706 = vadd.f32 0.0, %v1705
      %v1707 = vpop.f32.mrb[0].mxu0
      %v1708 = vpop.f32.mrb[0].mxu0
      %v1709 = vadd.f32 0.0, %v1708
      %v1710 = vpop.f32.mrb[0].mxu0
      %1711 = vmatprep.mubr.bf16.mxu0 0
      %1712 = vmatmul.mubr.bf16.gmra.mrb[0].mxu0 %v490
      %v1713 = vpop.f32.mrb[0].mxu0
      %v1714 = vadd.f32 0.0, %v1713
      %v1715 = vpop.f32.mrb[0].mxu0
      %v1716 = vpop.f32.mrb[0].mxu0
      %v1717 = vadd.f32 0.0, %v1716
      %v1718 = vpop.f32.mrb[0].mxu0
      %1719 = vmatprep.mubr.bf16.mxu0 0
      %1720 = vmatmul.mubr.bf16.gmra.mrb[0].mxu0 %v491
      %v1721 = vpop.f32.mrb[0].mxu0
      %v1722 = vadd.f32 0.0, %v1721
      %v1723 = vpop.f32.mrb[0].mxu0
      %v1724 = vpop.f32.mrb[0].mxu0
      %v1725 = vadd.f32 0.0, %v1724
      %v1726 = vpop.f32.mrb[0].mxu0
      %1727 = vmatprep.mubr.bf16.mxu0 0
      %1728 = vmatmul.mubr.bf16.gmra.mrb[0].mxu0 %v492
      %v1729 = vpop.f32.mrb[0].mxu0
      %v1730 = vadd.f32 0.0, %v1729
      %v1731 = vpop.f32.mrb[0].mxu0
      %v1732 = vpop.f32.mrb[0].mxu0
      %v1733 = vadd.f32 0.0, %v1732
      %v1734 = vpop.f32.mrb[0].mxu0
      %1735 = vmatprep.mubr.bf16.mxu0 0
      %1736 = vmatmul.mubr.bf16.gmra.mrb[0].mxu0 %v493
      %v1737 = vpop.f32.mrb[0].mxu0
      %v1738 = vadd.f32 0.0, %v1737
      %v1739 = vpop.f32.mrb[0].mxu0
      %v1740 = vpop.f32.mrb[0].mxu0
      %v1741 = vadd.f32 0.0, %v1740
      %v1742 = vpop.f32.mrb[0].mxu0
      %1743 = vmatprep.mubr.bf16.mxu0 0
      %1744 = vmatmul.mubr.bf16.gmra.mrb[0].mxu0 %v494
      %v1745 = vpop.f32.mrb[0].mxu0
      %v1746 = vadd.f32 0.0, %v1745
      %v1747 = vpop.f32.mrb[0].mxu0
      %v1748 = vpop.f32.mrb[0].mxu0
      %v1749 = vadd.f32 0.0, %v1748
      %v1750 = vpop.f32.mrb[0].mxu0
      %1751 = vmatprep.mubr.bf16.mxu0 0
      %1752 = vmatmul.mubr.bf16.gmra.mrb[0].mxu0 %v495
      %v1753 = vpop.f32.mrb[0].mxu0
      %v1754 = vadd.f32 0.0, %v1753
      %v1755 = vpop.f32.mrb[0].mxu0
      %v1756 = vpop.f32.mrb[0].mxu0
      %v1757 = vadd.f32 0.0, %v1756
      %v1758 = vpop.f32.mrb[0].mxu0
      %1759 = vmatprep.mubr.bf16.mxu0 0
      %1760 = vmatmul.mubr.bf16.gmra.mrb[0].mxu0 %v496
      %v1761 = vpop.f32.mrb[0].mxu0
      %v1762 = vadd.f32 0.0, %v1761
      %v1763 = vpop.f32.mrb[0].mxu0
      %v1764 = vpop.f32.mrb[0].mxu0
      %v1765 = vadd.f32 0.0, %v1764
      %v1766 = vpop.f32.mrb[0].mxu0
      %1767 = vmatprep.mubr.bf16.mxu0 0
      %1768 = vmatmul.mubr.bf16.gmra.mrb[0].mxu0 %v497
      %v1769 = vpop.f32.mrb[0].mxu0
      %v1770 = vadd.f32 0.0, %v1769
      %v1771 = vpop.f32.mrb[0].mxu0
      %v1772 = vpop.f32.mrb[0].mxu0
      %v1773 = vadd.f32 0.0, %v1772
      %v1774 = vpop.f32.mrb[0].mxu0
      %1775 = vmatprep.mubr.bf16.mxu0 0
      %1776 = vmatmul.mubr.bf16.gmra.mrb[0].mxu0 %v498
      %v1777 = vpop.f32.mrb[0].mxu0
      %v1778 = vadd.f32 0.0, %v1777
      %v1779 = vpop.f32.mrb[0].mxu0
      %v1780 = vpop.f32.mrb[0].mxu0
      %v1781 = vadd.f32 0.0, %v1780
      %v1782 = vpop.f32.mrb[0].mxu0
      %1783 = vmatprep.mubr.bf16.mxu0 0
      %1784 = vmatmul.mubr.bf16.gmra.mrb[0].mxu0 %v499
      %v1785 = vpop.f32.mrb[0].mxu0
      %v1786 = vadd.f32 0.0, %v1785
      %v1787 = vpop.f32.mrb[0].mxu0
      %v1788 = vpop.f32.mrb[0].mxu0
      %v1789 = vadd.f32 0.0, %v1788
      %v1790 = vpop.f32.mrb[0].mxu0
      %1791 = vmatprep.mubr.bf16.mxu0 0
      %1792 = vmatmul.mubr.bf16.gmra.mrb[0].mxu0 %v500
      %v1793 = vpop.f32.mrb[0].mxu0
      %v1794 = vadd.f32 0.0, %v1793
      %v1795 = vpop.f32.mrb[0].mxu0
      %v1796 = vpop.f32.mrb[0].mxu0
      %v1797 = vadd.f32 0.0, %v1796
      %v1798 = vpop.f32.mrb[0].mxu0
      %1799 = vmatprep.mubr.bf16.mxu0 0
      %1800 = vmatmul.mubr.bf16.gmra.mrb[0].mxu0 %v501
      %v1801 = vpop.f32.mrb[0].mxu0
      %v1802 = vadd.f32 0.0, %v1801
      %v1803 = vpop.f32.mrb[0].mxu0
      %v1804 = vpop.f32.mrb[0].mxu0
      %v1805 = vadd.f32 0.0, %v1804
      %v1806 = vpop.f32.mrb[0].mxu0
      %1807 = vdwg.mxu0
      %v1808 = vadd.f32 %v1550, %v1682
      %v1809 = vadd.f32 %v1551, %v1685
      %v1810 = vadd.f32 %v1552, %v1690
      %v1811 = vadd.f32 %v1553, %v1693
      %v1812 = vadd.f32 %v1554, %v1698
      %v1813 = vadd.f32 %v1555, %v1701
      %v1814 = vadd.f32 %v1556, %v1706
      %v1815 = vadd.f32 %v1557, %v1709
      %v1816 = vadd.f32 %v1558, %v1714
      %v1817 = vadd.f32 %v1559, %v1717
      %v1818 = vadd.f32 %v1560, %v1722
      %v1819 = vadd.f32 %v1561, %v1725
      %v1820 = vadd.f32 %v1562, %v1730
      %v1821 = vadd.f32 %v1563, %v1733
      %v1822 = vadd.f32 %v1564, %v1738
      %v1823 = vadd.f32 %v1565, %v1741
      %v1824 = vadd.f32 %v1566, %v1746
      %v1825 = vadd.f32 %v1567, %v1749
      %v1826 = vadd.f32 %v1568, %v1754
      %v1827 = vadd.f32 %v1569, %v1757
      %v1828 = vadd.f32 %v1570, %v1762
      %v1829 = vadd.f32 %v1571, %v1765
      %v1830 = vadd.f32 %v1572, %v1770
      %v1831 = vadd.f32 %v1573, %v1773
      %v1832 = vadd.f32 %v1574, %v1778
      %v1833 = vadd.f32 %v1575, %v1781
      %v1834 = vadd.f32 %v1576, %v1786
      %v1835 = vadd.f32 %v1577, %v1789
      %v1836 = vadd.f32 %v1578, %v1794
      %v1837 = vadd.f32 %v1579, %v1797
      %v1838 = vadd.f32 %v1580, %v1802
      %v1839 = vadd.f32 %v1581, %v1805
      %s1840 = scalar_lea.vmem %s3, 320
      %v1841 = vld [vmem:[%s1840] sm:$0xf]
      %v1842 = vld [vmem:[%s1840 + $0x4] sm:$0xf]
      %v1843 = vld [vmem:[%s1840 + $0x8] sm:$0xf]
      %v1844 = vld [vmem:[%s1840 + $0xc] sm:$0xf]
      %v1845 = vld [vmem:[%s1840 + $0x10] sm:$0xf]
      %v1846 = vld [vmem:[%s1840 + $0x14] sm:$0xf]
      %v1847 = vld [vmem:[%s1840 + $0x18] sm:$0xf]
      %v1848 = vld [vmem:[%s1840 + $0x1c] sm:$0xf]
      %v1849 = vld [vmem:[%s1840 + $0x20] sm:$0xf]
      %v1850 = vld [vmem:[%s1840 + $0x24] sm:$0xf]
      %v1851 = vld [vmem:[%s1840 + $0x28] sm:$0xf]
      %v1852 = vld [vmem:[%s1840 + $0x2c] sm:$0xf]
      %v1853 = vld [vmem:[%s1840 + $0x30] sm:$0xf]
      %v1854 = vld [vmem:[%s1840 + $0x34] sm:$0xf]
      %v1855 = vld [vmem:[%s1840 + $0x38] sm:$0xf]
      %v1856 = vld [vmem:[%s1840 + $0x3c] sm:$0xf]
      %v1873 = vunpack.c.l.b16 %v1841
      %v1874 = vunpack.c.l.b16 %v1842
      %v1875 = vunpack.c.l.b16 %v1843
      %v1876 = vunpack.c.l.b16 %v1844
      %v1877 = vunpack.c.l.b16 %v1845
      %v1878 = vunpack.c.l.b16 %v1846
      %v1879 = vunpack.c.l.b16 %v1847
      %v1880 = vunpack.c.l.b16 %v1848
      %v1881 = vunpack.c.l.b16 %v1849
      %v1882 = vunpack.c.l.b16 %v1850
      %v1883 = vunpack.c.l.b16 %v1851
      %v1884 = vunpack.c.l.b16 %v1852
      %v1885 = vunpack.c.l.b16 %v1853
      %v1886 = vunpack.c.l.b16 %v1854
      %v1887 = vunpack.c.l.b16 %v1855
      %v1888 = vunpack.c.l.b16 %v1856
      %v1889 = vpack.c.b16 %v1874, %v1873
      %v1890 = vpack.c.b16 %v1876, %v1875
      %v1891 = vpack.c.b16 %v1878, %v1877
      %v1892 = vpack.c.b16 %v1880, %v1879
      %v1893 = vpack.c.b16 %v1882, %v1881
      %v1894 = vpack.c.b16 %v1884, %v1883
      %v1895 = vpack.c.b16 %v1886, %v1885
      %v1896 = vpack.c.b16 %v1888, %v1887
      %1905 = vmatprep.subr.bf16.mxu0 0
      %1906 = vmatpush1.bf16.msra.mxu0 %v1889
      %1907 = vmatprep.subr.bf16.mxu0 0
      %1908 = vmatpush1.bf16.msra.mxu0 %v1890
      %1909 = vmatprep.subr.bf16.mxu0 0
      %1910 = vmatpush1.bf16.msra.mxu0 %v1891
      %1911 = vmatprep.subr.bf16.mxu0 0
      %1912 = vmatpush1.bf16.msra.mxu0 %v1892
      %1913 = vmatprep.subr.bf16.mxu0 0
      %1914 = vmatpush1.bf16.msra.mxu0 %v1893
      %1915 = vmatprep.subr.bf16.mxu0 0
      %1916 = vmatpush1.bf16.msra.mxu0 %v1894
      %1917 = vmatprep.subr.bf16.mxu0 0
      %1918 = vmatpush1.bf16.msra.mxu0 %v1895
      %1919 = vmatprep.subr.bf16.mxu0 0
      %1920 = vmatpush1.bf16.msra.mxu0 %v1896
      %1921 = vmatprep.subr.bf16.mxu0 0
      %1922 = vmatpush1.bf16.msra.mxu0 0
      %1923 = vmatprep.subr.bf16.mxu0 0
      %1924 = vmatpush1.bf16.msra.mxu0 0
      %1925 = vmatprep.subr.bf16.mxu0 0
      %1926 = vmatpush1.bf16.msra.mxu0 0
      %1927 = vmatprep.subr.bf16.mxu0 0
      %1928 = vmatpush1.bf16.msra.mxu0 0
      %1929 = vmatprep.subr.bf16.mxu0 0
      %1930 = vmatpush1.bf16.msra.mxu0 0
      %1931 = vmatprep.subr.bf16.mxu0 0
      %1932 = vmatpush1.bf16.msra.mxu0 0
      %1933 = vmatprep.subr.bf16.mxu0 0
      %1934 = vmatpush1.bf16.msra.mxu0 0
      %1935 = vmatprep.subr.bf16.mxu0 0
      %1936 = vmatpush1.bf16.msra.mxu0 0
      %1937 = vmatprep.mubr.bf16.mxu0 0
      %1938 = vmatmul.mubr.bf16.gmra.mrb[0].mxu0 %v599
      %v1939 = vpop.f32.mrb[0].mxu0
      %v1940 = vadd.f32 0.0, %v1939
      %v1941 = vpop.f32.mrb[0].mxu0
      %v1942 = vpop.f32.mrb[0].mxu0
      %v1943 = vadd.f32 0.0, %v1942
      %v1944 = vpop.f32.mrb[0].mxu0
      %1945 = vmatprep.mubr.bf16.mxu0 0
      %1946 = vmatmul.mubr.bf16.gmra.mrb[0].mxu0 %v600
      %v1947 = vpop.f32.mrb[0].mxu0
      %v1948 = vadd.f32 0.0, %v1947
      %v1949 = vpop.f32.mrb[0].mxu0
      %v1950 = vpop.f32.mrb[0].mxu0
      %v1951 = vadd.f32 0.0, %v1950
      %v1952 = vpop.f32.mrb[0].mxu0
      %1953 = vmatprep.mubr.bf16.mxu0 0
      %1954 = vmatmul.mubr.bf16.gmra.mrb[0].mxu0 %v601
      %v1955 = vpop.f32.mrb[0].mxu0
      %v1956 = vadd.f32 0.0, %v1955
      %v1957 = vpop.f32.mrb[0].mxu0
      %v1958 = vpop.f32.mrb[0].mxu0
      %v1959 = vadd.f32 0.0, %v1958
      %v1960 = vpop.f32.mrb[0].mxu0
      %1961 = vmatprep.mubr.bf16.mxu0 0
      %1962 = vmatmul.mubr.bf16.gmra.mrb[0].mxu0 %v602
      %v1963 = vpop.f32.mrb[0].mxu0
      %v1964 = vadd.f32 0.0, %v1963
      %v1965 = vpop.f32.mrb[0].mxu0
      %v1966 = vpop.f32.mrb[0].mxu0
      %v1967 = vadd.f32 0.0, %v1966
      %v1968 = vpop.f32.mrb[0].mxu0
      %1969 = vmatprep.mubr.bf16.mxu0 0
      %1970 = vmatmul.mubr.bf16.gmra.mrb[0].mxu0 %v603
      %v1971 = vpop.f32.mrb[0].mxu0
      %v1972 = vadd.f32 0.0, %v1971
      %v1973 = vpop.f32.mrb[0].mxu0
      %v1974 = vpop.f32.mrb[0].mxu0
      %v1975 = vadd.f32 0.0, %v1974
      %v1976 = vpop.f32.mrb[0].mxu0
      %1977 = vmatprep.mubr.bf16.mxu0 0
      %1978 = vmatmul.mubr.bf16.gmra.mrb[0].mxu0 %v604
      %v1979 = vpop.f32.mrb[0].mxu0
      %v1980 = vadd.f32 0.0, %v1979
      %v1981 = vpop.f32.mrb[0].mxu0
      %v1982 = vpop.f32.mrb[0].mxu0
      %v1983 = vadd.f32 0.0, %v1982
      %v1984 = vpop.f32.mrb[0].mxu0
      %1985 = vmatprep.mubr.bf16.mxu0 0
      %1986 = vmatmul.mubr.bf16.gmra.mrb[0].mxu0 %v605
      %v1987 = vpop.f32.mrb[0].mxu0
      %v1988 = vadd.f32 0.0, %v1987
      %v1989 = vpop.f32.mrb[0].mxu0
      %v1990 = vpop.f32.mrb[0].mxu0
      %v1991 = vadd.f32 0.0, %v1990
      %v1992 = vpop.f32.mrb[0].mxu0
      %1993 = vmatprep.mubr.bf16.mxu0 0
      %1994 = vmatmul.mubr.bf16.gmra.mrb[0].mxu0 %v606
      %v1995 = vpop.f32.mrb[0].mxu0
      %v1996 = vadd.f32 0.0, %v1995
      %v1997 = vpop.f32.mrb[0].mxu0
      %v1998 = vpop.f32.mrb[0].mxu0
      %v1999 = vadd.f32 0.0, %v1998
      %v2000 = vpop.f32.mrb[0].mxu0
      %2001 = vmatprep.mubr.bf16.mxu0 0
      %2002 = vmatmul.mubr.bf16.gmra.mrb[0].mxu0 %v607
      %v2003 = vpop.f32.mrb[0].mxu0
      %v2004 = vadd.f32 0.0, %v2003
      %v2005 = vpop.f32.mrb[0].mxu0
      %v2006 = vpop.f32.mrb[0].mxu0
      %v2007 = vadd.f32 0.0, %v2006
      %v2008 = vpop.f32.mrb[0].mxu0
      %2009 = vmatprep.mubr.bf16.mxu0 0
      %2010 = vmatmul.mubr.bf16.gmra.mrb[0].mxu0 %v608
      %v2011 = vpop.f32.mrb[0].mxu0
      %v2012 = vadd.f32 0.0, %v2011
      %v2013 = vpop.f32.mrb[0].mxu0
      %v2014 = vpop.f32.mrb[0].mxu0
      %v2015 = vadd.f32 0.0, %v2014
      %v2016 = vpop.f32.mrb[0].mxu0
      %2017 = vmatprep.mubr.bf16.mxu0 0
      %2018 = vmatmul.mubr.bf16.gmra.mrb[0].mxu0 %v609
      %v2019 = vpop.f32.mrb[0].mxu0
      %v2020 = vadd.f32 0.0, %v2019
      %v2021 = vpop.f32.mrb[0].mxu0
      %v2022 = vpop.f32.mrb[0].mxu0
      %v2023 = vadd.f32 0.0, %v2022
      %v2024 = vpop.f32.mrb[0].mxu0
      %2025 = vmatprep.mubr.bf16.mxu0 0
      %2026 = vmatmul.mubr.bf16.gmra.mrb[0].mxu0 %v610
      %v2027 = vpop.f32.mrb[0].mxu0
      %v2028 = vadd.f32 0.0, %v2027
      %v2029 = vpop.f32.mrb[0].mxu0
      %v2030 = vpop.f32.mrb[0].mxu0
      %v2031 = vadd.f32 0.0, %v2030
      %v2032 = vpop.f32.mrb[0].mxu0
      %2033 = vmatprep.mubr.bf16.mxu0 0
      %2034 = vmatmul.mubr.bf16.gmra.mrb[0].mxu0 %v611
      %v2035 = vpop.f32.mrb[0].mxu0
      %v2036 = vadd.f32 0.0, %v2035
      %v2037 = vpop.f32.mrb[0].mxu0
      %v2038 = vpop.f32.mrb[0].mxu0
      %v2039 = vadd.f32 0.0, %v2038
      %v2040 = vpop.f32.mrb[0].mxu0
      %2041 = vmatprep.mubr.bf16.mxu0 0
      %2042 = vmatmul.mubr.bf16.gmra.mrb[0].mxu0 %v612
      %v2043 = vpop.f32.mrb[0].mxu0
      %v2044 = vadd.f32 0.0, %v2043
      %v2045 = vpop.f32.mrb[0].mxu0
      %v2046 = vpop.f32.mrb[0].mxu0
      %v2047 = vadd.f32 0.0, %v2046
      %v2048 = vpop.f32.mrb[0].mxu0
      %2049 = vmatprep.mubr.bf16.mxu0 0
      %2050 = vmatmul.mubr.bf16.gmra.mrb[0].mxu0 %v613
      %v2051 = vpop.f32.mrb[0].mxu0
      %v2052 = vadd.f32 0.0, %v2051
      %v2053 = vpop.f32.mrb[0].mxu0
      %v2054 = vpop.f32.mrb[0].mxu0
      %v2055 = vadd.f32 0.0, %v2054
      %v2056 = vpop.f32.mrb[0].mxu0
      %2057 = vmatprep.mubr.bf16.mxu0 0
      %2058 = vmatmul.mubr.bf16.gmra.mrb[0].mxu0 %v614
      %v2059 = vpop.f32.mrb[0].mxu0
      %v2060 = vadd.f32 0.0, %v2059
      %v2061 = vpop.f32.mrb[0].mxu0
      %v2062 = vpop.f32.mrb[0].mxu0
      %v2063 = vadd.f32 0.0, %v2062
      %v2064 = vpop.f32.mrb[0].mxu0
      %2065 = vdwg.mxu0
      %v2066 = vadd.f32 %v1808, %v1940
      %v2067 = vadd.f32 %v1809, %v1943
      %v2068 = vadd.f32 %v1810, %v1948
      %v2069 = vadd.f32 %v1811, %v1951
      %v2070 = vadd.f32 %v1812, %v1956
      %v2071 = vadd.f32 %v1813, %v1959
      %v2072 = vadd.f32 %v1814, %v1964
      %v2073 = vadd.f32 %v1815, %v1967
      %v2074 = vadd.f32 %v1816, %v1972
      %v2075 = vadd.f32 %v1817, %v1975
      %v2076 = vadd.f32 %v1818, %v1980
      %v2077 = vadd.f32 %v1819, %v1983
      %v2078 = vadd.f32 %v1820, %v1988
      %v2079 = vadd.f32 %v1821, %v1991
      %v2080 = vadd.f32 %v1822, %v1996
      %v2081 = vadd.f32 %v1823, %v1999
      %v2082 = vadd.f32 %v1824, %v2004
      %v2083 = vadd.f32 %v1825, %v2007
      %v2084 = vadd.f32 %v1826, %v2012
      %v2085 = vadd.f32 %v1827, %v2015
      %v2086 = vadd.f32 %v1828, %v2020
      %v2087 = vadd.f32 %v1829, %v2023
      %v2088 = vadd.f32 %v1830, %v2028
      %v2089 = vadd.f32 %v1831, %v2031
      %v2090 = vadd.f32 %v1832, %v2036
      %v2091 = vadd.f32 %v1833, %v2039
      %v2092 = vadd.f32 %v1834, %v2044
      %v2093 = vadd.f32 %v1835, %v2047
      %v2094 = vadd.f32 %v1836, %v2052
      %v2095 = vadd.f32 %v1837, %v2055
      %v2096 = vadd.f32 %v1838, %v2060
      %v2097 = vadd.f32 %v1839, %v2063
      %s2098 = scalar_lea.vmem %s3, 384
      %v2099 = vld [vmem:[%s2098] sm:$0xf]
      %v2100 = vld [vmem:[%s2098 + $0x4] sm:$0xf]
      %v2101 = vld [vmem:[%s2098 + $0x8] sm:$0xf]
      %v2102 = vld [vmem:[%s2098 + $0xc] sm:$0xf]
      %v2103 = vld [vmem:[%s2098 + $0x10] sm:$0xf]
      %v2104 = vld [vmem:[%s2098 + $0x14] sm:$0xf]
      %v2105 = vld [vmem:[%s2098 + $0x18] sm:$0xf]
      %v2106 = vld [vmem:[%s2098 + $0x1c] sm:$0xf]
      %v2107 = vld [vmem:[%s2098 + $0x20] sm:$0xf]
      %v2108 = vld [vmem:[%s2098 + $0x24] sm:$0xf]
      %v2109 = vld [vmem:[%s2098 + $0x28] sm:$0xf]
      %v2110 = vld [vmem:[%s2098 + $0x2c] sm:$0xf]
      %v2111 = vld [vmem:[%s2098 + $0x30] sm:$0xf]
      %v2112 = vld [vmem:[%s2098 + $0x34] sm:$0xf]
      %v2113 = vld [vmem:[%s2098 + $0x38] sm:$0xf]
      %v2114 = vld [vmem:[%s2098 + $0x3c] sm:$0xf]
      %v2131 = vunpack.c.l.b16 %v2099
      %v2132 = vunpack.c.l.b16 %v2100
      %v2133 = vunpack.c.l.b16 %v2101
      %v2134 = vunpack.c.l.b16 %v2102
      %v2135 = vunpack.c.l.b16 %v2103
      %v2136 = vunpack.c.l.b16 %v2104
      %v2137 = vunpack.c.l.b16 %v2105
      %v2138 = vunpack.c.l.b16 %v2106
      %v2139 = vunpack.c.l.b16 %v2107
      %v2140 = vunpack.c.l.b16 %v2108
      %v2141 = vunpack.c.l.b16 %v2109
      %v2142 = vunpack.c.l.b16 %v2110
      %v2143 = vunpack.c.l.b16 %v2111
      %v2144 = vunpack.c.l.b16 %v2112
      %v2145 = vunpack.c.l.b16 %v2113
      %v2146 = vunpack.c.l.b16 %v2114
      %v2147 = vpack.c.b16 %v2132, %v2131
      %v2148 = vpack.c.b16 %v2134, %v2133
      %v2149 = vpack.c.b16 %v2136, %v2135
      %v2150 = vpack.c.b16 %v2138, %v2137
      %v2151 = vpack.c.b16 %v2140, %v2139
      %v2152 = vpack.c.b16 %v2142, %v2141
      %v2153 = vpack.c.b16 %v2144, %v2143
      %v2154 = vpack.c.b16 %v2146, %v2145
      %2163 = vmatprep.subr.bf16.mxu0 0
      %2164 = vmatpush1.bf16.msra.mxu0 %v2147
      %2165 = vmatprep.subr.bf16.mxu0 0
      %2166 = vmatpush1.bf16.msra.mxu0 %v2148
      %2167 = vmatprep.subr.bf16.mxu0 0
      %2168 = vmatpush1.bf16.msra.mxu0 %v2149
      %2169 = vmatprep.subr.bf16.mxu0 0
      %2170 = vmatpush1.bf16.msra.mxu0 %v2150
      %2171 = vmatprep.subr.bf16.mxu0 0
      %2172 = vmatpush1.bf16.msra.mxu0 %v2151
      %2173 = vmatprep.subr.bf16.mxu0 0
      %2174 = vmatpush1.bf16.msra.mxu0 %v2152
      %2175 = vmatprep.subr.bf16.mxu0 0
      %2176 = vmatpush1.bf16.msra.mxu0 %v2153
      %2177 = vmatprep.subr.bf16.mxu0 0
      %2178 = vmatpush1.bf16.msra.mxu0 %v2154
      %2179 = vmatprep.subr.bf16.mxu0 0
      %2180 = vmatpush1.bf16.msra.mxu0 0
      %2181 = vmatprep.subr.bf16.mxu0 0
      %2182 = vmatpush1.bf16.msra.mxu0 0
      %2183 = vmatprep.subr.bf16.mxu0 0
      %2184 = vmatpush1.bf16.msra.mxu0 0
      %2185 = vmatprep.subr.bf16.mxu0 0
      %2186 = vmatpush1.bf16.msra.mxu0 0
      %2187 = vmatprep.subr.bf16.mxu0 0
      %2188 = vmatpush1.bf16.msra.mxu0 0
      %2189 = vmatprep.subr.bf16.mxu0 0
      %2190 = vmatpush1.bf16.msra.mxu0 0
      %2191 = vmatprep.subr.bf16.mxu0 0
      %2192 = vmatpush1.bf16.msra.mxu0 0
      %2193 = vmatprep.subr.bf16.mxu0 0
      %2194 = vmatpush1.bf16.msra.mxu0 0
      %2195 = vmatprep.mubr.bf16.mxu0 0
      %2196 = vmatmul.mubr.bf16.gmra.mrb[0].mxu0 %v471
      %v2197 = vpop.f32.mrb[0].mxu0
      %v2198 = vadd.f32 0.0, %v2197
      %v2199 = vpop.f32.mrb[0].mxu0
      %v2200 = vpop.f32.mrb[0].mxu0
      %v2201 = vadd.f32 0.0, %v2200
      %v2202 = vpop.f32.mrb[0].mxu0
      %2203 = vmatprep.mubr.bf16.mxu0 0
      %2204 = vmatmul.mubr.bf16.gmra.mrb[0].mxu0 %v472
      %v2205 = vpop.f32.mrb[0].mxu0
      %v2206 = vadd.f32 0.0, %v2205
      %v2207 = vpop.f32.mrb[0].mxu0
      %v2208 = vpop.f32.mrb[0].mxu0
      %v2209 = vadd.f32 0.0, %v2208
      %v2210 = vpop.f32.mrb[0].mxu0
      %2211 = vmatprep.mubr.bf16.mxu0 0
      %2212 = vmatmul.mubr.bf16.gmra.mrb[0].mxu0 %v473
      %v2213 = vpop.f32.mrb[0].mxu0
      %v2214 = vadd.f32 0.0, %v2213
      %v2215 = vpop.f32.mrb[0].mxu0
      %v2216 = vpop.f32.mrb[0].mxu0
      %v2217 = vadd.f32 0.0, %v2216
      %v2218 = vpop.f32.mrb[0].mxu0
      %2219 = vmatprep.mubr.bf16.mxu0 0
      %2220 = vmatmul.mubr.bf16.gmra.mrb[0].mxu0 %v474
      %v2221 = vpop.f32.mrb[0].mxu0
      %v2222 = vadd.f32 0.0, %v2221
      %v2223 = vpop.f32.mrb[0].mxu0
      %v2224 = vpop.f32.mrb[0].mxu0
      %v2225 = vadd.f32 0.0, %v2224
      %v2226 = vpop.f32.mrb[0].mxu0
      %2227 = vmatprep.mubr.bf16.mxu0 0
      %2228 = vmatmul.mubr.bf16.gmra.mrb[0].mxu0 %v475
      %v2229 = vpop.f32.mrb[0].mxu0
      %v2230 = vadd.f32 0.0, %v2229
      %v2231 = vpop.f32.mrb[0].mxu0
      %v2232 = vpop.f32.mrb[0].mxu0
      %v2233 = vadd.f32 0.0, %v2232
      %v2234 = vpop.f32.mrb[0].mxu0
      %2235 = vmatprep.mubr.bf16.mxu0 0
      %2236 = vmatmul.mubr.bf16.gmra.mrb[0].mxu0 %v476
      %v2237 = vpop.f32.mrb[0].mxu0
      %v2238 = vadd.f32 0.0, %v2237
      %v2239 = vpop.f32.mrb[0].mxu0
      %v2240 = vpop.f32.mrb[0].mxu0
      %v2241 = vadd.f32 0.0, %v2240
      %v2242 = vpop.f32.mrb[0].mxu0
      %2243 = vmatprep.mubr.bf16.mxu0 0
      %2244 = vmatmul.mubr.bf16.gmra.mrb[0].mxu0 %v477
      %v2245 = vpop.f32.mrb[0].mxu0
      %v2246 = vadd.f32 0.0, %v2245
      %v2247 = vpop.f32.mrb[0].mxu0
      %v2248 = vpop.f32.mrb[0].mxu0
      %v2249 = vadd.f32 0.0, %v2248
      %v2250 = vpop.f32.mrb[0].mxu0
      %2251 = vmatprep.mubr.bf16.mxu0 0
      %2252 = vmatmul.mubr.bf16.gmra.mrb[0].mxu0 %v478
      %v2253 = vpop.f32.mrb[0].mxu0
      %v2254 = vadd.f32 0.0, %v2253
      %v2255 = vpop.f32.mrb[0].mxu0
      %v2256 = vpop.f32.mrb[0].mxu0
      %v2257 = vadd.f32 0.0, %v2256
      %v2258 = vpop.f32.mrb[0].mxu0
      %2259 = vmatprep.mubr.bf16.mxu0 0
      %2260 = vmatmul.mubr.bf16.gmra.mrb[0].mxu0 %v479
      %v2261 = vpop.f32.mrb[0].mxu0
      %v2262 = vadd.f32 0.0, %v2261
      %v2263 = vpop.f32.mrb[0].mxu0
      %v2264 = vpop.f32.mrb[0].mxu0
      %v2265 = vadd.f32 0.0, %v2264
      %v2266 = vpop.f32.mrb[0].mxu0
      %2267 = vmatprep.mubr.bf16.mxu0 0
      %2268 = vmatmul.mubr.bf16.gmra.mrb[0].mxu0 %v480
      %v2269 = vpop.f32.mrb[0].mxu0
      %v2270 = vadd.f32 0.0, %v2269
      %v2271 = vpop.f32.mrb[0].mxu0
      %v2272 = vpop.f32.mrb[0].mxu0
      %v2273 = vadd.f32 0.0, %v2272
      %v2274 = vpop.f32.mrb[0].mxu0
      %2275 = vmatprep.mubr.bf16.mxu0 0
      %2276 = vmatmul.mubr.bf16.gmra.mrb[0].mxu0 %v481
      %v2277 = vpop.f32.mrb[0].mxu0
      %v2278 = vadd.f32 0.0, %v2277
      %v2279 = vpop.f32.mrb[0].mxu0
      %v2280 = vpop.f32.mrb[0].mxu0
      %v2281 = vadd.f32 0.0, %v2280
      %v2282 = vpop.f32.mrb[0].mxu0
      %2283 = vmatprep.mubr.bf16.mxu0 0
      %2284 = vmatmul.mubr.bf16.gmra.mrb[0].mxu0 %v482
      %v2285 = vpop.f32.mrb[0].mxu0
      %v2286 = vadd.f32 0.0, %v2285
      %v2287 = vpop.f32.mrb[0].mxu0
      %v2288 = vpop.f32.mrb[0].mxu0
      %v2289 = vadd.f32 0.0, %v2288
      %v2290 = vpop.f32.mrb[0].mxu0
      %2291 = vmatprep.mubr.bf16.mxu0 0
      %2292 = vmatmul.mubr.bf16.gmra.mrb[0].mxu0 %v483
      %v2293 = vpop.f32.mrb[0].mxu0
      %v2294 = vadd.f32 0.0, %v2293
      %v2295 = vpop.f32.mrb[0].mxu0
      %v2296 = vpop.f32.mrb[0].mxu0
      %v2297 = vadd.f32 0.0, %v2296
      %v2298 = vpop.f32.mrb[0].mxu0
      %2299 = vmatprep.mubr.bf16.mxu0 0
      %2300 = vmatmul.mubr.bf16.gmra.mrb[0].mxu0 %v484
      %v2301 = vpop.f32.mrb[0].mxu0
      %v2302 = vadd.f32 0.0, %v2301
      %v2303 = vpop.f32.mrb[0].mxu0
      %v2304 = vpop.f32.mrb[0].mxu0
      %v2305 = vadd.f32 0.0, %v2304
      %v2306 = vpop.f32.mrb[0].mxu0
      %2307 = vmatprep.mubr.bf16.mxu0 0
      %2308 = vmatmul.mubr.bf16.gmra.mrb[0].mxu0 %v485
      %v2309 = vpop.f32.mrb[0].mxu0
      %v2310 = vadd.f32 0.0, %v2309
      %v2311 = vpop.f32.mrb[0].mxu0
      %v2312 = vpop.f32.mrb[0].mxu0
      %v2313 = vadd.f32 0.0, %v2312
      %v2314 = vpop.f32.mrb[0].mxu0
      %2315 = vmatprep.mubr.bf16.mxu0 0
      %2316 = vmatmul.mubr.bf16.gmra.mrb[0].mxu0 0
      %v2317 = vpop.f32.mrb[0].mxu0
      %v2318 = vadd.f32 0.0, %v2317
      %v2319 = vpop.f32.mrb[0].mxu0
      %v2320 = vpop.f32.mrb[0].mxu0
      %v2321 = vadd.f32 0.0, %v2320
      %v2322 = vpop.f32.mrb[0].mxu0
      %2323 = vdwg.mxu0
      %v2324 = vadd.f32 %v2066, %v2198
      %v2325 = vadd.f32 %v2067, %v2201
      %v2326 = vadd.f32 %v2068, %v2206
      %v2327 = vadd.f32 %v2069, %v2209
      %v2328 = vadd.f32 %v2070, %v2214
      %v2329 = vadd.f32 %v2071, %v2217
      %v2330 = vadd.f32 %v2072, %v2222
      %v2331 = vadd.f32 %v2073, %v2225
      %v2332 = vadd.f32 %v2074, %v2230
      %v2333 = vadd.f32 %v2075, %v2233
      %v2334 = vadd.f32 %v2076, %v2238
      %v2335 = vadd.f32 %v2077, %v2241
      %v2336 = vadd.f32 %v2078, %v2246
      %v2337 = vadd.f32 %v2079, %v2249
      %v2338 = vadd.f32 %v2080, %v2254
      %v2339 = vadd.f32 %v2081, %v2257
      %v2340 = vadd.f32 %v2082, %v2262
      %v2341 = vadd.f32 %v2083, %v2265
      %v2342 = vadd.f32 %v2084, %v2270
      %v2343 = vadd.f32 %v2085, %v2273
      %v2344 = vadd.f32 %v2086, %v2278
      %v2345 = vadd.f32 %v2087, %v2281
      %v2346 = vadd.f32 %v2088, %v2286
      %v2347 = vadd.f32 %v2089, %v2289
      %v2348 = vadd.f32 %v2090, %v2294
      %v2349 = vadd.f32 %v2091, %v2297
      %v2350 = vadd.f32 %v2092, %v2302
      %v2351 = vadd.f32 %v2093, %v2305
      %v2352 = vadd.f32 %v2094, %v2310
      %v2353 = vadd.f32 %v2095, %v2313
      %v2354 = vadd.f32 %v2096, %v2318
      %v2355 = vadd.f32 %v2097, %v2321
      %s2356 = scalar_lea.vmem %s3, 448
      %v2357 = vld [vmem:[%s2356] sm:$0xf]
      %v2358 = vld [vmem:[%s2356 + $0x4] sm:$0xf]
      %v2359 = vld [vmem:[%s2356 + $0x8] sm:$0xf]
      %v2360 = vld [vmem:[%s2356 + $0xc] sm:$0xf]
      %v2361 = vld [vmem:[%s2356 + $0x10] sm:$0xf]
      %v2362 = vld [vmem:[%s2356 + $0x14] sm:$0xf]
      %v2363 = vld [vmem:[%s2356 + $0x18] sm:$0xf]
      %v2364 = vld [vmem:[%s2356 + $0x1c] sm:$0xf]
      %v2365 = vld [vmem:[%s2356 + $0x20] sm:$0xf]
      %v2366 = vld [vmem:[%s2356 + $0x24] sm:$0xf]
      %v2367 = vld [vmem:[%s2356 + $0x28] sm:$0xf]
      %v2368 = vld [vmem:[%s2356 + $0x2c] sm:$0xf]
      %v2369 = vld [vmem:[%s2356 + $0x30] sm:$0xf]
      %v2370 = vld [vmem:[%s2356 + $0x34] sm:$0xf]
      %v2371 = vld [vmem:[%s2356 + $0x38] sm:$0xf]
      %v2372 = vld [vmem:[%s2356 + $0x3c] sm:$0xf]
      %v2389 = vunpack.c.l.b16 %v2357
      %v2390 = vunpack.c.l.b16 %v2358
      %v2391 = vunpack.c.l.b16 %v2359
      %v2392 = vunpack.c.l.b16 %v2360
      %v2393 = vunpack.c.l.b16 %v2361
      %v2394 = vunpack.c.l.b16 %v2362
      %v2395 = vunpack.c.l.b16 %v2363
      %v2396 = vunpack.c.l.b16 %v2364
      %v2397 = vunpack.c.l.b16 %v2365
      %v2398 = vunpack.c.l.b16 %v2366
      %v2399 = vunpack.c.l.b16 %v2367
      %v2400 = vunpack.c.l.b16 %v2368
      %v2401 = vunpack.c.l.b16 %v2369
      %v2402 = vunpack.c.l.b16 %v2370
      %v2403 = vunpack.c.l.b16 %v2371
      %v2404 = vunpack.c.l.b16 %v2372
      %v2405 = vpack.c.b16 %v2390, %v2389
      %v2406 = vpack.c.b16 %v2392, %v2391
      %v2407 = vpack.c.b16 %v2394, %v2393
      %v2408 = vpack.c.b16 %v2396, %v2395
      %v2409 = vpack.c.b16 %v2398, %v2397
      %v2410 = vpack.c.b16 %v2400, %v2399
      %v2411 = vpack.c.b16 %v2402, %v2401
      %v2412 = vpack.c.b16 %v2404, %v2403
      %2421 = vmatprep.subr.bf16.mxu0 0
      %2422 = vmatpush1.bf16.msra.mxu0 %v2405
      %2423 = vmatprep.subr.bf16.mxu0 0
      %2424 = vmatpush1.bf16.msra.mxu0 %v2406
      %2425 = vmatprep.subr.bf16.mxu0 0
      %2426 = vmatpush1.bf16.msra.mxu0 %v2407
      %2427 = vmatprep.subr.bf16.mxu0 0
      %2428 = vmatpush1.bf16.msra.mxu0 %v2408
      %2429 = vmatprep.subr.bf16.mxu0 0
      %2430 = vmatpush1.bf16.msra.mxu0 %v2409
      %2431 = vmatprep.subr.bf16.mxu0 0
      %2432 = vmatpush1.bf16.msra.mxu0 %v2410
      %2433 = vmatprep.subr.bf16.mxu0 0
      %2434 = vmatpush1.bf16.msra.mxu0 %v2411
      %2435 = vmatprep.subr.bf16.mxu0 0
      %2436 = vmatpush1.bf16.msra.mxu0 %v2412
      %2437 = vmatprep.subr.bf16.mxu0 0
      %2438 = vmatpush1.bf16.msra.mxu0 0
      %2439 = vmatprep.subr.bf16.mxu0 0
      %2440 = vmatpush1.bf16.msra.mxu0 0
      %2441 = vmatprep.subr.bf16.mxu0 0
      %2442 = vmatpush1.bf16.msra.mxu0 0
      %2443 = vmatprep.subr.bf16.mxu0 0
      %2444 = vmatpush1.bf16.msra.mxu0 0
      %2445 = vmatprep.subr.bf16.mxu0 0
      %2446 = vmatpush1.bf16.msra.mxu0 0
      %2447 = vmatprep.subr.bf16.mxu0 0
      %2448 = vmatpush1.bf16.msra.mxu0 0
      %2449 = vmatprep.subr.bf16.mxu0 0
      %2450 = vmatpush1.bf16.msra.mxu0 0
      %2451 = vmatprep.subr.bf16.mxu0 0
      %2452 = vmatpush1.bf16.msra.mxu0 0
      %2453 = vmatprep.mubr.bf16.mxu0 0
      %2454 = vmatmul.mubr.bf16.gmra.mrb[0].mxu0 %v487
      %v2455 = vpop.f32.mrb[0].mxu0
      %v2456 = vadd.f32 0.0, %v2455
      %v2457 = vpop.f32.mrb[0].mxu0
      %v2458 = vpop.f32.mrb[0].mxu0
      %v2459 = vadd.f32 0.0, %v2458
      %v2460 = vpop.f32.mrb[0].mxu0
      %2461 = vmatprep.mubr.bf16.mxu0 0
      %2462 = vmatmul.mubr.bf16.gmra.mrb[0].mxu0 %v488
      %v2463 = vpop.f32.mrb[0].mxu0
      %v2464 = vadd.f32 0.0, %v2463
      %v2465 = vpop.f32.mrb[0].mxu0
      %v2466 = vpop.f32.mrb[0].mxu0
      %v2467 = vadd.f32 0.0, %v2466
      %v2468 = vpop.f32.mrb[0].mxu0
      %2469 = vmatprep.mubr.bf16.mxu0 0
      %2470 = vmatmul.mubr.bf16.gmra.mrb[0].mxu0 %v489
      %v2471 = vpop.f32.mrb[0].mxu0
      %v2472 = vadd.f32 0.0, %v2471
      %v2473 = vpop.f32.mrb[0].mxu0
      %v2474 = vpop.f32.mrb[0].mxu0
      %v2475 = vadd.f32 0.0, %v2474
      %v2476 = vpop.f32.mrb[0].mxu0
      %2477 = vmatprep.mubr.bf16.mxu0 0
      %2478 = vmatmul.mubr.bf16.gmra.mrb[0].mxu0 %v490
      %v2479 = vpop.f32.mrb[0].mxu0
      %v2480 = vadd.f32 0.0, %v2479
      %v2481 = vpop.f32.mrb[0].mxu0
      %v2482 = vpop.f32.mrb[0].mxu0
      %v2483 = vadd.f32 0.0, %v2482
      %v2484 = vpop.f32.mrb[0].mxu0
      %2485 = vmatprep.mubr.bf16.mxu0 0
      %2486 = vmatmul.mubr.bf16.gmra.mrb[0].mxu0 %v491
      %v2487 = vpop.f32.mrb[0].mxu0
      %v2488 = vadd.f32 0.0, %v2487
      %v2489 = vpop.f32.mrb[0].mxu0
      %v2490 = vpop.f32.mrb[0].mxu0
      %v2491 = vadd.f32 0.0, %v2490
      %v2492 = vpop.f32.mrb[0].mxu0
      %2493 = vmatprep.mubr.bf16.mxu0 0
      %2494 = vmatmul.mubr.bf16.gmra.mrb[0].mxu0 %v492
      %v2495 = vpop.f32.mrb[0].mxu0
      %v2496 = vadd.f32 0.0, %v2495
      %v2497 = vpop.f32.mrb[0].mxu0
      %v2498 = vpop.f32.mrb[0].mxu0
      %v2499 = vadd.f32 0.0, %v2498
      %v2500 = vpop.f32.mrb[0].mxu0
      %2501 = vmatprep.mubr.bf16.mxu0 0
      %2502 = vmatmul.mubr.bf16.gmra.mrb[0].mxu0 %v493
      %v2503 = vpop.f32.mrb[0].mxu0
      %v2504 = vadd.f32 0.0, %v2503
      %v2505 = vpop.f32.mrb[0].mxu0
      %v2506 = vpop.f32.mrb[0].mxu0
      %v2507 = vadd.f32 0.0, %v2506
      %v2508 = vpop.f32.mrb[0].mxu0
      %2509 = vmatprep.mubr.bf16.mxu0 0
      %2510 = vmatmul.mubr.bf16.gmra.mrb[0].mxu0 %v494
      %v2511 = vpop.f32.mrb[0].mxu0
      %v2512 = vadd.f32 0.0, %v2511
      %v2513 = vpop.f32.mrb[0].mxu0
      %v2514 = vpop.f32.mrb[0].mxu0
      %v2515 = vadd.f32 0.0, %v2514
      %v2516 = vpop.f32.mrb[0].mxu0
      %2517 = vmatprep.mubr.bf16.mxu0 0
      %2518 = vmatmul.mubr.bf16.gmra.mrb[0].mxu0 %v495
      %v2519 = vpop.f32.mrb[0].mxu0
      %v2520 = vadd.f32 0.0, %v2519
      %v2521 = vpop.f32.mrb[0].mxu0
      %v2522 = vpop.f32.mrb[0].mxu0
      %v2523 = vadd.f32 0.0, %v2522
      %v2524 = vpop.f32.mrb[0].mxu0
      %2525 = vmatprep.mubr.bf16.mxu0 0
      %2526 = vmatmul.mubr.bf16.gmra.mrb[0].mxu0 %v496
      %v2527 = vpop.f32.mrb[0].mxu0
      %v2528 = vadd.f32 0.0, %v2527
      %v2529 = vpop.f32.mrb[0].mxu0
      %v2530 = vpop.f32.mrb[0].mxu0
      %v2531 = vadd.f32 0.0, %v2530
      %v2532 = vpop.f32.mrb[0].mxu0
      %2533 = vmatprep.mubr.bf16.mxu0 0
      %2534 = vmatmul.mubr.bf16.gmra.mrb[0].mxu0 %v497
      %v2535 = vpop.f32.mrb[0].mxu0
      %v2536 = vadd.f32 0.0, %v2535
      %v2537 = vpop.f32.mrb[0].mxu0
      %v2538 = vpop.f32.mrb[0].mxu0
      %v2539 = vadd.f32 0.0, %v2538
      %v2540 = vpop.f32.mrb[0].mxu0
      %2541 = vmatprep.mubr.bf16.mxu0 0
      %2542 = vmatmul.mubr.bf16.gmra.mrb[0].mxu0 %v498
      %v2543 = vpop.f32.mrb[0].mxu0
      %v2544 = vadd.f32 0.0, %v2543
      %v2545 = vpop.f32.mrb[0].mxu0
      %v2546 = vpop.f32.mrb[0].mxu0
      %v2547 = vadd.f32 0.0, %v2546
      %v2548 = vpop.f32.mrb[0].mxu0
      %2549 = vmatprep.mubr.bf16.mxu0 0
      %2550 = vmatmul.mubr.bf16.gmra.mrb[0].mxu0 %v499
      %v2551 = vpop.f32.mrb[0].mxu0
      %v2552 = vadd.f32 0.0, %v2551
      %v2553 = vpop.f32.mrb[0].mxu0
      %v2554 = vpop.f32.mrb[0].mxu0
      %v2555 = vadd.f32 0.0, %v2554
      %v2556 = vpop.f32.mrb[0].mxu0
      %2557 = vmatprep.mubr.bf16.mxu0 0
      %2558 = vmatmul.mubr.bf16.gmra.mrb[0].mxu0 %v500
      %v2559 = vpop.f32.mrb[0].mxu0
      %v2560 = vadd.f32 0.0, %v2559
      %v2561 = vpop.f32.mrb[0].mxu0
      %v2562 = vpop.f32.mrb[0].mxu0
      %v2563 = vadd.f32 0.0, %v2562
      %v2564 = vpop.f32.mrb[0].mxu0
      %2565 = vmatprep.mubr.bf16.mxu0 0
      %2566 = vmatmul.mubr.bf16.gmra.mrb[0].mxu0 %v501
      %v2567 = vpop.f32.mrb[0].mxu0
      %v2568 = vadd.f32 0.0, %v2567
      %v2569 = vpop.f32.mrb[0].mxu0
      %v2570 = vpop.f32.mrb[0].mxu0
      %v2571 = vadd.f32 0.0, %v2570
      %v2572 = vpop.f32.mrb[0].mxu0
      %2573 = vmatprep.mubr.bf16.mxu0 0
      %2574 = vmatmul.mubr.bf16.gmra.mrb[0].mxu0 0
      %v2575 = vpop.f32.mrb[0].mxu0
      %v2576 = vadd.f32 0.0, %v2575
      %v2577 = vpop.f32.mrb[0].mxu0
      %v2578 = vpop.f32.mrb[0].mxu0
      %v2579 = vadd.f32 0.0, %v2578
      %v2580 = vpop.f32.mrb[0].mxu0
      %2581 = vdwg.mxu0
      %v2582 = vadd.f32 %v2324, %v2456
      %v2583 = vadd.f32 %v2325, %v2459
      %v2584 = vadd.f32 %v2326, %v2464
      %v2585 = vadd.f32 %v2327, %v2467
      %v2586 = vadd.f32 %v2328, %v2472
      %v2587 = vadd.f32 %v2329, %v2475
      %v2588 = vadd.f32 %v2330, %v2480
      %v2589 = vadd.f32 %v2331, %v2483
      %v2590 = vadd.f32 %v2332, %v2488
      %v2591 = vadd.f32 %v2333, %v2491
      %v2592 = vadd.f32 %v2334, %v2496
      %v2593 = vadd.f32 %v2335, %v2499
      %v2594 = vadd.f32 %v2336, %v2504
      %v2595 = vadd.f32 %v2337, %v2507
      %v2596 = vadd.f32 %v2338, %v2512
      %v2597 = vadd.f32 %v2339, %v2515
      %v2598 = vadd.f32 %v2340, %v2520
      %v2599 = vadd.f32 %v2341, %v2523
      %v2600 = vadd.f32 %v2342, %v2528
      %v2601 = vadd.f32 %v2343, %v2531
      %v2602 = vadd.f32 %v2344, %v2536
      %v2603 = vadd.f32 %v2345, %v2539
      %v2604 = vadd.f32 %v2346, %v2544
      %v2605 = vadd.f32 %v2347, %v2547
      %v2606 = vadd.f32 %v2348, %v2552
      %v2607 = vadd.f32 %v2349, %v2555
      %v2608 = vadd.f32 %v2350, %v2560
      %v2609 = vadd.f32 %v2351, %v2563
      %v2610 = vadd.f32 %v2352, %v2568
      %v2611 = vadd.f32 %v2353, %v2571
      %v2612 = vadd.f32 %v2354, %v2576
      %v2613 = vadd.f32 %v2355, %v2579
      %s2614 = scalar_lea.vmem %s3, 512
      %v2615 = vld [vmem:[%s2614] sm:$0xf]
      %v2616 = vld [vmem:[%s2614 + $0x4] sm:$0xf]
      %v2617 = vld [vmem:[%s2614 + $0x8] sm:$0xf]
      %v2618 = vld [vmem:[%s2614 + $0xc] sm:$0xf]
      %v2619 = vld [vmem:[%s2614 + $0x10] sm:$0xf]
      %v2620 = vld [vmem:[%s2614 + $0x14] sm:$0xf]
      %v2621 = vld [vmem:[%s2614 + $0x18] sm:$0xf]
      %v2622 = vld [vmem:[%s2614 + $0x1c] sm:$0xf]
      %v2623 = vld [vmem:[%s2614 + $0x20] sm:$0xf]
      %v2624 = vld [vmem:[%s2614 + $0x24] sm:$0xf]
      %v2625 = vld [vmem:[%s2614 + $0x28] sm:$0xf]
      %v2626 = vld [vmem:[%s2614 + $0x2c] sm:$0xf]
      %v2627 = vld [vmem:[%s2614 + $0x30] sm:$0xf]
      %v2628 = vld [vmem:[%s2614 + $0x34] sm:$0xf]
      %v2629 = vld [vmem:[%s2614 + $0x38] sm:$0xf]
      %v2630 = vld [vmem:[%s2614 + $0x3c] sm:$0xf]
      %v2647 = vunpack.c.l.b16 %v2615
      %v2648 = vunpack.c.l.b16 %v2616
      %v2649 = vunpack.c.l.b16 %v2617
      %v2650 = vunpack.c.l.b16 %v2618
      %v2651 = vunpack.c.l.b16 %v2619
      %v2652 = vunpack.c.l.b16 %v2620
      %v2653 = vunpack.c.l.b16 %v2621
      %v2654 = vunpack.c.l.b16 %v2622
      %v2655 = vunpack.c.l.b16 %v2623
      %v2656 = vunpack.c.l.b16 %v2624
      %v2657 = vunpack.c.l.b16 %v2625
      %v2658 = vunpack.c.l.b16 %v2626
      %v2659 = vunpack.c.l.b16 %v2627
      %v2660 = vunpack.c.l.b16 %v2628
      %v2661 = vunpack.c.l.b16 %v2629
      %v2662 = vunpack.c.l.b16 %v2630
      %v2663 = vpack.c.b16 %v2648, %v2647
      %v2664 = vpack.c.b16 %v2650, %v2649
      %v2665 = vpack.c.b16 %v2652, %v2651
      %v2666 = vpack.c.b16 %v2654, %v2653
      %v2667 = vpack.c.b16 %v2656, %v2655
      %v2668 = vpack.c.b16 %v2658, %v2657
      %v2669 = vpack.c.b16 %v2660, %v2659
      %v2670 = vpack.c.b16 %v2662, %v2661
      %2679 = vmatprep.subr.bf16.mxu0 0
      %2680 = vmatpush1.bf16.msra.mxu0 %v2663
      %2681 = vmatprep.subr.bf16.mxu0 0
      %2682 = vmatpush1.bf16.msra.mxu0 %v2664
      %2683 = vmatprep.subr.bf16.mxu0 0
      %2684 = vmatpush1.bf16.msra.mxu0 %v2665
      %2685 = vmatprep.subr.bf16.mxu0 0
      %2686 = vmatpush1.bf16.msra.mxu0 %v2666
      %2687 = vmatprep.subr.bf16.mxu0 0
      %2688 = vmatpush1.bf16.msra.mxu0 %v2667
      %2689 = vmatprep.subr.bf16.mxu0 0
      %2690 = vmatpush1.bf16.msra.mxu0 %v2668
      %2691 = vmatprep.subr.bf16.mxu0 0
      %2692 = vmatpush1.bf16.msra.mxu0 %v2669
      %2693 = vmatprep.subr.bf16.mxu0 0
      %2694 = vmatpush1.bf16.msra.mxu0 %v2670
      %2695 = vmatprep.subr.bf16.mxu0 0
      %2696 = vmatpush1.bf16.msra.mxu0 0
      %2697 = vmatprep.subr.bf16.mxu0 0
      %2698 = vmatpush1.bf16.msra.mxu0 0
      %2699 = vmatprep.subr.bf16.mxu0 0
      %2700 = vmatpush1.bf16.msra.mxu0 0
      %2701 = vmatprep.subr.bf16.mxu0 0
      %2702 = vmatpush1.bf16.msra.mxu0 0
      %2703 = vmatprep.subr.bf16.mxu0 0
      %2704 = vmatpush1.bf16.msra.mxu0 0
      %2705 = vmatprep.subr.bf16.mxu0 0
      %2706 = vmatpush1.bf16.msra.mxu0 0
      %2707 = vmatprep.subr.bf16.mxu0 0
      %2708 = vmatpush1.bf16.msra.mxu0 0
      %2709 = vmatprep.subr.bf16.mxu0 0
      %2710 = vmatpush1.bf16.msra.mxu0 0
      %2711 = vmatprep.mubr.bf16.mxu0 0
      %2712 = vmatmul.mubr.bf16.gmra.mrb[0].mxu0 %v600
      %v2713 = vpop.f32.mrb[0].mxu0
      %v2714 = vadd.f32 0.0, %v2713
      %v2715 = vpop.f32.mrb[0].mxu0
      %v2716 = vpop.f32.mrb[0].mxu0
      %v2717 = vadd.f32 0.0, %v2716
      %v2718 = vpop.f32.mrb[0].mxu0
      %2719 = vmatprep.mubr.bf16.mxu0 0
      %2720 = vmatmul.mubr.bf16.gmra.mrb[0].mxu0 %v601
      %v2721 = vpop.f32.mrb[0].mxu0
      %v2722 = vadd.f32 0.0, %v2721
      %v2723 = vpop.f32.mrb[0].mxu0
      %v2724 = vpop.f32.mrb[0].mxu0
      %v2725 = vadd.f32 0.0, %v2724
      %v2726 = vpop.f32.mrb[0].mxu0
      %2727 = vmatprep.mubr.bf16.mxu0 0
      %2728 = vmatmul.mubr.bf16.gmra.mrb[0].mxu0 %v602
      %v2729 = vpop.f32.mrb[0].mxu0
      %v2730 = vadd.f32 0.0, %v2729
      %v2731 = vpop.f32.mrb[0].mxu0
      %v2732 = vpop.f32.mrb[0].mxu0
      %v2733 = vadd.f32 0.0, %v2732
      %v2734 = vpop.f32.mrb[0].mxu0
      %2735 = vmatprep.mubr.bf16.mxu0 0
      %2736 = vmatmul.mubr.bf16.gmra.mrb[0].mxu0 %v603
      %v2737 = vpop.f32.mrb[0].mxu0
      %v2738 = vadd.f32 0.0, %v2737
      %v2739 = vpop.f32.mrb[0].mxu0
      %v2740 = vpop.f32.mrb[0].mxu0
      %v2741 = vadd.f32 0.0, %v2740
      %v2742 = vpop.f32.mrb[0].mxu0
      %2743 = vmatprep.mubr.bf16.mxu0 0
      %2744 = vmatmul.mubr.bf16.gmra.mrb[0].mxu0 %v604
      %v2745 = vpop.f32.mrb[0].mxu0
      %v2746 = vadd.f32 0.0, %v2745
      %v2747 = vpop.f32.mrb[0].mxu0
      %v2748 = vpop.f32.mrb[0].mxu0
      %v2749 = vadd.f32 0.0, %v2748
      %v2750 = vpop.f32.mrb[0].mxu0
      %2751 = vmatprep.mubr.bf16.mxu0 0
      %2752 = vmatmul.mubr.bf16.gmra.mrb[0].mxu0 %v605
      %v2753 = vpop.f32.mrb[0].mxu0
      %v2754 = vadd.f32 0.0, %v2753
      %v2755 = vpop.f32.mrb[0].mxu0
      %v2756 = vpop.f32.mrb[0].mxu0
      %v2757 = vadd.f32 0.0, %v2756
      %v2758 = vpop.f32.mrb[0].mxu0
      %2759 = vmatprep.mubr.bf16.mxu0 0
      %2760 = vmatmul.mubr.bf16.gmra.mrb[0].mxu0 %v606
      %v2761 = vpop.f32.mrb[0].mxu0
      %v2762 = vadd.f32 0.0, %v2761
      %v2763 = vpop.f32.mrb[0].mxu0
      %v2764 = vpop.f32.mrb[0].mxu0
      %v2765 = vadd.f32 0.0, %v2764
      %v2766 = vpop.f32.mrb[0].mxu0
      %2767 = vmatprep.mubr.bf16.mxu0 0
      %2768 = vmatmul.mubr.bf16.gmra.mrb[0].mxu0 %v607
      %v2769 = vpop.f32.mrb[0].mxu0
      %v2770 = vadd.f32 0.0, %v2769
      %v2771 = vpop.f32.mrb[0].mxu0
      %v2772 = vpop.f32.mrb[0].mxu0
      %v2773 = vadd.f32 0.0, %v2772
      %v2774 = vpop.f32.mrb[0].mxu0
      %2775 = vmatprep.mubr.bf16.mxu0 0
      %2776 = vmatmul.mubr.bf16.gmra.mrb[0].mxu0 %v608
      %v2777 = vpop.f32.mrb[0].mxu0
      %v2778 = vadd.f32 0.0, %v2777
      %v2779 = vpop.f32.mrb[0].mxu0
      %v2780 = vpop.f32.mrb[0].mxu0
      %v2781 = vadd.f32 0.0, %v2780
      %v2782 = vpop.f32.mrb[0].mxu0
      %2783 = vmatprep.mubr.bf16.mxu0 0
      %2784 = vmatmul.mubr.bf16.gmra.mrb[0].mxu0 %v609
      %v2785 = vpop.f32.mrb[0].mxu0
      %v2786 = vadd.f32 0.0, %v2785
      %v2787 = vpop.f32.mrb[0].mxu0
      %v2788 = vpop.f32.mrb[0].mxu0
      %v2789 = vadd.f32 0.0, %v2788
      %v2790 = vpop.f32.mrb[0].mxu0
      %2791 = vmatprep.mubr.bf16.mxu0 0
      %2792 = vmatmul.mubr.bf16.gmra.mrb[0].mxu0 %v610
      %v2793 = vpop.f32.mrb[0].mxu0
      %v2794 = vadd.f32 0.0, %v2793
      %v2795 = vpop.f32.mrb[0].mxu0
      %v2796 = vpop.f32.mrb[0].mxu0
      %v2797 = vadd.f32 0.0, %v2796
      %v2798 = vpop.f32.mrb[0].mxu0
      %2799 = vmatprep.mubr.bf16.mxu0 0
      %2800 = vmatmul.mubr.bf16.gmra.mrb[0].mxu0 %v611
      %v2801 = vpop.f32.mrb[0].mxu0
      %v2802 = vadd.f32 0.0, %v2801
      %v2803 = vpop.f32.mrb[0].mxu0
      %v2804 = vpop.f32.mrb[0].mxu0
      %v2805 = vadd.f32 0.0, %v2804
      %v2806 = vpop.f32.mrb[0].mxu0
      %2807 = vmatprep.mubr.bf16.mxu0 0
      %2808 = vmatmul.mubr.bf16.gmra.mrb[0].mxu0 %v612
      %v2809 = vpop.f32.mrb[0].mxu0
      %v2810 = vadd.f32 0.0, %v2809
      %v2811 = vpop.f32.mrb[0].mxu0
      %v2812 = vpop.f32.mrb[0].mxu0
      %v2813 = vadd.f32 0.0, %v2812
      %v2814 = vpop.f32.mrb[0].mxu0
      %2815 = vmatprep.mubr.bf16.mxu0 0
      %2816 = vmatmul.mubr.bf16.gmra.mrb[0].mxu0 %v613
      %v2817 = vpop.f32.mrb[0].mxu0
      %v2818 = vadd.f32 0.0, %v2817
      %v2819 = vpop.f32.mrb[0].mxu0
      %v2820 = vpop.f32.mrb[0].mxu0
      %v2821 = vadd.f32 0.0, %v2820
      %v2822 = vpop.f32.mrb[0].mxu0
      %2823 = vmatprep.mubr.bf16.mxu0 0
      %2824 = vmatmul.mubr.bf16.gmra.mrb[0].mxu0 %v614
      %v2825 = vpop.f32.mrb[0].mxu0
      %v2826 = vadd.f32 0.0, %v2825
      %v2827 = vpop.f32.mrb[0].mxu0
      %v2828 = vpop.f32.mrb[0].mxu0
      %v2829 = vadd.f32 0.0, %v2828
      %v2830 = vpop.f32.mrb[0].mxu0
      %2831 = vmatprep.mubr.bf16.mxu0 0
      %2832 = vmatmul.mubr.bf16.gmra.mrb[0].mxu0 0
      %v2833 = vpop.f32.mrb[0].mxu0
      %v2834 = vadd.f32 0.0, %v2833
      %v2835 = vpop.f32.mrb[0].mxu0
      %v2836 = vpop.f32.mrb[0].mxu0
      %v2837 = vadd.f32 0.0, %v2836
      %v2838 = vpop.f32.mrb[0].mxu0
      %2839 = vdwg.mxu0
      %v2840 = vadd.f32 %v2582, %v2714
      %v2841 = vadd.f32 %v2583, %v2717
      %v2842 = vadd.f32 %v2584, %v2722
      %v2843 = vadd.f32 %v2585, %v2725
      %v2844 = vadd.f32 %v2586, %v2730
      %v2845 = vadd.f32 %v2587, %v2733
      %v2846 = vadd.f32 %v2588, %v2738
      %v2847 = vadd.f32 %v2589, %v2741
      %v2848 = vadd.f32 %v2590, %v2746
      %v2849 = vadd.f32 %v2591, %v2749
      %v2850 = vadd.f32 %v2592, %v2754
      %v2851 = vadd.f32 %v2593, %v2757
      %v2852 = vadd.f32 %v2594, %v2762
      %v2853 = vadd.f32 %v2595, %v2765
      %v2854 = vadd.f32 %v2596, %v2770
      %v2855 = vadd.f32 %v2597, %v2773
      %v2856 = vadd.f32 %v2598, %v2778
      %v2857 = vadd.f32 %v2599, %v2781
      %v2858 = vadd.f32 %v2600, %v2786
      %v2859 = vadd.f32 %v2601, %v2789
      %v2860 = vadd.f32 %v2602, %v2794
      %v2861 = vadd.f32 %v2603, %v2797
      %v2862 = vadd.f32 %v2604, %v2802
      %v2863 = vadd.f32 %v2605, %v2805
      %v2864 = vadd.f32 %v2606, %v2810
      %v2865 = vadd.f32 %v2607, %v2813
      %v2866 = vadd.f32 %v2608, %v2818
      %v2867 = vadd.f32 %v2609, %v2821
      %v2868 = vadd.f32 %v2610, %v2826
      %v2869 = vadd.f32 %v2611, %v2829
      %v2870 = vadd.f32 %v2612, %v2834
      %v2871 = vadd.f32 %v2613, %v2837
      %vm2872 = vcmask 261120
      %2873 = vst.msk [vmem:[%s197] sm:$0xff] %vm2872, %v2840
      %2874 = vst.msk [vmem:[%s197 + $0x8] sm:$0xff] %vm2872, %v2841
      %2875 = vst.msk [vmem:[%s197 + $0x10] sm:$0xff] %vm2872, %v2842
      %2876 = vst.msk [vmem:[%s197 + $0x18] sm:$0xff] %vm2872, %v2843
      %2877 = vst.msk [vmem:[%s197 + $0x20] sm:$0xff] %vm2872, %v2844
      %2878 = vst.msk [vmem:[%s197 + $0x28] sm:$0xff] %vm2872, %v2845
      %2879 = vst.msk [vmem:[%s197 + $0x30] sm:$0xff] %vm2872, %v2846
      %2880 = vst.msk [vmem:[%s197 + $0x38] sm:$0xff] %vm2872, %v2847
      %2881 = vst.msk [vmem:[%s197 + $0x40] sm:$0xff] %vm2872, %v2848
      %2882 = vst.msk [vmem:[%s197 + $0x48] sm:$0xff] %vm2872, %v2849
      %2883 = vst.msk [vmem:[%s197 + $0x50] sm:$0xff] %vm2872, %v2850
      %2884 = vst.msk [vmem:[%s197 + $0x58] sm:$0xff] %vm2872, %v2851
      %2885 = vst.msk [vmem:[%s197 + $0x60] sm:$0xff] %vm2872, %v2852
      %2886 = vst.msk [vmem:[%s197 + $0x68] sm:$0xff] %vm2872, %v2853
      %2887 = vst.msk [vmem:[%s197 + $0x70] sm:$0xff] %vm2872, %v2854
      %2888 = vst.msk [vmem:[%s197 + $0x78] sm:$0xff] %vm2872, %v2855
      %2889 = vst.msk [vmem:[%s197 + $0x80] sm:$0xff] %vm2872, %v2856
      %2890 = vst.msk [vmem:[%s197 + $0x88] sm:$0xff] %vm2872, %v2857
      %2891 = vst.msk [vmem:[%s197 + $0x90] sm:$0xff] %vm2872, %v2858
      %2892 = vst.msk [vmem:[%s197 + $0x98] sm:$0xff] %vm2872, %v2859
      %2893 = vst.msk [vmem:[%s197 + $0xa0] sm:$0xff] %vm2872, %v2860
      %2894 = vst.msk [vmem:[%s197 + $0xa8] sm:$0xff] %vm2872, %v2861
      %2895 = vst.msk [vmem:[%s197 + $0xb0] sm:$0xff] %vm2872, %v2862
      %2896 = vst.msk [vmem:[%s197 + $0xb8] sm:$0xff] %vm2872, %v2863
      %2897 = vst.msk [vmem:[%s197 + $0xc0] sm:$0xff] %vm2872, %v2864
      %2898 = vst.msk [vmem:[%s197 + $0xc8] sm:$0xff] %vm2872, %v2865
      %2899 = vst.msk [vmem:[%s197 + $0xd0] sm:$0xff] %vm2872, %v2866
      %2900 = vst.msk [vmem:[%s197 + $0xd8] sm:$0xff] %vm2872, %v2867
      %2901 = vst.msk [vmem:[%s197 + $0xe0] sm:$0xff] %vm2872, %v2868
      %2902 = vst.msk [vmem:[%s197 + $0xe8] sm:$0xff] %vm2872, %v2869
      %2903 = vst.msk [vmem:[%s197 + $0xf0] sm:$0xff] %vm2872, %v2870
      %2904 = vst.msk [vmem:[%s197 + $0xf8] sm:$0xff] %vm2872, %v2871
      %p2905 = scmp.lt.s32.totalorder %s15, 1
      %s2906 = scalar_select %p2905, %s15, 1
      %s2907 = smul.addr %s2906, 32
      %s2908 = smul.addr %s2907, 8
      %s2909 = scalar_lea.vmem %s4, %s2908
      // Predicated region
      $region37: #{dense_block_forward.8} parent=35 // pred_check
        %p2910 = pneg %p122
      $region38: #{dense_block_forward.8} parent=35 // pred_check_branch
        %2912 = sbr.rel (%p2910) target = $region40
      $region39: #{dense_block_forward.8} parent=35 // pred_region
        _
      $region40: #{dense_block_forward.8} parent=35 // pred_fallthru
        _
    $region36: #{dense_block_forward.8} parent=5 // pred_fallthru
      _
    %p2913 = scmp.le.s32.totalorder 2, %s10
    // Predicated region
    $region41: #{dense_block_forward.8} parent=5 // pred_check
      %p2914 = pneg %p2913
    $region42: #{dense_block_forward.8} parent=5 // pred_check_branch
      %2916 = sbr.rel (%p2914) target = $region44
    $region43: #{dense_block_forward.8} parent=5 // pred_region
      %s2917 = ssub.s32 %s10, 2
      // Predicated region
      $region45: #{dense_block_forward.8} parent=43 // pred_check
        %p2918 = pneg %p128
      $region46: #{dense_block_forward.8} parent=43 // pred_check_branch
        %2920 = sbr.rel (%p2918) target = $region48
      $region47: #{dense_block_forward.8} parent=43 // pred_region
        %p2921 = scmp.lt.s32.totalorder %s16, 1
        %s2922 = scalar_select %p2921, %s16, 1
        %s2923 = smul.addr %s2922, 32
        %s2924 = smul.addr %s2923, 8
        %s2925 = scalar_lea.vmem %s4, %s2924
      $region48: #{dense_block_forward.8} parent=43 // pred_fallthru
        _
    $region44: #{dense_block_forward.8} parent=5 // pred_fallthru
      _
  $region6: #{dense_block_forward.8} parent=0 // loop_footer
    %s14 = sadd.s32 1, %s10
  $region7: #{dense_block_forward.8} parent=0 // loop_footer_branch
    %9 = sbr.rel target = $region3
  $region8: #{dense_block_forward.8} parent=0 // loop_exit
    _

// kernel: dense_block_forward.10
$region0: #{dense_block_forward.10}
  #allocation0 [shape = 'u32[]', space=smem, size = 0x4, offset = 0x4, fixed_abs, tag = 'smem constant byte address 0x4 - core index']
  #allocation1 [shape = 'u32[144,128]{1,0:T(1,128)}', space=vmem, size = 0x12000, scoped, tag = 'internal scratch']
  %s0 = inlined_call_operand.vmem [shape: f32[512,64], index: 0, kind: input, shape index: {}]
  %s1 = inlined_call_operand.vmem [shape: f32[1,64], index: 1, kind: input, shape index: {}]
  %s2 = inlined_call_operand.vmem [shape: f32[1,64], index: 2, kind: input, shape index: {}]
  %s3 = inlined_call_operand.vmem [shape: bf16[64,128], index: 3, kind: input, shape index: {}]
  %s4 = inlined_call_operand.vmem [shape: f32[512,128], index: 4, kind: output, shape index: {0}]
  %s5 = inlined_call_operand.vmem [shape: f32[1,1,128], index: 5, kind: output, shape index: {1}]
  %s6 = inlined_call_operand.vmem [shape: f32[1,1,128], index: 6, kind: output, shape index: {2}]
  %7 = xla_tuple %s4, %s5, %s6
  %s8 = sld [smem:[#allocation0]]
  $region42: #{dense_block_forward.10} parent=0
    _
  %s10 = ssub.s32 1, %s8
  %s11 = scalar_select 0, %s10, %s8
  // Predicated region
  $region2: #{dense_block_forward.10} parent=0 // pred_check
    _
  $region3: #{dense_block_forward.10} parent=0 // pred_check_branch
    %13 = sbr.rel (0) target = $region5
  $region4: #{dense_block_forward.10} parent=0 // pred_region
    _
  $region5: #{dense_block_forward.10} parent=0 // pred_fallthru
    _
  // Predicated region
  $region6: #{dense_block_forward.10} parent=0 // pred_check
    _
  $region7: #{dense_block_forward.10} parent=0 // pred_check_branch
    %15 = sbr.rel (0) target = $region9
  $region8: #{dense_block_forward.10} parent=0 // pred_region
    _
  $region9: #{dense_block_forward.10} parent=0 // pred_fallthru
    _
  // Predicated region
  $region10: #{dense_block_forward.10} parent=0 // pred_check
    _
  $region11: #{dense_block_forward.10} parent=0 // pred_check_branch
    %17 = sbr.rel (0) target = $region13
  $region12: #{dense_block_forward.10} parent=0 // pred_region
    _
  $region13: #{dense_block_forward.10} parent=0 // pred_fallthru
    _
  // Predicated region
  $region14: #{dense_block_forward.10} parent=0 // pred_check
    _
  $region15: #{dense_block_forward.10} parent=0 // pred_check_branch
    %19 = sbr.rel (0) target = $region17
  $region16: #{dense_block_forward.10} parent=0 // pred_region
    _
  $region17: #{dense_block_forward.10} parent=0 // pred_fallthru
    _
  %v21 = vld [vmem:[%s0] sm:$0xff]
  %v22 = vld [vmem:[%s0 + $0x8] sm:$0xff]
  %v23 = vld [vmem:[%s0 + $0x10] sm:$0xff]
  %v24 = vld [vmem:[%s0 + $0x18] sm:$0xff]
  %v25 = vld [vmem:[%s0 + $0x20] sm:$0xff]
  %v26 = vld [vmem:[%s0 + $0x28] sm:$0xff]
  %v27 = vld [vmem:[%s0 + $0x30] sm:$0xff]
  %v28 = vld [vmem:[%s0 + $0x38] sm:$0xff]
  %v29 = vld [vmem:[%s0 + $0x40] sm:$0xff]
  %v30 = vld [vmem:[%s0 + $0x48] sm:$0xff]
  %v31 = vld [vmem:[%s0 + $0x50] sm:$0xff]
  %v32 = vld [vmem:[%s0 + $0x58] sm:$0xff]
  %v33 = vld [vmem:[%s0 + $0x60] sm:$0xff]
  %v34 = vld [vmem:[%s0 + $0x68] sm:$0xff]
  %v35 = vld [vmem:[%s0 + $0x70] sm:$0xff]
  %v36 = vld [vmem:[%s0 + $0x78] sm:$0xff]
  %v37 = vld [vmem:[%s0 + $0x80] sm:$0xff]
  %v38 = vld [vmem:[%s0 + $0x88] sm:$0xff]
  %v39 = vld [vmem:[%s0 + $0x90] sm:$0xff]
  %v40 = vld [vmem:[%s0 + $0x98] sm:$0xff]
  %v41 = vld [vmem:[%s0 + $0xa0] sm:$0xff]
  %v42 = vld [vmem:[%s0 + $0xa8] sm:$0xff]
  %v43 = vld [vmem:[%s0 + $0xb0] sm:$0xff]
  %v44 = vld [vmem:[%s0 + $0xb8] sm:$0xff]
  %v45 = vld [vmem:[%s0 + $0xc0] sm:$0xff]
  %v46 = vld [vmem:[%s0 + $0xc8] sm:$0xff]
  %v47 = vld [vmem:[%s0 + $0xd0] sm:$0xff]
  %v48 = vld [vmem:[%s0 + $0xd8] sm:$0xff]
  %v49 = vld [vmem:[%s0 + $0xe0] sm:$0xff]
  %v50 = vld [vmem:[%s0 + $0xe8] sm:$0xff]
  %v51 = vld [vmem:[%s0 + $0xf0] sm:$0xff]
  %v52 = vld [vmem:[%s0 + $0xf8] sm:$0xff]
  %v53 = vld [vmem:[%s0 + $0x100] sm:$0xff]
  %v54 = vld [vmem:[%s0 + $0x108] sm:$0xff]
  %v55 = vld [vmem:[%s0 + $0x110] sm:$0xff]
  %v56 = vld [vmem:[%s0 + $0x118] sm:$0xff]
  %v57 = vld [vmem:[%s0 + $0x120] sm:$0xff]
  %v58 = vld [vmem:[%s0 + $0x128] sm:$0xff]
  %v59 = vld [vmem:[%s0 + $0x130] sm:$0xff]
  %v60 = vld [vmem:[%s0 + $0x138] sm:$0xff]
  %v61 = vld [vmem:[%s0 + $0x140] sm:$0xff]
  %v62 = vld [vmem:[%s0 + $0x148] sm:$0xff]
  %v63 = vld [vmem:[%s0 + $0x150] sm:$0xff]
  %v64 = vld [vmem:[%s0 + $0x158] sm:$0xff]
  %v65 = vld [vmem:[%s0 + $0x160] sm:$0xff]
  %v66 = vld [vmem:[%s0 + $0x168] sm:$0xff]
  %v67 = vld [vmem:[%s0 + $0x170] sm:$0xff]
  %v68 = vld [vmem:[%s0 + $0x178] sm:$0xff]
  %v69 = vld [vmem:[%s0 + $0x180] sm:$0xff]
  %v70 = vld [vmem:[%s0 + $0x188] sm:$0xff]
  %v71 = vld [vmem:[%s0 + $0x190] sm:$0xff]
  %v72 = vld [vmem:[%s0 + $0x198] sm:$0xff]
  %v73 = vld [vmem:[%s0 + $0x1a0] sm:$0xff]
  %v74 = vld [vmem:[%s0 + $0x1a8] sm:$0xff]
  %v75 = vld [vmem:[%s0 + $0x1b0] sm:$0xff]
  %v76 = vld [vmem:[%s0 + $0x1b8] sm:$0xff]
  %v77 = vld [vmem:[%s0 + $0x1c0] sm:$0xff]
  %v78 = vld [vmem:[%s0 + $0x1c8] sm:$0xff]
  %v79 = vld [vmem:[%s0 + $0x1d0] sm:$0xff]
  %v80 = vld [vmem:[%s0 + $0x1d8] sm:$0xff]
  %v81 = vld [vmem:[%s0 + $0x1e0] sm:$0xff]
  %v82 = vld [vmem:[%s0 + $0x1e8] sm:$0xff]
  %v83 = vld [vmem:[%s0 + $0x1f0] sm:$0xff]
  %v84 = vld [vmem:[%s0 + $0x1f8] sm:$0xff]
  %v85 = vld [vmem:[%s1] sm:$0x1]
  %v87 = vlaneseq
  %v88 = vshrl.u32 %v87, 7
  %v89 = vsub.s32 0, %v88
  %v90 = vrot.slane %v85, %v89
  %v92 = vmul.f32 %v21, %v90
  %v93 = vmul.f32 %v22, %v90
  %v94 = vmul.f32 %v23, %v90
  %v95 = vmul.f32 %v24, %v90
  %v96 = vmul.f32 %v25, %v90
  %v97 = vmul.f32 %v26, %v90
  %v98 = vmul.f32 %v27, %v90
  %v99 = vmul.f32 %v28, %v90
  %v100 = vmul.f32 %v29, %v90
  %v101 = vmul.f32 %v30, %v90
  %v102 = vmul.f32 %v31, %v90
  %v103 = vmul.f32 %v32, %v90
  %v104 = vmul.f32 %v33, %v90
  %v105 = vmul.f32 %v34, %v90
  %v106 = vmul.f32 %v35, %v90
  %v107 = vmul.f32 %v36, %v90
  %v108 = vmul.f32 %v37, %v90
  %v109 = vmul.f32 %v38, %v90
  %v110 = vmul.f32 %v39, %v90
  %v111 = vmul.f32 %v40, %v90
  %v112 = vmul.f32 %v41, %v90
  %v113 = vmul.f32 %v42, %v90
  %v114 = vmul.f32 %v43, %v90
  %v115 = vmul.f32 %v44, %v90
  %v116 = vmul.f32 %v45, %v90
  %v117 = vmul.f32 %v46, %v90
  %v118 = vmul.f32 %v47, %v90
  %v119 = vmul.f32 %v48, %v90
  %v120 = vmul.f32 %v49, %v90
  %v121 = vmul.f32 %v50, %v90
  %v122 = vmul.f32 %v51, %v90
  %v123 = vmul.f32 %v52, %v90
  %v124 = vmul.f32 %v53, %v90
  %v125 = vmul.f32 %v54, %v90
  %v126 = vmul.f32 %v55, %v90
  %v127 = vmul.f32 %v56, %v90
  %v128 = vmul.f32 %v57, %v90
  %v129 = vmul.f32 %v58, %v90
  %v130 = vmul.f32 %v59, %v90
  %v131 = vmul.f32 %v60, %v90
  %v132 = vmul.f32 %v61, %v90
  %v133 = vmul.f32 %v62, %v90
  %v134 = vmul.f32 %v63, %v90
  %v135 = vmul.f32 %v64, %v90
  %v136 = vmul.f32 %v65, %v90
  %v137 = vmul.f32 %v66, %v90
  %v138 = vmul.f32 %v67, %v90
  %v139 = vmul.f32 %v68, %v90
  %v140 = vmul.f32 %v69, %v90
  %v141 = vmul.f32 %v70, %v90
  %v142 = vmul.f32 %v71, %v90
  %v143 = vmul.f32 %v72, %v90
  %v144 = vmul.f32 %v73, %v90
  %v145 = vmul.f32 %v74, %v90
  %v146 = vmul.f32 %v75, %v90
  %v147 = vmul.f32 %v76, %v90
  %v148 = vmul.f32 %v77, %v90
  %v149 = vmul.f32 %v78, %v90
  %v150 = vmul.f32 %v79, %v90
  %v151 = vmul.f32 %v80, %v90
  %v152 = vmul.f32 %v81, %v90
  %v153 = vmul.f32 %v82, %v90
  %v154 = vmul.f32 %v83, %v90
  %v155 = vmul.f32 %v84, %v90
  %v156 = vld [vmem:[%s2] sm:$0x1]
  %v158 = vlaneseq
  %v159 = vshrl.u32 %v158, 7
  %v160 = vsub.s32 0, %v159
  %v161 = vrot.slane %v156, %v160
  %v163 = vadd.f32 %v92, %v161
  %v164 = vadd.f32 %v93, %v161
  %v165 = vadd.f32 %v94, %v161
  %v166 = vadd.f32 %v95, %v161
  %v167 = vadd.f32 %v96, %v161
  %v168 = vadd.f32 %v97, %v161
  %v169 = vadd.f32 %v98, %v161
  %v170 = vadd.f32 %v99, %v161
  %v171 = vadd.f32 %v100, %v161
  %v172 = vadd.f32 %v101, %v161
  %v173 = vadd.f32 %v102, %v161
  %v174 = vadd.f32 %v103, %v161
  %v175 = vadd.f32 %v104, %v161
  %v176 = vadd.f32 %v105, %v161
  %v177 = vadd.f32 %v106, %v161
  %v178 = vadd.f32 %v107, %v161
  %v179 = vadd.f32 %v108, %v161
  %v180 = vadd.f32 %v109, %v161
  %v181 = vadd.f32 %v110, %v161
  %v182 = vadd.f32 %v111, %v161
  %v183 = vadd.f32 %v112, %v161
  %v184 = vadd.f32 %v113, %v161
  %v185 = vadd.f32 %v114, %v161
  %v186 = vadd.f32 %v115, %v161
  %v187 = vadd.f32 %v116, %v161
  %v188 = vadd.f32 %v117, %v161
  %v189 = vadd.f32 %v118, %v161
  %v190 = vadd.f32 %v119, %v161
  %v191 = vadd.f32 %v120, %v161
  %v192 = vadd.f32 %v121, %v161
  %v193 = vadd.f32 %v122, %v161
  %v194 = vadd.f32 %v123, %v161
  %v195 = vadd.f32 %v124, %v161
  %v196 = vadd.f32 %v125, %v161
  %v197 = vadd.f32 %v126, %v161
  %v198 = vadd.f32 %v127, %v161
  %v199 = vadd.f32 %v128, %v161
  %v200 = vadd.f32 %v129, %v161
  %v201 = vadd.f32 %v130, %v161
  %v202 = vadd.f32 %v131, %v161
  %v203 = vadd.f32 %v132, %v161
  %v204 = vadd.f32 %v133, %v161
  %v205 = vadd.f32 %v134, %v161
  %v206 = vadd.f32 %v135, %v161
  %v207 = vadd.f32 %v136, %v161
  %v208 = vadd.f32 %v137, %v161
  %v209 = vadd.f32 %v138, %v161
  %v210 = vadd.f32 %v139, %v161
  %v211 = vadd.f32 %v140, %v161
  %v212 = vadd.f32 %v141, %v161
  %v213 = vadd.f32 %v142, %v161
  %v214 = vadd.f32 %v143, %v161
  %v215 = vadd.f32 %v144, %v161
  %v216 = vadd.f32 %v145, %v161
  %v217 = vadd.f32 %v146, %v161
  %v218 = vadd.f32 %v147, %v161
  %v219 = vadd.f32 %v148, %v161
  %v220 = vadd.f32 %v149, %v161
  %v221 = vadd.f32 %v150, %v161
  %v222 = vadd.f32 %v151, %v161
  %v223 = vadd.f32 %v152, %v161
  %v224 = vadd.f32 %v153, %v161
  %v225 = vadd.f32 %v154, %v161
  %v226 = vadd.f32 %v155, %v161
  %v227 = vmax.f32 %v163, 0.0
  %v228 = vmax.f32 %v164, 0.0
  %v229 = vmax.f32 %v165, 0.0
  %v230 = vmax.f32 %v166, 0.0
  %v231 = vmax.f32 %v167, 0.0
  %v232 = vmax.f32 %v168, 0.0
  %v233 = vmax.f32 %v169, 0.0
  %v234 = vmax.f32 %v170, 0.0
  %v235 = vmax.f32 %v171, 0.0
  %v236 = vmax.f32 %v172, 0.0
  %v237 = vmax.f32 %v173, 0.0
  %v238 = vmax.f32 %v174, 0.0
  %v239 = vmax.f32 %v175, 0.0
  %v240 = vmax.f32 %v176, 0.0
  %v241 = vmax.f32 %v177, 0.0
  %v242 = vmax.f32 %v178, 0.0
  %v243 = vmax.f32 %v179, 0.0
  %v244 = vmax.f32 %v180, 0.0
  %v245 = vmax.f32 %v181, 0.0
  %v246 = vmax.f32 %v182, 0.0
  %v247 = vmax.f32 %v183, 0.0
  %v248 = vmax.f32 %v184, 0.0
  %v249 = vmax.f32 %v185, 0.0
  %v250 = vmax.f32 %v186, 0.0
  %v251 = vmax.f32 %v187, 0.0
  %v252 = vmax.f32 %v188, 0.0
  %v253 = vmax.f32 %v189, 0.0
  %v254 = vmax.f32 %v190, 0.0
  %v255 = vmax.f32 %v191, 0.0
  %v256 = vmax.f32 %v192, 0.0
  %v257 = vmax.f32 %v193, 0.0
  %v258 = vmax.f32 %v194, 0.0
  %v259 = vmax.f32 %v195, 0.0
  %v260 = vmax.f32 %v196, 0.0
  %v261 = vmax.f32 %v197, 0.0
  %v262 = vmax.f32 %v198, 0.0
  %v263 = vmax.f32 %v199, 0.0
  %v264 = vmax.f32 %v200, 0.0
  %v265 = vmax.f32 %v201, 0.0
  %v266 = vmax.f32 %v202, 0.0
  %v267 = vmax.f32 %v203, 0.0
  %v268 = vmax.f32 %v204, 0.0
  %v269 = vmax.f32 %v205, 0.0
  %v270 = vmax.f32 %v206, 0.0
  %v271 = vmax.f32 %v207, 0.0
  %v272 = vmax.f32 %v208, 0.0
  %v273 = vmax.f32 %v209, 0.0
  %v274 = vmax.f32 %v210, 0.0
  %v275 = vmax.f32 %v211, 0.0
  %v276 = vmax.f32 %v212, 0.0
  %v277 = vmax.f32 %v213, 0.0
  %v278 = vmax.f32 %v214, 0.0
  %v279 = vmax.f32 %v215, 0.0
  %v280 = vmax.f32 %v216, 0.0
  %v281 = vmax.f32 %v217, 0.0
  %v282 = vmax.f32 %v218, 0.0
  %v283 = vmax.f32 %v219, 0.0
  %v284 = vmax.f32 %v220, 0.0
  %v285 = vmax.f32 %v221, 0.0
  %v286 = vmax.f32 %v222, 0.0
  %v287 = vmax.f32 %v223, 0.0
  %v288 = vmax.f32 %v224, 0.0
  %v289 = vmax.f32 %v225, 0.0
  %v290 = vmax.f32 %v226, 0.0
  %v291 = vpack.c.bf16 %v228, %v227
  %v292 = vpack.c.bf16 %v230, %v229
  %v293 = vpack.c.bf16 %v232, %v231
  %v294 = vpack.c.bf16 %v234, %v233
  %v295 = vpack.c.bf16 %v236, %v235
  %v296 = vpack.c.bf16 %v238, %v237
  %v297 = vpack.c.bf16 %v240, %v239
  %v298 = vpack.c.bf16 %v242, %v241
  %v299 = vpack.c.bf16 %v244, %v243
  %v300 = vpack.c.bf16 %v246, %v245
  %v301 = vpack.c.bf16 %v248, %v247
  %v302 = vpack.c.bf16 %v250, %v249
  %v303 = vpack.c.bf16 %v252, %v251
  %v304 = vpack.c.bf16 %v254, %v253
  %v305 = vpack.c.bf16 %v256, %v255
  %v306 = vpack.c.bf16 %v258, %v257
  %v307 = vpack.c.bf16 %v260, %v259
  %v308 = vpack.c.bf16 %v262, %v261
  %v309 = vpack.c.bf16 %v264, %v263
  %v310 = vpack.c.bf16 %v266, %v265
  %v311 = vpack.c.bf16 %v268, %v267
  %v312 = vpack.c.bf16 %v270, %v269
  %v313 = vpack.c.bf16 %v272, %v271
  %v314 = vpack.c.bf16 %v274, %v273
  %v315 = vpack.c.bf16 %v276, %v275
  %v316 = vpack.c.bf16 %v278, %v277
  %v317 = vpack.c.bf16 %v280, %v279
  %v318 = vpack.c.bf16 %v282, %v281
  %v319 = vpack.c.bf16 %v284, %v283
  %v320 = vpack.c.bf16 %v286, %v285
  %v321 = vpack.c.bf16 %v288, %v287
  %v322 = vpack.c.bf16 %v290, %v289
  %v323 = vld [vmem:[%s3] sm:$0xf]
  %v324 = vld [vmem:[%s3 + $0x4] sm:$0xf]
  %v325 = vld [vmem:[%s3 + $0x8] sm:$0xf]
  %v326 = vld [vmem:[%s3 + $0xc] sm:$0xf]
  %v327 = vld [vmem:[%s3 + $0x10] sm:$0xf]
  %v328 = vld [vmem:[%s3 + $0x14] sm:$0xf]
  %v329 = vld [vmem:[%s3 + $0x18] sm:$0xf]
  %v330 = vld [vmem:[%s3 + $0x1c] sm:$0xf]
  %v339 = vunpack.c.l.b16 %v323
  %v340 = vunpack.c.l.b16 %v324
  %v341 = vunpack.c.l.b16 %v325
  %v342 = vunpack.c.l.b16 %v326
  %v343 = vunpack.c.l.b16 %v327
  %v344 = vunpack.c.l.b16 %v328
  %v345 = vunpack.c.l.b16 %v329
  %v346 = vunpack.c.l.b16 %v330
  %v347 = vpack.c.b16 %v340, %v339
  %v348 = vpack.c.b16 %v342, %v341
  %v349 = vpack.c.b16 %v344, %v343
  %v350 = vpack.c.b16 %v346, %v345
  %vm355 = vcmask 523264
  %v357 = vsel %vm355, %v291, 0
  %v360 = vsel %vm355, %v292, 0
  %v363 = vsel %vm355, %v293, 0
  %v366 = vsel %vm355, %v294, 0
  %v369 = vsel %vm355, %v295, 0
  %v372 = vsel %vm355, %v296, 0
  %v375 = vsel %vm355, %v297, 0
  %v378 = vsel %vm355, %v298, 0
  %v381 = vsel %vm355, %v299, 0
  %v384 = vsel %vm355, %v300, 0
  %v387 = vsel %vm355, %v301, 0
  %v390 = vsel %vm355, %v302, 0
  %v393 = vsel %vm355, %v303, 0
  %v396 = vsel %vm355, %v304, 0
  %v399 = vsel %vm355, %v305, 0
  %v402 = vsel %vm355, %v306, 0
  %v405 = vsel %vm355, %v307, 0
  %v408 = vsel %vm355, %v308, 0
  %v411 = vsel %vm355, %v309, 0
  %v414 = vsel %vm355, %v310, 0
  %v417 = vsel %vm355, %v311, 0
  %v420 = vsel %vm355, %v312, 0
  %v423 = vsel %vm355, %v313, 0
  %v426 = vsel %vm355, %v314, 0
  %v429 = vsel %vm355, %v315, 0
  %v432 = vsel %vm355, %v316, 0
  %v435 = vsel %vm355, %v317, 0
  %v438 = vsel %vm355, %v318, 0
  %v441 = vsel %vm355, %v319, 0
  %v444 = vsel %vm355, %v320, 0
  %v447 = vsel %vm355, %v321, 0
  %v450 = vsel %vm355, %v322, 0
  %452 = vmatprep.subr.bf16.mxu0 0
  %453 = vmatpush1.bf16.msra.mxu0 %v347
  %454 = vmatprep.subr.bf16.mxu0 0
  %455 = vmatpush1.bf16.msra.mxu0 %v348
  %456 = vmatprep.subr.bf16.mxu0 0
  %457 = vmatpush1.bf16.msra.mxu0 %v349
  %458 = vmatprep.subr.bf16.mxu0 0
  %459 = vmatpush1.bf16.msra.mxu0 %v350
  %460 = vmatprep.subr.bf16.mxu0 0
  %461 = vmatpush1.bf16.msra.mxu0 0
  %462 = vmatprep.subr.bf16.mxu0 0
  %463 = vmatpush1.bf16.msra.mxu0 0
  %464 = vmatprep.subr.bf16.mxu0 0
  %465 = vmatpush1.bf16.msra.mxu0 0
  %466 = vmatprep.subr.bf16.mxu0 0
  %467 = vmatpush1.bf16.msra.mxu0 0
  %468 = vmatprep.subr.bf16.mxu0 0
  %469 = vmatpush1.bf16.msra.mxu0 0
  %470 = vmatprep.subr.bf16.mxu0 0
  %471 = vmatpush1.bf16.msra.mxu0 0
  %472 = vmatprep.subr.bf16.mxu0 0
  %473 = vmatpush1.bf16.msra.mxu0 0
  %474 = vmatprep.subr.bf16.mxu0 0
  %475 = vmatpush1.bf16.msra.mxu0 0
  %476 = vmatprep.subr.bf16.mxu0 0
  %477 = vmatpush1.bf16.msra.mxu0 0
  %478 = vmatprep.subr.bf16.mxu0 0
  %479 = vmatpush1.bf16.msra.mxu0 0
  %480 = vmatprep.subr.bf16.mxu0 0
  %481 = vmatpush1.bf16.msra.mxu0 0
  %482 = vmatprep.subr.bf16.mxu0 0
  %483 = vmatpush1.bf16.msra.mxu0 0
  %484 = vmatprep.mubr.bf16.mxu0 0
  %485 = vmatmul.mubr.bf16.gmra.mrb[0].mxu0 %v357
  %v486 = vpop.f32.mrb[0].mxu0
  %v487 = vadd.f32 0.0, %v486
  %v488 = vpop.f32.mrb[0].mxu0
  %v489 = vpop.f32.mrb[0].mxu0
  %v490 = vadd.f32 0.0, %v489
  %v491 = vpop.f32.mrb[0].mxu0
  %492 = vmatprep.mubr.bf16.mxu0 0
  %493 = vmatmul.mubr.bf16.gmra.mrb[0].mxu0 %v360
  %v494 = vpop.f32.mrb[0].mxu0
  %v495 = vadd.f32 0.0, %v494
  %v496 = vpop.f32.mrb[0].mxu0
  %v497 = vpop.f32.mrb[0].mxu0
  %v498 = vadd.f32 0.0, %v497
  %v499 = vpop.f32.mrb[0].mxu0
  %500 = vmatprep.mubr.bf16.mxu0 0
  %501 = vmatmul.mubr.bf16.gmra.mrb[0].mxu0 %v363
  %v502 = vpop.f32.mrb[0].mxu0
  %v503 = vadd.f32 0.0, %v502
  %v504 = vpop.f32.mrb[0].mxu0
  %v505 = vpop.f32.mrb[0].mxu0
  %v506 = vadd.f32 0.0, %v505
  %v507 = vpop.f32.mrb[0].mxu0
  %508 = vmatprep.mubr.bf16.mxu0 0
  %509 = vmatmul.mubr.bf16.gmra.mrb[0].mxu0 %v366
  %v510 = vpop.f32.mrb[0].mxu0
  %v511 = vadd.f32 0.0, %v510
  %v512 = vpop.f32.mrb[0].mxu0
  %v513 = vpop.f32.mrb[0].mxu0
  %v514 = vadd.f32 0.0, %v513
  %v515 = vpop.f32.mrb[0].mxu0
  %516 = vmatprep.mubr.bf16.mxu0 0
  %517 = vmatmul.mubr.bf16.gmra.mrb[0].mxu0 %v369
  %v518 = vpop.f32.mrb[0].mxu0
  %v519 = vadd.f32 0.0, %v518
  %v520 = vpop.f32.mrb[0].mxu0
  %v521 = vpop.f32.mrb[0].mxu0
  %v522 = vadd.f32 0.0, %v521
  %v523 = vpop.f32.mrb[0].mxu0
  %524 = vmatprep.mubr.bf16.mxu0 0
  %525 = vmatmul.mubr.bf16.gmra.mrb[0].mxu0 %v372
  %v526 = vpop.f32.mrb[0].mxu0
  %v527 = vadd.f32 0.0, %v526
  %v528 = vpop.f32.mrb[0].mxu0
  %v529 = vpop.f32.mrb[0].mxu0
  %v530 = vadd.f32 0.0, %v529
  %v531 = vpop.f32.mrb[0].mxu0
  %532 = vmatprep.mubr.bf16.mxu0 0
  %533 = vmatmul.mubr.bf16.gmra.mrb[0].mxu0 %v375
  %v534 = vpop.f32.mrb[0].mxu0
  %v535 = vadd.f32 0.0, %v534
  %v536 = vpop.f32.mrb[0].mxu0
  %v537 = vpop.f32.mrb[0].mxu0
  %v538 = vadd.f32 0.0, %v537
  %v539 = vpop.f32.mrb[0].mxu0
  %540 = vmatprep.mubr.bf16.mxu0 0
  %541 = vmatmul.mubr.bf16.gmra.mrb[0].mxu0 %v378
  %v542 = vpop.f32.mrb[0].mxu0
  %v543 = vadd.f32 0.0, %v542
  %v544 = vpop.f32.mrb[0].mxu0
  %v545 = vpop.f32.mrb[0].mxu0
  %v546 = vadd.f32 0.0, %v545
  %v547 = vpop.f32.mrb[0].mxu0
  %548 = vmatprep.mubr.bf16.mxu0 0
  %549 = vmatmul.mubr.bf16.gmra.mrb[0].mxu0 %v381
  %v550 = vpop.f32.mrb[0].mxu0
  %v551 = vadd.f32 0.0, %v550
  %v552 = vpop.f32.mrb[0].mxu0
  %v553 = vpop.f32.mrb[0].mxu0
  %v554 = vadd.f32 0.0, %v553
  %v555 = vpop.f32.mrb[0].mxu0
  %556 = vmatprep.mubr.bf16.mxu0 0
  %557 = vmatmul.mubr.bf16.gmra.mrb[0].mxu0 %v384
  %v558 = vpop.f32.mrb[0].mxu0
  %v559 = vadd.f32 0.0, %v558
  %v560 = vpop.f32.mrb[0].mxu0
  %v561 = vpop.f32.mrb[0].mxu0
  %v562 = vadd.f32 0.0, %v561
  %v563 = vpop.f32.mrb[0].mxu0
  %564 = vmatprep.mubr.bf16.mxu0 0
  %565 = vmatmul.mubr.bf16.gmra.mrb[0].mxu0 %v387
  %v566 = vpop.f32.mrb[0].mxu0
  %v567 = vadd.f32 0.0, %v566
  %v568 = vpop.f32.mrb[0].mxu0
  %v569 = vpop.f32.mrb[0].mxu0
  %v570 = vadd.f32 0.0, %v569
  %v571 = vpop.f32.mrb[0].mxu0
  %572 = vmatprep.mubr.bf16.mxu0 0
  %573 = vmatmul.mubr.bf16.gmra.mrb[0].mxu0 %v390
  %v574 = vpop.f32.mrb[0].mxu0
  %v575 = vadd.f32 0.0, %v574
  %v576 = vpop.f32.mrb[0].mxu0
  %v577 = vpop.f32.mrb[0].mxu0
  %v578 = vadd.f32 0.0, %v577
  %v579 = vpop.f32.mrb[0].mxu0
  %580 = vmatprep.mubr.bf16.mxu0 0
  %581 = vmatmul.mubr.bf16.gmra.mrb[0].mxu0 %v393
  %v582 = vpop.f32.mrb[0].mxu0
  %v583 = vadd.f32 0.0, %v582
  %v584 = vpop.f32.mrb[0].mxu0
  %v585 = vpop.f32.mrb[0].mxu0
  %v586 = vadd.f32 0.0, %v585
  %v587 = vpop.f32.mrb[0].mxu0
  %588 = vmatprep.mubr.bf16.mxu0 0
  %589 = vmatmul.mubr.bf16.gmra.mrb[0].mxu0 %v396
  %v590 = vpop.f32.mrb[0].mxu0
  %v591 = vadd.f32 0.0, %v590
  %v592 = vpop.f32.mrb[0].mxu0
  %v593 = vpop.f32.mrb[0].mxu0
  %v594 = vadd.f32 0.0, %v593
  %v595 = vpop.f32.mrb[0].mxu0
  %596 = vmatprep.mubr.bf16.mxu0 0
  %597 = vmatmul.mubr.bf16.gmra.mrb[0].mxu0 %v399
  %v598 = vpop.f32.mrb[0].mxu0
  %v599 = vadd.f32 0.0, %v598
  %v600 = vpop.f32.mrb[0].mxu0
  %v601 = vpop.f32.mrb[0].mxu0
  %v602 = vadd.f32 0.0, %v601
  %v603 = vpop.f32.mrb[0].mxu0
  %604 = vmatprep.mubr.bf16.mxu0 0
  %605 = vmatmul.mubr.bf16.gmra.mrb[0].mxu0 %v402
  %v606 = vpop.f32.mrb[0].mxu0
  %v607 = vadd.f32 0.0, %v606
  %v608 = vpop.f32.mrb[0].mxu0
  %v609 = vpop.f32.mrb[0].mxu0
  %v610 = vadd.f32 0.0, %v609
  %v611 = vpop.f32.mrb[0].mxu0
  %612 = vmatprep.mubr.bf16.mxu0 0
  %613 = vmatmul.mubr.bf16.gmra.mrb[0].mxu0 %v405
  %v614 = vpop.f32.mrb[0].mxu0
  %v615 = vadd.f32 0.0, %v614
  %v616 = vpop.f32.mrb[0].mxu0
  %v617 = vpop.f32.mrb[0].mxu0
  %v618 = vadd.f32 0.0, %v617
  %v619 = vpop.f32.mrb[0].mxu0
  %620 = vmatprep.mubr.bf16.mxu0 0
  %621 = vmatmul.mubr.bf16.gmra.mrb[0].mxu0 %v408
  %v622 = vpop.f32.mrb[0].mxu0
  %v623 = vadd.f32 0.0, %v622
  %v624 = vpop.f32.mrb[0].mxu0
  %v625 = vpop.f32.mrb[0].mxu0
  %v626 = vadd.f32 0.0, %v625
  %v627 = vpop.f32.mrb[0].mxu0
  %628 = vmatprep.mubr.bf16.mxu0 0
  %629 = vmatmul.mubr.bf16.gmra.mrb[0].mxu0 %v411
  %v630 = vpop.f32.mrb[0].mxu0
  %v631 = vadd.f32 0.0, %v630
  %v632 = vpop.f32.mrb[0].mxu0
  %v633 = vpop.f32.mrb[0].mxu0
  %v634 = vadd.f32 0.0, %v633
  %v635 = vpop.f32.mrb[0].mxu0
  %636 = vmatprep.mubr.bf16.mxu0 0
  %637 = vmatmul.mubr.bf16.gmra.mrb[0].mxu0 %v414
  %v638 = vpop.f32.mrb[0].mxu0
  %v639 = vadd.f32 0.0, %v638
  %v640 = vpop.f32.mrb[0].mxu0
  %v641 = vpop.f32.mrb[0].mxu0
  %v642 = vadd.f32 0.0, %v641
  %v643 = vpop.f32.mrb[0].mxu0
  %644 = vmatprep.mubr.bf16.mxu0 0
  %645 = vmatmul.mubr.bf16.gmra.mrb[0].mxu0 %v417
  %v646 = vpop.f32.mrb[0].mxu0
  %v647 = vadd.f32 0.0, %v646
  %v648 = vpop.f32.mrb[0].mxu0
  %v649 = vpop.f32.mrb[0].mxu0
  %v650 = vadd.f32 0.0, %v649
  %v651 = vpop.f32.mrb[0].mxu0
  %652 = vmatprep.mubr.bf16.mxu0 0
  %653 = vmatmul.mubr.bf16.gmra.mrb[0].mxu0 %v420
  %v654 = vpop.f32.mrb[0].mxu0
  %v655 = vadd.f32 0.0, %v654
  %v656 = vpop.f32.mrb[0].mxu0
  %v657 = vpop.f32.mrb[0].mxu0
  %v658 = vadd.f32 0.0, %v657
  %v659 = vpop.f32.mrb[0].mxu0
  %660 = vmatprep.mubr.bf16.mxu0 0
  %661 = vmatmul.mubr.bf16.gmra.mrb[0].mxu0 %v423
  %v662 = vpop.f32.mrb[0].mxu0
  %v663 = vadd.f32 0.0, %v662
  %v664 = vpop.f32.mrb[0].mxu0
  %v665 = vpop.f32.mrb[0].mxu0
  %v666 = vadd.f32 0.0, %v665
  %v667 = vpop.f32.mrb[0].mxu0
  %668 = vmatprep.mubr.bf16.mxu0 0
  %669 = vmatmul.mubr.bf16.gmra.mrb[0].mxu0 %v426
  %v670 = vpop.f32.mrb[0].mxu0
  %v671 = vadd.f32 0.0, %v670
  %v672 = vpop.f32.mrb[0].mxu0
  %v673 = vpop.f32.mrb[0].mxu0
  %v674 = vadd.f32 0.0, %v673
  %v675 = vpop.f32.mrb[0].mxu0
  %676 = vmatprep.mubr.bf16.mxu0 0
  %677 = vmatmul.mubr.bf16.gmra.mrb[0].mxu0 %v429
  %v678 = vpop.f32.mrb[0].mxu0
  %v679 = vadd.f32 0.0, %v678
  %v680 = vpop.f32.mrb[0].mxu0
  %v681 = vpop.f32.mrb[0].mxu0
  %v682 = vadd.f32 0.0, %v681
  %v683 = vpop.f32.mrb[0].mxu0
  %684 = vmatprep.mubr.bf16.mxu0 0
  %685 = vmatmul.mubr.bf16.gmra.mrb[0].mxu0 %v432
  %v686 = vpop.f32.mrb[0].mxu0
  %v687 = vadd.f32 0.0, %v686
  %v688 = vpop.f32.mrb[0].mxu0
  %v689 = vpop.f32.mrb[0].mxu0
  %v690 = vadd.f32 0.0, %v689
  %v691 = vpop.f32.mrb[0].mxu0
  %692 = vmatprep.mubr.bf16.mxu0 0
  %693 = vmatmul.mubr.bf16.gmra.mrb[0].mxu0 %v435
  %v694 = vpop.f32.mrb[0].mxu0
  %v695 = vadd.f32 0.0, %v694
  %v696 = vpop.f32.mrb[0].mxu0
  %v697 = vpop.f32.mrb[0].mxu0
  %v698 = vadd.f32 0.0, %v697
  %v699 = vpop.f32.mrb[0].mxu0
  %700 = vmatprep.mubr.bf16.mxu0 0
  %701 = vmatmul.mubr.bf16.gmra.mrb[0].mxu0 %v438
  %v702 = vpop.f32.mrb[0].mxu0
  %v703 = vadd.f32 0.0, %v702
  %v704 = vpop.f32.mrb[0].mxu0
  %v705 = vpop.f32.mrb[0].mxu0
  %v706 = vadd.f32 0.0, %v705
  %v707 = vpop.f32.mrb[0].mxu0
  %708 = vmatprep.mubr.bf16.mxu0 0
  %709 = vmatmul.mubr.bf16.gmra.mrb[0].mxu0 %v441
  %v710 = vpop.f32.mrb[0].mxu0
  %v711 = vadd.f32 0.0, %v710
  %v712 = vpop.f32.mrb[0].mxu0
  %v713 = vpop.f32.mrb[0].mxu0
  %v714 = vadd.f32 0.0, %v713
  %v715 = vpop.f32.mrb[0].mxu0
  %716 = vmatprep.mubr.bf16.mxu0 0
  %717 = vmatmul.mubr.bf16.gmra.mrb[0].mxu0 %v444
  %v718 = vpop.f32.mrb[0].mxu0
  %v719 = vadd.f32 0.0, %v718
  %v720 = vpop.f32.mrb[0].mxu0
  %v721 = vpop.f32.mrb[0].mxu0
  %v722 = vadd.f32 0.0, %v721
  %v723 = vpop.f32.mrb[0].mxu0
  %724 = vmatprep.mubr.bf16.mxu0 0
  %725 = vmatmul.mubr.bf16.gmra.mrb[0].mxu0 %v447
  %v726 = vpop.f32.mrb[0].mxu0
  %v727 = vadd.f32 0.0, %v726
  %v728 = vpop.f32.mrb[0].mxu0
  %v729 = vpop.f32.mrb[0].mxu0
  %v730 = vadd.f32 0.0, %v729
  %v731 = vpop.f32.mrb[0].mxu0
  %732 = vmatprep.mubr.bf16.mxu0 0
  %733 = vmatmul.mubr.bf16.gmra.mrb[0].mxu0 %v450
  %v734 = vpop.f32.mrb[0].mxu0
  %v735 = vadd.f32 0.0, %v734
  %v736 = vpop.f32.mrb[0].mxu0
  %v737 = vpop.f32.mrb[0].mxu0
  %v738 = vadd.f32 0.0, %v737
  %v739 = vpop.f32.mrb[0].mxu0
  %740 = vdwg.mxu0
  %741 = vst [vmem:[%s4] sm:$0xff] %v487
  %742 = vst [vmem:[%s4 + $0x8] sm:$0xff] %v490
  %743 = vst [vmem:[%s4 + $0x10] sm:$0xff] %v495
  %744 = vst [vmem:[%s4 + $0x18] sm:$0xff] %v498
  %745 = vst [vmem:[%s4 + $0x20] sm:$0xff] %v503
  %746 = vst [vmem:[%s4 + $0x28] sm:$0xff] %v506
  %747 = vst [vmem:[%s4 + $0x30] sm:$0xff] %v511
  %748 = vst [vmem:[%s4 + $0x38] sm:$0xff] %v514
  %749 = vst [vmem:[%s4 + $0x40] sm:$0xff] %v519
  %750 = vst [vmem:[%s4 + $0x48] sm:$0xff] %v522
  %751 = vst [vmem:[%s4 + $0x50] sm:$0xff] %v527
  %752 = vst [vmem:[%s4 + $0x58] sm:$0xff] %v530
  %753 = vst [vmem:[%s4 + $0x60] sm:$0xff] %v535
  %754 = vst [vmem:[%s4 + $0x68] sm:$0xff] %v538
  %755 = vst [vmem:[%s4 + $0x70] sm:$0xff] %v543
  %756 = vst [vmem:[%s4 + $0x78] sm:$0xff] %v546
  %757 = vst [vmem:[%s4 + $0x80] sm:$0xff] %v551
  %758 = vst [vmem:[%s4 + $0x88] sm:$0xff] %v554
  %759 = vst [vmem:[%s4 + $0x90] sm:$0xff] %v559
  %760 = vst [vmem:[%s4 + $0x98] sm:$0xff] %v562
  %761 = vst [vmem:[%s4 + $0xa0] sm:$0xff] %v567
  %762 = vst [vmem:[%s4 + $0xa8] sm:$0xff] %v570
  %763 = vst [vmem:[%s4 + $0xb0] sm:$0xff] %v575
  %764 = vst [vmem:[%s4 + $0xb8] sm:$0xff] %v578
  %765 = vst [vmem:[%s4 + $0xc0] sm:$0xff] %v583
  %766 = vst [vmem:[%s4 + $0xc8] sm:$0xff] %v586
  %767 = vst [vmem:[%s4 + $0xd0] sm:$0xff] %v591
  %768 = vst [vmem:[%s4 + $0xd8] sm:$0xff] %v594
  %769 = vst [vmem:[%s4 + $0xe0] sm:$0xff] %v599
  %770 = vst [vmem:[%s4 + $0xe8] sm:$0xff] %v602
  %771 = vst [vmem:[%s4 + $0xf0] sm:$0xff] %v607
  %772 = vst [vmem:[%s4 + $0xf8] sm:$0xff] %v610
  %773 = vst [vmem:[%s4 + $0x100] sm:$0xff] %v615
  %774 = vst [vmem:[%s4 + $0x108] sm:$0xff] %v618
  %775 = vst [vmem:[%s4 + $0x110] sm:$0xff] %v623
  %776 = vst [vmem:[%s4 + $0x118] sm:$0xff] %v626
  %777 = vst [vmem:[%s4 + $0x120] sm:$0xff] %v631
  %778 = vst [vmem:[%s4 + $0x128] sm:$0xff] %v634
  %779 = vst [vmem:[%s4 + $0x130] sm:$0xff] %v639
  %780 = vst [vmem:[%s4 + $0x138] sm:$0xff] %v642
  %781 = vst [vmem:[%s4 + $0x140] sm:$0xff] %v647
  %782 = vst [vmem:[%s4 + $0x148] sm:$0xff] %v650
  %783 = vst [vmem:[%s4 + $0x150] sm:$0xff] %v655
  %784 = vst [vmem:[%s4 + $0x158] sm:$0xff] %v658
  %785 = vst [vmem:[%s4 + $0x160] sm:$0xff] %v663
  %786 = vst [vmem:[%s4 + $0x168] sm:$0xff] %v666
  %787 = vst [vmem:[%s4 + $0x170] sm:$0xff] %v671
  %788 = vst [vmem:[%s4 + $0x178] sm:$0xff] %v674
  %789 = vst [vmem:[%s4 + $0x180] sm:$0xff] %v679
  %790 = vst [vmem:[%s4 + $0x188] sm:$0xff] %v682
  %791 = vst [vmem:[%s4 + $0x190] sm:$0xff] %v687
  %792 = vst [vmem:[%s4 + $0x198] sm:$0xff] %v690
  %793 = vst [vmem:[%s4 + $0x1a0] sm:$0xff] %v695
  %794 = vst [vmem:[%s4 + $0x1a8] sm:$0xff] %v698
  %795 = vst [vmem:[%s4 + $0x1b0] sm:$0xff] %v703
  %796 = vst [vmem:[%s4 + $0x1b8] sm:$0xff] %v706
  %797 = vst [vmem:[%s4 + $0x1c0] sm:$0xff] %v711
  %798 = vst [vmem:[%s4 + $0x1c8] sm:$0xff] %v714
  %799 = vst [vmem:[%s4 + $0x1d0] sm:$0xff] %v719
  %800 = vst [vmem:[%s4 + $0x1d8] sm:$0xff] %v722
  %801 = vst [vmem:[%s4 + $0x1e0] sm:$0xff] %v727
  %802 = vst [vmem:[%s4 + $0x1e8] sm:$0xff] %v730
  %803 = vst [vmem:[%s4 + $0x1f0] sm:$0xff] %v735
  %804 = vst [vmem:[%s4 + $0x1f8] sm:$0xff] %v738
  %v805 = vadd.f32 %v487, %v490
  %v806 = vadd.f32 %v805, %v495
  %v807 = vadd.f32 %v806, %v498
  %v808 = vadd.f32 %v807, %v503
  %v809 = vadd.f32 %v808, %v506
  %v810 = vadd.f32 %v809, %v511
  %v811 = vadd.f32 %v810, %v514
  %v812 = vadd.f32 %v811, %v519
  %v813 = vadd.f32 %v812, %v522
  %v814 = vadd.f32 %v813, %v527
  %v815 = vadd.f32 %v814, %v530
  %v816 = vadd.f32 %v815, %v535
  %v817 = vadd.f32 %v816, %v538
  %v818 = vadd.f32 %v817, %v543
  %v819 = vadd.f32 %v818, %v546
  %v820 = vadd.f32 %v819, %v551
  %v821 = vadd.f32 %v820, %v554
  %v822 = vadd.f32 %v821, %v559
  %v823 = vadd.f32 %v822, %v562
  %v824 = vadd.f32 %v823, %v567
  %v825 = vadd.f32 %v824, %v570
  %v826 = vadd.f32 %v825, %v575
  %v827 = vadd.f32 %v826, %v578
  %v828 = vadd.f32 %v827, %v583
  %v829 = vadd.f32 %v828, %v586
  %v830 = vadd.f32 %v829, %v591
  %v831 = vadd.f32 %v830, %v594
  %v832 = vadd.f32 %v831, %v599
  %v833 = vadd.f32 %v832, %v602
  %v834 = vadd.f32 %v833, %v607
  %v835 = vadd.f32 %v834, %v610
  %v836 = vadd.f32 %v835, %v615
  %v837 = vadd.f32 %v836, %v618
  %v838 = vadd.f32 %v837, %v623
  %v839 = vadd.f32 %v838, %v626
  %v840 = vadd.f32 %v839, %v631
  %v841 = vadd.f32 %v840, %v634
  %v842 = vadd.f32 %v841, %v639
  %v843 = vadd.f32 %v842, %v642
  %v844 = vadd.f32 %v843, %v647
  %v845 = vadd.f32 %v844, %v650
  %v846 = vadd.f32 %v845, %v655
  %v847 = vadd.f32 %v846, %v658
  %v848 = vadd.f32 %v847, %v663
  %v849 = vadd.f32 %v848, %v666
  %v850 = vadd.f32 %v849, %v671
  %v851 = vadd.f32 %v850, %v674
  %v852 = vadd.f32 %v851, %v679
  %v853 = vadd.f32 %v852, %v682
  %v854 = vadd.f32 %v853, %v687
  %v855 = vadd.f32 %v854, %v690
  %v856 = vadd.f32 %v855, %v695
  %v857 = vadd.f32 %v856, %v698
  %v858 = vadd.f32 %v857, %v703
  %v859 = vadd.f32 %v858, %v706
  %v860 = vadd.f32 %v859, %v711
  %v861 = vadd.f32 %v860, %v714
  %v862 = vadd.f32 %v861, %v719
  %v863 = vadd.f32 %v862, %v722
  %v864 = vadd.f32 %v863, %v727
  %v865 = vadd.f32 %v864, %v730
  %v866 = vadd.f32 %v865, %v735
  %v867 = vadd.f32 %v866, %v738
  %v868 = vrot.slane %v867, 4
  %v869 = vadd.f32 %v867, %v868
  %v870 = vrot.slane %v869, 2
  %v871 = vadd.f32 %v869, %v870
  %v872 = vrot.slane %v871, 1
  %v873 = vadd.f32 %v871, %v872
  %874 = vst [vmem:[%s5] sm:$0x1] %v873
  %v875 = vmul.f32 %v487, %v487
  %v876 = vmul.f32 %v490, %v490
  %v877 = vmul.f32 %v495, %v495
  %v878 = vmul.f32 %v498, %v498
  %v879 = vmul.f32 %v503, %v503
  %v880 = vmul.f32 %v506, %v506
  %v881 = vmul.f32 %v511, %v511
  %v882 = vmul.f32 %v514, %v514
  %v883 = vmul.f32 %v519, %v519
  %v884 = vmul.f32 %v522, %v522
  %v885 = vmul.f32 %v527, %v527
  %v886 = vmul.f32 %v530, %v530
  %v887 = vmul.f32 %v535, %v535
  %v888 = vmul.f32 %v538, %v538
  %v889 = vmul.f32 %v543, %v543
  %v890 = vmul.f32 %v546, %v546
  %v891 = vmul.f32 %v551, %v551
  %v892 = vmul.f32 %v554, %v554
  %v893 = vmul.f32 %v559, %v559
  %v894 = vmul.f32 %v562, %v562
  %v895 = vmul.f32 %v567, %v567
  %v896 = vmul.f32 %v570, %v570
  %v897 = vmul.f32 %v575, %v575
  %v898 = vmul.f32 %v578, %v578
  %v899 = vmul.f32 %v583, %v583
  %v900 = vmul.f32 %v586, %v586
  %v901 = vmul.f32 %v591, %v591
  %v902 = vmul.f32 %v594, %v594
  %v903 = vmul.f32 %v599, %v599
  %v904 = vmul.f32 %v602, %v602
  %v905 = vmul.f32 %v607, %v607
  %v906 = vmul.f32 %v610, %v610
  %v907 = vmul.f32 %v615, %v615
  %v908 = vmul.f32 %v618, %v618
  %v909 = vmul.f32 %v623, %v623
  %v910 = vmul.f32 %v626, %v626
  %v911 = vmul.f32 %v631, %v631
  %v912 = vmul.f32 %v634, %v634
  %v913 = vmul.f32 %v639, %v639
  %v914 = vmul.f32 %v642, %v642
  %v915 = vmul.f32 %v647, %v647
  %v916 = vmul.f32 %v650, %v650
  %v917 = vmul.f32 %v655, %v655
  %v918 = vmul.f32 %v658, %v658
  %v919 = vmul.f32 %v663, %v663
  %v920 = vmul.f32 %v666, %v666
  %v921 = vmul.f32 %v671, %v671
  %v922 = vmul.f32 %v674, %v674
  %v923 = vmul.f32 %v679, %v679
  %v924 = vmul.f32 %v682, %v682
  %v925 = vmul.f32 %v687, %v687
  %v926 = vmul.f32 %v690, %v690
  %v927 = vmul.f32 %v695, %v695
  %v928 = vmul.f32 %v698, %v698
  %v929 = vmul.f32 %v703, %v703
  %v930 = vmul.f32 %v706, %v706
  %v931 = vmul.f32 %v711, %v711
  %v932 = vmul.f32 %v714, %v714
  %v933 = vmul.f32 %v719, %v719
  %v934 = vmul.f32 %v722, %v722
  %v935 = vmul.f32 %v727, %v727
  %v936 = vmul.f32 %v730, %v730
  %v937 = vmul.f32 %v735, %v735
  %v938 = vmul.f32 %v738, %v738
  %v939 = vadd.f32 %v875, %v876
  %v940 = vadd.f32 %v939, %v877
  %v941 = vadd.f32 %v940, %v878
  %v942 = vadd.f32 %v941, %v879
  %v943 = vadd.f32 %v942, %v880
  %v944 = vadd.f32 %v943, %v881
  %v945 = vadd.f32 %v944, %v882
  %v946 = vadd.f32 %v945, %v883
  %v947 = vadd.f32 %v946, %v884
  %v948 = vadd.f32 %v947, %v885
  %v949 = vadd.f32 %v948, %v886
  %v950 = vadd.f32 %v949, %v887
  %v951 = vadd.f32 %v950, %v888
  %v952 = vadd.f32 %v951, %v889
  %v953 = vadd.f32 %v952, %v890
  %v954 = vadd.f32 %v953, %v891
  %v955 = vadd.f32 %v954, %v892
  %v956 = vadd.f32 %v955, %v893
  %v957 = vadd.f32 %v956, %v894
  %v958 = vadd.f32 %v957, %v895
  %v959 = vadd.f32 %v958, %v896
  %v960 = vadd.f32 %v959, %v897
  %v961 = vadd.f32 %v960, %v898
  %v962 = vadd.f32 %v961, %v899
  %v963 = vadd.f32 %v962, %v900
  %v964 = vadd.f32 %v963, %v901
  %v965 = vadd.f32 %v964, %v902
  %v966 = vadd.f32 %v965, %v903
  %v967 = vadd.f32 %v966, %v904
  %v968 = vadd.f32 %v967, %v905
  %v969 = vadd.f32 %v968, %v906
  %v970 = vadd.f32 %v969, %v907
  %v971 = vadd.f32 %v970, %v908
  %v972 = vadd.f32 %v971, %v909
  %v973 = vadd.f32 %v972, %v910
  %v974 = vadd.f32 %v973, %v911
  %v975 = vadd.f32 %v974, %v912
  %v976 = vadd.f32 %v975, %v913
  %v977 = vadd.f32 %v976, %v914
  %v978 = vadd.f32 %v977, %v915
  %v979 = vadd.f32 %v978, %v916
  %v980 = vadd.f32 %v979, %v917
  %v981 = vadd.f32 %v980, %v918
  %v982 = vadd.f32 %v981, %v919
  %v983 = vadd.f32 %v982, %v920
  %v984 = vadd.f32 %v983, %v921
  %v985 = vadd.f32 %v984, %v922
  %v986 = vadd.f32 %v985, %v923
  %v987 = vadd.f32 %v986, %v924
  %v988 = vadd.f32 %v987, %v925
  %v989 = vadd.f32 %v988, %v926
  %v990 = vadd.f32 %v989, %v927
  %v991 = vadd.f32 %v990, %v928
  %v992 = vadd.f32 %v991, %v929
  %v993 = vadd.f32 %v992, %v930
  %v994 = vadd.f32 %v993, %v931
  %v995 = vadd.f32 %v994, %v932
  %v996 = vadd.f32 %v995, %v933
  %v997 = vadd.f32 %v996, %v934
  %v998 = vadd.f32 %v997, %v935
  %v999 = vadd.f32 %v998, %v936
  %v1000 = vadd.f32 %v999, %v937
  %v1001 = vadd.f32 %v1000, %v938
  %v1002 = vrot.slane %v1001, 4
  %v1003 = vadd.f32 %v1001, %v1002
  %v1004 = vrot.slane %v1003, 2
  %v1005 = vadd.f32 %v1003, %v1004
  %v1006 = vrot.slane %v1005, 1
  %v1007 = vadd.f32 %v1005, %v1006
  %1008 = vst [vmem:[%s6] sm:$0x1] %v1007
  // Predicated region
  $region18: #{dense_block_forward.10} parent=0 // pred_check
    _
  $region19: #{dense_block_forward.10} parent=0 // pred_check_branch
    %1010 = sbr.rel (0) target = $region21
  $region20: #{dense_block_forward.10} parent=0 // pred_region
    _
  $region21: #{dense_block_forward.10} parent=0 // pred_fallthru
    _
  // Predicated region
  $region22: #{dense_block_forward.10} parent=0 // pred_check
    _
  $region23: #{dense_block_forward.10} parent=0 // pred_check_branch
    %1012 = sbr.rel (0) target = $region25
  $region24: #{dense_block_forward.10} parent=0 // pred_region
    _
  $region25: #{dense_block_forward.10} parent=0 // pred_fallthru
    _
  // Predicated region
  $region26: #{dense_block_forward.10} parent=0 // pred_check
    _
  $region27: #{dense_block_forward.10} parent=0 // pred_check_branch
    %1014 = sbr.rel (0) target = $region29
  $region28: #{dense_block_forward.10} parent=0 // pred_region
    _
  $region29: #{dense_block_forward.10} parent=0 // pred_fallthru
    _
  // Predicated region
  $region30: #{dense_block_forward.10} parent=0 // pred_check
    _
  $region31: #{dense_block_forward.10} parent=0 // pred_check_branch
    %1016 = sbr.rel (0) target = $region33
  $region32: #{dense_block_forward.10} parent=0 // pred_region
    _
  $region33: #{dense_block_forward.10} parent=0 // pred_fallthru
    _
  // Predicated region
  $region34: #{dense_block_forward.10} parent=0 // pred_check
    _
  $region35: #{dense_block_forward.10} parent=0 // pred_check_branch
    %1018 = sbr.rel (0) target = $region37
  $region36: #{dense_block_forward.10} parent=0 // pred_region
    _
  $region37: #{dense_block_forward.10} parent=0 // pred_fallthru
    _
  // Predicated region
  $region38: #{dense_block_forward.10} parent=0 // pred_check
    _
  $region39: #{dense_block_forward.10} parent=0 // pred_check_branch
    %1020 = sbr.rel (0) target = $region41
  $region40: #{dense_block_forward.10} parent=0 // pred_region
    _
  $region41: #{dense_block_forward.10} parent=0 // pred_fallthru
    _

</llo_original>
